<compile_context>
chip_gen: v5e
topology: v5e:2x2
jax: 0.10.0
libtpu: 0.0.40
codegen_flags: <defaults>
</compile_context>

<pallas_src>
import functools

import jax
import jax.numpy as jnp
import numpy as np
from jax.experimental import pallas as pl
from jax.experimental.pallas import tpu as pltpu


# ----------------------------------------------------------------------------
# Kernel 1: stacked LSTM recurrence over a chunk of time steps.
# ----------------------------------------------------------------------------
def lstm_chunk_kernel(n_layers, t_chunk, x_ref, *rest):
    """x_ref     : (TC, TB, E) bf16  -- input sequence chunk for this batch tile
       rest      : [w_0, b_0, ..., w_{L-1}, b_{L-1}, h_out_ref, h_scratch, c_scratch]
       w_l       : (in_l + H, 4H) bf16  fused [W_ih; W_hh]
       b_l       : (1, 4H) f32          (b_ih + b_hh)
       h_out_ref : (TC, TB, H) bf16     top-layer hidden states
       h/c scratch: (L, TB, H) f32      recurrent state, persists across time chunks
    """
    layer_refs = rest[:2 * n_layers]
    h_out_ref = rest[2 * n_layers]
    h_ref, c_ref = rest[2 * n_layers + 1:]

    tc = pl.program_id(1)              # time-chunk index ("arbitrary": true recurrence)
    H = h_ref.shape[2]

    # Zero the recurrent state at the first time chunk of every batch tile.
    @pl.when(tc == 0)
    def _():
        h_ref[...] = jnp.zeros_like(h_ref)
        c_ref[...] = jnp.zeros_like(c_ref)

    # Statically unrolled time steps within the chunk (amortizes grid-step overhead).
    for s in range(t_chunk):
        x = x_ref[s]                                       # (TB, E) bf16
        for l in range(n_layers):
            w = layer_refs[2 * l]                          # (in_l + H, 4H) bf16
            b = layer_refs[2 * l + 1]                      # (1, 4H) f32
            h_prev = h_ref[l]                              # (TB, H) f32
            c_prev = c_ref[l]
            xh = jnp.concatenate(
                [x.astype(jnp.bfloat16), h_prev.astype(jnp.bfloat16)], axis=-1)
            gates = jnp.dot(xh, w[...],
                            preferred_element_type=jnp.float32) + b[...]   # (TB, 4H) f32
            # PyTorch gate order [i, f, g, o].
            i_g = jax.nn.sigmoid(gates[:, 0 * H:1 * H])
            f_g = jax.nn.sigmoid(gates[:, 1 * H:2 * H])
            g_g = jnp.tanh(gates[:, 2 * H:3 * H])
            o_g = jax.nn.sigmoid(gates[:, 3 * H:4 * H])
            c_new = f_g * c_prev + i_g * g_g
            h_new = o_g * jnp.tanh(c_new)
            h_ref[l] = h_new
            c_ref[l] = c_new
            x = h_new
        h_out_ref[s] = x.astype(h_out_ref.dtype)


# ----------------------------------------------------------------------------
# Kernel 2: hoisted vocab projection, plain tiled matmul + bias.
# ----------------------------------------------------------------------------
def proj_kernel(h_ref, w_ref, b_ref, o_ref):
    o_ref[...] = (jnp.dot(h_ref[...], w_ref[...],
                          preferred_element_type=jnp.float32)
                  + b_ref[...]).astype(o_ref.dtype)


def _nbytes(shape, dtype):
    return int(np.prod(shape)) * int(np.dtype(dtype).itemsize)


def decoder_rnn_forward(features, captions, emb_table, lstm_params, w_out, b_out,
                        *, batch_tile=None, time_chunk=4):
    """features: (B, E)  captions: (T, B) int  emb_table: (V, E)
       lstm_params: list of (w_ih (4H,in), w_hh (4H,H), b_ih (4H,), b_hh (4H,)) per layer
       w_out: (V, H)  b_out: (V,)  ->  (T+1, B, V) float32
    """
    B, E = features.shape
    T, Bc = captions.shape
    assert Bc == B
    V, E2 = emb_table.shape
    assert E2 == E
    L = len(lstm_params)
    H = lstm_params[0][1].shape[1]
    assert w_out.shape == (V, H) and b_out.shape == (V,)
    Tt = T + 1

    # -------- choose tiles --------
    if batch_tile is None:
        TB = B
        for cand in (256, 128, 64, 32, 16, 8):   # grow batch tile toward MXU width
            if B % cand == 0:
                TB = cand
                break
    else:
        TB = min(batch_tile, B)
    assert B % TB == 0
    TC = max(1, int(time_chunk))
    Tt_pad = pl.cdiv(Tt, TC) * TC

    # -------- build the input sequence outside the kernel (XLA gather, bf16) --------
    emb_bf16 = emb_table.astype(jnp.bfloat16)
    x_seq = jnp.concatenate(
        [features.astype(jnp.bfloat16)[None],
         jnp.take(emb_bf16, captions.astype(jnp.int32), axis=0)], axis=0)  # (Tt, B, E)
    if Tt_pad != Tt:
        x_seq = jnp.pad(x_seq, ((0, Tt_pad - Tt), (0, 0), (0, 0)))

    # -------- pack fused LSTM weights --------
    args = [x_seq]
    in_specs = [pl.BlockSpec((TC, TB, E), lambda bi, tc: (tc, bi, 0))]
    weight_bytes = 0
    for l, (w_ih, w_hh, b_ih, b_hh) in enumerate(lstm_params):
        in_dim = E if l == 0 else H
        assert w_ih.shape == (4 * H, in_dim) and w_hh.shape == (4 * H, H)
        w_fused = jnp.concatenate([w_ih.T, w_hh.T], axis=0).astype(jnp.bfloat16)
        bias = (b_ih + b_hh).reshape(1, 4 * H).astype(jnp.float32)
        args += [w_fused, bias]
        in_specs += [pl.BlockSpec((in_dim + H, 4 * H), lambda bi, tc: (0, 0)),
                     pl.BlockSpec((1, 4 * H), lambda bi, tc: (0, 0))]
        weight_bytes += _nbytes(w_fused.shape, jnp.bfloat16) + _nbytes(bias.shape, jnp.float32)

    # -------- VMEM budget (blocks double-buffered + resident weights + scratch) --------
    vmem_needed = (2 * _nbytes((TC, TB, E), jnp.bfloat16)
                   + 2 * _nbytes((TC, TB, H), jnp.bfloat16)
                   + 2 * weight_bytes
                   + 2 * _nbytes((L, TB, H), jnp.float32))
    vmem_limit = int(min(max(2 * vmem_needed, 32 << 20), 100 << 20))

    gate_flops = sum(2 * ((E if l == 0 else H) + H) * 4 * H for l in range(L))
    lstm_cost = pl.CostEstimate(
        flops=int(Tt_pad * B * gate_flops),
        transcendentals=int(Tt_pad * B * L * 5 * H),
        bytes_accessed=int(x_seq.size * 2 + weight_bytes + Tt_pad * B * H * 2))

    hiddens = pl.pallas_call(
        functools.partial(lstm_chunk_kernel, L, TC),
        grid_spec=pltpu.PrefetchScalarGridSpec(
            num_scalar_prefetch=0,
            grid=(B // TB, Tt_pad // TC),
            in_specs=in_specs,
            out_specs=pl.BlockSpec((TC, TB, H), lambda bi, tc: (tc, bi, 0)),
            scratch_shapes=[pltpu.VMEM((L, TB, H), jnp.float32),   # h state
                            pltpu.VMEM((L, TB, H), jnp.float32)],  # c state
        ),
        out_shape=jax.ShapeDtypeStruct((Tt_pad, B, H), jnp.bfloat16),
        compiler_params=pltpu.CompilerParams(
            dimension_semantics=("parallel", "arbitrary"),
            vmem_limit_bytes=vmem_limit),
        cost_estimate=lstm_cost,
    )(*args)

    # -------- hoisted vocab projection: (Tt*B, H) @ (H, V) + b --------
    h_flat = hiddens[:Tt].reshape(Tt * B, H)
    M = Tt * B
    TM = 128 if M >= 128 else ((M + 7) // 8) * 8
    M_pad = pl.cdiv(M, TM) * TM
    if M_pad != M:
        h_flat = jnp.pad(h_flat, ((0, M_pad - M), (0, 0)))
    TN = V
    for cand in (512, 256, 128):
        if V % cand == 0:
            TN = cand
            break

    w_out_t = w_out.T.astype(jnp.bfloat16)                 # (H, V)
    b_out_row = b_out.reshape(1, V).astype(jnp.float32)

    logits = pl.pallas_call(
        proj_kernel,
        grid=(M_pad // TM, V // TN),
        in_specs=[pl.BlockSpec((TM, H), lambda i, j: (i, 0)),
                  pl.BlockSpec((H, TN), lambda i, j: (0, j)),
                  pl.BlockSpec((1, TN), lambda i, j: (0, j))],
        out_specs=pl.BlockSpec((TM, TN), lambda i, j: (i, j)),
        out_shape=jax.ShapeDtypeStruct((M_pad, V), jnp.float32),
        compiler_params=pltpu.CompilerParams(
            dimension_semantics=("parallel", "parallel")),
        cost_estimate=pl.CostEstimate(
            flops=int(2 * M_pad * H * V), transcendentals=0,
            bytes_accessed=int(M_pad * H * 2 + H * V * 2 + M_pad * V * 4)),
    )(h_flat, w_out_t, b_out_row)

    return logits[:M].reshape(Tt, B, V)


# ----------------------------------------------------------------------------
# Pure-JAX reference of Decoder_RNN.forward (f32 everywhere).
# ----------------------------------------------------------------------------
def _reference_forward(features, captions, emb_table, lstm_params, w_out, b_out):
    x_seq = jnp.concatenate([features[None], emb_table[captions]], axis=0)  # (T+1,B,E)
    Tt, B, _ = x_seq.shape
    H = lstm_params[0][1].shape[1]
    L = len(lstm_params)
    h = [jnp.zeros((B, H), jnp.float32) for _ in range(L)]
    c = [jnp.zeros((B, H), jnp.float32) for _ in range(L)]
    outs = []
    for t in range(Tt):
        x = x_seq[t]
        for l, (w_ih, w_hh, b_ih, b_hh) in enumerate(lstm_params):
            gates = x @ w_ih.T + h[l] @ w_hh.T + b_ih + b_hh
            i_g, f_g, g_g, o_g = jnp.split(gates, 4, axis=-1)
            i_g, f_g, o_g = jax.nn.sigmoid(i_g), jax.nn.sigmoid(f_g), jax.nn.sigmoid(o_g)
            g_g = jnp.tanh(g_g)
            c[l] = f_g * c[l] + i_g * g_g
            h[l] = o_g * jnp.tanh(c[l])
            x = h[l]
        outs.append(x @ w_out.T + b_out)
    return jnp.stack(outs, axis=0)


if __name__ == "__main__":
    # Small, layout-friendly shapes: batch 8 (sublane tile), hidden/embed 128 (lane tile),
    # vocab 256 (lane-dense), seq 8, 2 LSTM layers.
    B, T, E, H, V, L = 8, 8, 128, 128, 256, 2

    key = jax.random.PRNGKey(0)
    keys = jax.random.split(key, 5 + 4 * L)

    features = 0.1 * jax.random.normal(keys[0], (B, E), dtype=jnp.float32)
    captions = jax.random.randint(keys[1], (T, B), 0, V, dtype=jnp.int32)
    emb_table = 0.1 * jax.random.normal(keys[2], (V, E), dtype=jnp.float32)

    lstm_params = []
    for l in range(L):
        in_dim = E if l == 0 else H
        kw = keys[3 + 4 * l: 7 + 4 * l]
        w_ih = 0.1 * jax.random.normal(kw[0], (4 * H, in_dim), dtype=jnp.float32)
        w_hh = 0.1 * jax.random.normal(kw[1], (4 * H, H), dtype=jnp.float32)
        b_ih = 0.1 * jax.random.normal(kw[2], (4 * H,), dtype=jnp.float32)
        b_hh = 0.1 * jax.random.normal(kw[3], (4 * H,), dtype=jnp.float32)
        lstm_params.append((w_ih, w_hh, b_ih, b_hh))

    w_lin = 0.1 * jax.random.normal(keys[3 + 4 * L], (V, H), dtype=jnp.float32)
    b_lin = 0.1 * jax.random.normal(keys[4 + 4 * L], (V,), dtype=jnp.float32)

    out = decoder_rnn_forward(features, captions, emb_table, lstm_params, w_lin, b_lin,
                              time_chunk=4)
    out = jax.block_until_ready(out)
    assert out.shape == (T + 1, B, V) and out.dtype == jnp.float32

    # Correctness vs. pure-JAX reference (loose tolerance: bf16 MXU operands / bf16 hiddens).
    # NOTE: recurrent inputs are re-cast to bf16 each step, so drift grows with very long T.
    ref = _reference_forward(features, captions, emb_table, lstm_params, w_lin, b_lin)
    np.testing.assert_allclose(np.asarray(out), np.asarray(ref), atol=5e-2, rtol=5e-2)

    # TODO(synk): for very large vocab on v7x, additionally tile the projection over a K/V
    # grid with an f32 VMEM accumulator if (H, TN) weight blocks ever exceed the VMEM budget.
    print("KERNEL_OK")
</pallas_src>

<mosaic_0001>
module attributes {stable_mosaic.version = 11 : i64} {
  func.func @lstm_chunk_kernel(%arg0: i32, %arg1: i32, %arg2: memref<4x8x128xbf16, #tpu.memory_space<vmem>>, %arg3: memref<256x512xbf16, #tpu.memory_space<vmem>>, %arg4: memref<1x512xf32, #tpu.memory_space<vmem>>, %arg5: memref<256x512xbf16, #tpu.memory_space<vmem>>, %arg6: memref<1x512xf32, #tpu.memory_space<vmem>>, %arg7: memref<4x8x128xbf16, #tpu.memory_space<vmem>>, %arg8: memref<2x8x128xf32, #tpu.memory_space<vmem>>, %arg9: memref<2x8x128xf32, #tpu.memory_space<vmem>>) attributes {dimension_semantics = [#tpu.dimension_semantics<parallel>, #tpu.dimension_semantics<arbitrary>], iteration_bounds = array<i64: 1, 3>, scalar_prefetch = 0 : i64, scratch_operands = 2 : i64, tpu.core_type = #tpu.core_type<tc>, window_params = [{transform_indices = @transform_0, window_bounds = array<i64: 4, 8, 128>}, {pipeline_mode = #tpu.pipeline_mode<synchronous>, transform_indices = @transform_1, window_bounds = array<i64: 256, 512>}, {pipeline_mode = #tpu.pipeline_mode<synchronous>, transform_indices = @transform_2, window_bounds = array<i64: 1, 512>}, {pipeline_mode = #tpu.pipeline_mode<synchronous>, transform_indices = @transform_3, window_bounds = array<i64: 256, 512>}, {pipeline_mode = #tpu.pipeline_mode<synchronous>, transform_indices = @transform_4, window_bounds = array<i64: 1, 512>}, {transform_indices = @transform_5, window_bounds = array<i64: 4, 8, 128>}]} {
    %c0_i32 = arith.constant 0 : i32
    %0 = arith.cmpi eq, %arg1, %c0_i32 : i32
    %1 = arith.extui %0 : i1 to i32
    %c0_i32_0 = arith.constant 0 : i32
    %2 = arith.cmpi ne, %1, %c0_i32_0 : i32
    scf.if %2 {
      %cst_180 = arith.constant 0.000000e+00 : f32
      %367 = vector.broadcast %cst_180 : f32 to vector<2x8x128xf32>
      %c0_181 = arith.constant 0 : index
      %c0_182 = arith.constant 0 : index
      %c0_183 = arith.constant 0 : index
      %368 = vector.load %arg8[%c0_181, %c0_182, %c0_183] : memref<2x8x128xf32, #tpu.memory_space<vmem>>, vector<2x8x128xf32>
      tpu.vector_store %arg8[%c0_181, %c0_182, %c0_183], %367 {strides = array<i32>} : memref<2x8x128xf32, #tpu.memory_space<vmem>>, vector<2x8x128xf32>,
      %cst_184 = arith.constant 0.000000e+00 : f32
      %369 = vector.broadcast %cst_184 : f32 to vector<2x8x128xf32>
      %c0_185 = arith.constant 0 : index
      %c0_186 = arith.constant 0 : index
      %c0_187 = arith.constant 0 : index
      %370 = vector.load %arg9[%c0_185, %c0_186, %c0_187] : memref<2x8x128xf32, #tpu.memory_space<vmem>>, vector<2x8x128xf32>
      tpu.vector_store %arg9[%c0_185, %c0_186, %c0_187], %369 {strides = array<i32>} : memref<2x8x128xf32, #tpu.memory_space<vmem>>, vector<2x8x128xf32>,
    } else {
    }
    %c0 = arith.constant 0 : index
    %c0_1 = arith.constant 0 : index
    %c0_2 = arith.constant 0 : index
    %3 = vector.load %arg2[%c0, %c0_1, %c0_2] : memref<4x8x128xbf16, #tpu.memory_space<vmem>>, vector<1x8x128xbf16>
    %4 = vector.shape_cast %3 : vector<1x8x128xbf16> to vector<8x128xbf16>
    %c0_3 = arith.constant 0 : index
    %c0_4 = arith.constant 0 : index
    %c0_5 = arith.constant 0 : index
    %5 = vector.load %arg8[%c0_3, %c0_4, %c0_5] : memref<2x8x128xf32, #tpu.memory_space<vmem>>, vector<1x8x128xf32>
    %6 = vector.shape_cast %5 : vector<1x8x128xf32> to vector<8x128xf32>
    %c0_6 = arith.constant 0 : index
    %c0_7 = arith.constant 0 : index
    %c0_8 = arith.constant 0 : index
    %7 = vector.load %arg9[%c0_6, %c0_7, %c0_8] : memref<2x8x128xf32, #tpu.memory_space<vmem>>, vector<1x8x128xf32>
    %8 = vector.shape_cast %7 : vector<1x8x128xf32> to vector<8x128xf32>
    %9 = arith.truncf %6 : vector<8x128xf32> to vector<8x128xbf16>
    %10 = tpu.concatenate %4, %9 in 1 : vector<8x128xbf16>, vector<8x128xbf16> -> vector<8x256xbf16>
    %c0_9 = arith.constant 0 : index
    %c0_10 = arith.constant 0 : index
    %11 = vector.load %arg3[%c0_9, %c0_10] : memref<256x512xbf16, #tpu.memory_space<vmem>>, vector<256x512xbf16>
    %cst = arith.constant dense<0.000000e+00> : vector<8x512xf32>
    %12 = tpu.matmul %10, %11, %cst {dimension_numbers = #tpu.dot_dimension_numbers<[1], [0], [0], [1], [0, 0, 1, 1], [], []>} : vector<8x256xbf16>, vector<256x512xbf16>, vector<8x512xf32> -> vector<8x512xf32>
    %c0_11 = arith.constant 0 : index
    %c0_12 = arith.constant 0 : index
    %13 = vector.load %arg4[%c0_11, %c0_12] : memref<1x512xf32, #tpu.memory_space<vmem>>, vector<1x512xf32>
    %14 = vector.broadcast %13 : vector<1x512xf32> to vector<8x512xf32>
    %15 = arith.addf %12, %14 : vector<8x512xf32>
    %16 = vector.extract_strided_slice %15 {offsets = [0, 0], sizes = [8, 128], strides = [1, 1]} : vector<8x512xf32> to vector<8x128xf32>
    %17 = arith.negf %16 : vector<8x128xf32>
    %18 = math.exp %17 : vector<8x128xf32>
    %cst_13 = arith.constant 1.000000e+00 : f32
    %19 = vector.broadcast %cst_13 : f32 to vector<8x128xf32>
    %20 = arith.addf %19, %18 : vector<8x128xf32>
    %21 = arith.divf %19, %20 : vector<8x128xf32>
    %22 = vector.extract_strided_slice %15 {offsets = [0, 128], sizes = [8, 128], strides = [1, 1]} : vector<8x512xf32> to vector<8x128xf32>
    %23 = arith.negf %22 : vector<8x128xf32>
    %24 = math.exp %23 : vector<8x128xf32>
    %cst_14 = arith.constant 1.000000e+00 : f32
    %25 = vector.broadcast %cst_14 : f32 to vector<8x128xf32>
    %26 = arith.addf %25, %24 : vector<8x128xf32>
    %27 = arith.divf %25, %26 : vector<8x128xf32>
    %28 = vector.extract_strided_slice %15 {offsets = [0, 256], sizes = [8, 128], strides = [1, 1]} : vector<8x512xf32> to vector<8x128xf32>
    %29 = math.tanh %28 : vector<8x128xf32>
    %30 = vector.extract_strided_slice %15 {offsets = [0, 384], sizes = [8, 128], strides = [1, 1]} : vector<8x512xf32> to vector<8x128xf32>
    %31 = arith.negf %30 : vector<8x128xf32>
    %32 = math.exp %31 : vector<8x128xf32>
    %cst_15 = arith.constant 1.000000e+00 : f32
    %33 = vector.broadcast %cst_15 : f32 to vector<8x128xf32>
    %34 = arith.addf %33, %32 : vector<8x128xf32>
    %35 = arith.divf %33, %34 : vector<8x128xf32>
    %36 = arith.mulf %27, %8 : vector<8x128xf32>
    %37 = arith.mulf %21, %29 : vector<8x128xf32>
    %38 = arith.addf %36, %37 : vector<8x128xf32>
    %39 = math.tanh %38 : vector<8x128xf32>
    %40 = arith.mulf %35, %39 : vector<8x128xf32>
    %c0_16 = arith.constant 0 : index
    %c0_17 = arith.constant 0 : index
    %c0_18 = arith.constant 0 : index
    %41 = vector.load %arg8[%c0_16, %c0_17, %c0_18] : memref<2x8x128xf32, #tpu.memory_space<vmem>>, vector<1x8x128xf32>
    %42 = vector.shape_cast %41 : vector<1x8x128xf32> to vector<8x128xf32>
    %43 = vector.shape_cast %40 : vector<8x128xf32> to vector<1x8x128xf32>
    tpu.vector_store %arg8[%c0_16, %c0_17, %c0_18], %43 {strides = array<i32>} : memref<2x8x128xf32, #tpu.memory_space<vmem>>, vector<1x8x128xf32>,
    %c0_19 = arith.constant 0 : index
    %c0_20 = arith.constant 0 : index
    %c0_21 = arith.constant 0 : index
    %44 = vector.load %arg9[%c0_19, %c0_20, %c0_21] : memref<2x8x128xf32, #tpu.memory_space<vmem>>, vector<1x8x128xf32>
    %45 = vector.shape_cast %44 : vector<1x8x128xf32> to vector<8x128xf32>
    %46 = vector.shape_cast %38 : vector<8x128xf32> to vector<1x8x128xf32>
    tpu.vector_store %arg9[%c0_19, %c0_20, %c0_21], %46 {strides = array<i32>} : memref<2x8x128xf32, #tpu.memory_space<vmem>>, vector<1x8x128xf32>,
    %c1 = arith.constant 1 : index
    %c0_22 = arith.constant 0 : index
    %c0_23 = arith.constant 0 : index
    %47 = vector.load %arg8[%c1, %c0_22, %c0_23] : memref<2x8x128xf32, #tpu.memory_space<vmem>>, vector<1x8x128xf32>
    %48 = vector.shape_cast %47 : vector<1x8x128xf32> to vector<8x128xf32>
    %c1_24 = arith.constant 1 : index
    %c0_25 = arith.constant 0 : index
    %c0_26 = arith.constant 0 : index
    %49 = vector.load %arg9[%c1_24, %c0_25, %c0_26] : memref<2x8x128xf32, #tpu.memory_space<vmem>>, vector<1x8x128xf32>
    %50 = vector.shape_cast %49 : vector<1x8x128xf32> to vector<8x128xf32>
    %51 = arith.truncf %40 : vector<8x128xf32> to vector<8x128xbf16>
    %52 = arith.truncf %48 : vector<8x128xf32> to vector<8x128xbf16>
    %53 = tpu.concatenate %51, %52 in 1 : vector<8x128xbf16>, vector<8x128xbf16> -> vector<8x256xbf16>
    %c0_27 = arith.constant 0 : index
    %c0_28 = arith.constant 0 : index
    %54 = vector.load %arg5[%c0_27, %c0_28] : memref<256x512xbf16, #tpu.memory_space<vmem>>, vector<256x512xbf16>
    %cst_29 = arith.constant dense<0.000000e+00> : vector<8x512xf32>
    %55 = tpu.matmul %53, %54, %cst_29 {dimension_numbers = #tpu.dot_dimension_numbers<[1], [0], [0], [1], [0, 0, 1, 1], [], []>} : vector<8x256xbf16>, vector<256x512xbf16>, vector<8x512xf32> -> vector<8x512xf32>
    %c0_30 = arith.constant 0 : index
    %c0_31 = arith.constant 0 : index
    %56 = vector.load %arg6[%c0_30, %c0_31] : memref<1x512xf32, #tpu.memory_space<vmem>>, vector<1x512xf32>
    %57 = vector.broadcast %56 : vector<1x512xf32> to vector<8x512xf32>
    %58 = arith.addf %55, %57 : vector<8x512xf32>
    %59 = vector.extract_strided_slice %58 {offsets = [0, 0], sizes = [8, 128], strides = [1, 1]} : vector<8x512xf32> to vector<8x128xf32>
    %60 = arith.negf %59 : vector<8x128xf32>
    %61 = math.exp %60 : vector<8x128xf32>
    %cst_32 = arith.constant 1.000000e+00 : f32
    %62 = vector.broadcast %cst_32 : f32 to vector<8x128xf32>
    %63 = arith.addf %62, %61 : vector<8x128xf32>
    %64 = arith.divf %62, %63 : vector<8x128xf32>
    %65 = vector.extract_strided_slice %58 {offsets = [0, 128], sizes = [8, 128], strides = [1, 1]} : vector<8x512xf32> to vector<8x128xf32>
    %66 = arith.negf %65 : vector<8x128xf32>
    %67 = math.exp %66 : vector<8x128xf32>
    %cst_33 = arith.constant 1.000000e+00 : f32
    %68 = vector.broadcast %cst_33 : f32 to vector<8x128xf32>
    %69 = arith.addf %68, %67 : vector<8x128xf32>
    %70 = arith.divf %68, %69 : vector<8x128xf32>
    %71 = vector.extract_strided_slice %58 {offsets = [0, 256], sizes = [8, 128], strides = [1, 1]} : vector<8x512xf32> to vector<8x128xf32>
    %72 = math.tanh %71 : vector<8x128xf32>
    %73 = vector.extract_strided_slice %58 {offsets = [0, 384], sizes = [8, 128], strides = [1, 1]} : vector<8x512xf32> to vector<8x128xf32>
    %74 = arith.negf %73 : vector<8x128xf32>
    %75 = math.exp %74 : vector<8x128xf32>
    %cst_34 = arith.constant 1.000000e+00 : f32
    %76 = vector.broadcast %cst_34 : f32 to vector<8x128xf32>
    %77 = arith.addf %76, %75 : vector<8x128xf32>
    %78 = arith.divf %76, %77 : vector<8x128xf32>
    %79 = arith.mulf %70, %50 : vector<8x128xf32>
    %80 = arith.mulf %64, %72 : vector<8x128xf32>
    %81 = arith.addf %79, %80 : vector<8x128xf32>
    %82 = math.tanh %81 : vector<8x128xf32>
    %83 = arith.mulf %78, %82 : vector<8x128xf32>
    %c1_35 = arith.constant 1 : index
    %c0_36 = arith.constant 0 : index
    %c0_37 = arith.constant 0 : index
    %84 = vector.load %arg8[%c1_35, %c0_36, %c0_37] : memref<2x8x128xf32, #tpu.memory_space<vmem>>, vector<1x8x128xf32>
    %85 = vector.shape_cast %84 : vector<1x8x128xf32> to vector<8x128xf32>
    %86 = vector.shape_cast %83 : vector<8x128xf32> to vector<1x8x128xf32>
    tpu.vector_store %arg8[%c1_35, %c0_36, %c0_37], %86 {strides = array<i32>} : memref<2x8x128xf32, #tpu.memory_space<vmem>>, vector<1x8x128xf32>,
    %c1_38 = arith.constant 1 : index
    %c0_39 = arith.constant 0 : index
    %c0_40 = arith.constant 0 : index
    %87 = vector.load %arg9[%c1_38, %c0_39, %c0_40] : memref<2x8x128xf32, #tpu.memory_space<vmem>>, vector<1x8x128xf32>
    %88 = vector.shape_cast %87 : vector<1x8x128xf32> to vector<8x128xf32>
    %89 = vector.shape_cast %81 : vector<8x128xf32> to vector<1x8x128xf32>
    tpu.vector_store %arg9[%c1_38, %c0_39, %c0_40], %89 {strides = array<i32>} : memref<2x8x128xf32, #tpu.memory_space<vmem>>, vector<1x8x128xf32>,
    %90 = arith.truncf %83 : vector<8x128xf32> to vector<8x128xbf16>
    %c0_41 = arith.constant 0 : index
    %c0_42 = arith.constant 0 : index
    %c0_43 = arith.constant 0 : index
    %91 = vector.load %arg7[%c0_41, %c0_42, %c0_43] : memref<4x8x128xbf16, #tpu.memory_space<vmem>>, vector<1x8x128xbf16>
    %92 = vector.shape_cast %91 : vector<1x8x128xbf16> to vector<8x128xbf16>
    %93 = vector.shape_cast %90 : vector<8x128xbf16> to vector<1x8x128xbf16>
    tpu.vector_store %arg7[%c0_41, %c0_42, %c0_43], %93 {strides = array<i32>} : memref<4x8x128xbf16, #tpu.memory_space<vmem>>, vector<1x8x128xbf16>,
    %c1_44 = arith.constant 1 : index
    %c0_45 = arith.constant 0 : index
    %c0_46 = arith.constant 0 : index
    %94 = vector.load %arg2[%c1_44, %c0_45, %c0_46] : memref<4x8x128xbf16, #tpu.memory_space<vmem>>, vector<1x8x128xbf16>
    %95 = vector.shape_cast %94 : vector<1x8x128xbf16> to vector<8x128xbf16>
    %c0_47 = arith.constant 0 : index
    %c0_48 = arith.constant 0 : index
    %c0_49 = arith.constant 0 : index
    %96 = vector.load %arg8[%c0_47, %c0_48, %c0_49] : memref<2x8x128xf32, #tpu.memory_space<vmem>>, vector<1x8x128xf32>
    %97 = vector.shape_cast %96 : vector<1x8x128xf32> to vector<8x128xf32>
    %c0_50 = arith.constant 0 : index
    %c0_51 = arith.constant 0 : index
    %c0_52 = arith.constant 0 : index
    %98 = vector.load %arg9[%c0_50, %c0_51, %c0_52] : memref<2x8x128xf32, #tpu.memory_space<vmem>>, vector<1x8x128xf32>
    %99 = vector.shape_cast %98 : vector<1x8x128xf32> to vector<8x128xf32>
    %100 = arith.truncf %97 : vector<8x128xf32> to vector<8x128xbf16>
    %101 = tpu.concatenate %95, %100 in 1 : vector<8x128xbf16>, vector<8x128xbf16> -> vector<8x256xbf16>
    %c0_53 = arith.constant 0 : index
    %c0_54 = arith.constant 0 : index
    %102 = vector.load %arg3[%c0_53, %c0_54] : memref<256x512xbf16, #tpu.memory_space<vmem>>, vector<256x512xbf16>
    %cst_55 = arith.constant dense<0.000000e+00> : vector<8x512xf32>
    %103 = tpu.matmul %101, %102, %cst_55 {dimension_numbers = #tpu.dot_dimension_numbers<[1], [0], [0], [1], [0, 0, 1, 1], [], []>} : vector<8x256xbf16>, vector<256x512xbf16>, vector<8x512xf32> -> vector<8x512xf32>
    %c0_56 = arith.constant 0 : index
    %c0_57 = arith.constant 0 : index
    %104 = vector.load %arg4[%c0_56, %c0_57] : memref<1x512xf32, #tpu.memory_space<vmem>>, vector<1x512xf32>
    %105 = vector.broadcast %104 : vector<1x512xf32> to vector<8x512xf32>
    %106 = arith.addf %103, %105 : vector<8x512xf32>
    %107 = vector.extract_strided_slice %106 {offsets = [0, 0], sizes = [8, 128], strides = [1, 1]} : vector<8x512xf32> to vector<8x128xf32>
    %108 = arith.negf %107 : vector<8x128xf32>
    %109 = math.exp %108 : vector<8x128xf32>
    %cst_58 = arith.constant 1.000000e+00 : f32
    %110 = vector.broadcast %cst_58 : f32 to vector<8x128xf32>
    %111 = arith.addf %110, %109 : vector<8x128xf32>
    %112 = arith.divf %110, %111 : vector<8x128xf32>
    %113 = vector.extract_strided_slice %106 {offsets = [0, 128], sizes = [8, 128], strides = [1, 1]} : vector<8x512xf32> to vector<8x128xf32>
    %114 = arith.negf %113 : vector<8x128xf32>
    %115 = math.exp %114 : vector<8x128xf32>
    %cst_59 = arith.constant 1.000000e+00 : f32
    %116 = vector.broadcast %cst_59 : f32 to vector<8x128xf32>
    %117 = arith.addf %116, %115 : vector<8x128xf32>
    %118 = arith.divf %116, %117 : vector<8x128xf32>
    %119 = vector.extract_strided_slice %106 {offsets = [0, 256], sizes = [8, 128], strides = [1, 1]} : vector<8x512xf32> to vector<8x128xf32>
    %120 = math.tanh %119 : vector<8x128xf32>
    %121 = vector.extract_strided_slice %106 {offsets = [0, 384], sizes = [8, 128], strides = [1, 1]} : vector<8x512xf32> to vector<8x128xf32>
    %122 = arith.negf %121 : vector<8x128xf32>
    %123 = math.exp %122 : vector<8x128xf32>
    %cst_60 = arith.constant 1.000000e+00 : f32
    %124 = vector.broadcast %cst_60 : f32 to vector<8x128xf32>
    %125 = arith.addf %124, %123 : vector<8x128xf32>
    %126 = arith.divf %124, %125 : vector<8x128xf32>
    %127 = arith.mulf %118, %99 : vector<8x128xf32>
    %128 = arith.mulf %112, %120 : vector<8x128xf32>
    %129 = arith.addf %127, %128 : vector<8x128xf32>
    %130 = math.tanh %129 : vector<8x128xf32>
    %131 = arith.mulf %126, %130 : vector<8x128xf32>
    %c0_61 = arith.constant 0 : index
    %c0_62 = arith.constant 0 : index
    %c0_63 = arith.constant 0 : index
    %132 = vector.load %arg8[%c0_61, %c0_62, %c0_63] : memref<2x8x128xf32, #tpu.memory_space<vmem>>, vector<1x8x128xf32>
    %133 = vector.shape_cast %132 : vector<1x8x128xf32> to vector<8x128xf32>
    %134 = vector.shape_cast %131 : vector<8x128xf32> to vector<1x8x128xf32>
    tpu.vector_store %arg8[%c0_61, %c0_62, %c0_63], %134 {strides = array<i32>} : memref<2x8x128xf32, #tpu.memory_space<vmem>>, vector<1x8x128xf32>,
    %c0_64 = arith.constant 0 : index
    %c0_65 = arith.constant 0 : index
    %c0_66 = arith.constant 0 : index
    %135 = vector.load %arg9[%c0_64, %c0_65, %c0_66] : memref<2x8x128xf32, #tpu.memory_space<vmem>>, vector<1x8x128xf32>
    %136 = vector.shape_cast %135 : vector<1x8x128xf32> to vector<8x128xf32>
    %137 = vector.shape_cast %129 : vector<8x128xf32> to vector<1x8x128xf32>
    tpu.vector_store %arg9[%c0_64, %c0_65, %c0_66], %137 {strides = array<i32>} : memref<2x8x128xf32, #tpu.memory_space<vmem>>, vector<1x8x128xf32>,
    %c1_67 = arith.constant 1 : index
    %c0_68 = arith.constant 0 : index
    %c0_69 = arith.constant 0 : index
    %138 = vector.load %arg8[%c1_67, %c0_68, %c0_69] : memref<2x8x128xf32, #tpu.memory_space<vmem>>, vector<1x8x128xf32>
    %139 = vector.shape_cast %138 : vector<1x8x128xf32> to vector<8x128xf32>
    %c1_70 = arith.constant 1 : index
    %c0_71 = arith.constant 0 : index
    %c0_72 = arith.constant 0 : index
    %140 = vector.load %arg9[%c1_70, %c0_71, %c0_72] : memref<2x8x128xf32, #tpu.memory_space<vmem>>, vector<1x8x128xf32>
    %141 = vector.shape_cast %140 : vector<1x8x128xf32> to vector<8x128xf32>
    %142 = arith.truncf %131 : vector<8x128xf32> to vector<8x128xbf16>
    %143 = arith.truncf %139 : vector<8x128xf32> to vector<8x128xbf16>
    %144 = tpu.concatenate %142, %143 in 1 : vector<8x128xbf16>, vector<8x128xbf16> -> vector<8x256xbf16>
    %c0_73 = arith.constant 0 : index
    %c0_74 = arith.constant 0 : index
    %145 = vector.load %arg5[%c0_73, %c0_74] : memref<256x512xbf16, #tpu.memory_space<vmem>>, vector<256x512xbf16>
    %cst_75 = arith.constant dense<0.000000e+00> : vector<8x512xf32>
    %146 = tpu.matmul %144, %145, %cst_75 {dimension_numbers = #tpu.dot_dimension_numbers<[1], [0], [0], [1], [0, 0, 1, 1], [], []>} : vector<8x256xbf16>, vector<256x512xbf16>, vector<8x512xf32> -> vector<8x512xf32>
    %c0_76 = arith.constant 0 : index
    %c0_77 = arith.constant 0 : index
    %147 = vector.load %arg6[%c0_76, %c0_77] : memref<1x512xf32, #tpu.memory_space<vmem>>, vector<1x512xf32>
    %148 = vector.broadcast %147 : vector<1x512xf32> to vector<8x512xf32>
    %149 = arith.addf %146, %148 : vector<8x512xf32>
    %150 = vector.extract_strided_slice %149 {offsets = [0, 0], sizes = [8, 128], strides = [1, 1]} : vector<8x512xf32> to vector<8x128xf32>
    %151 = arith.negf %150 : vector<8x128xf32>
    %152 = math.exp %151 : vector<8x128xf32>
    %cst_78 = arith.constant 1.000000e+00 : f32
    %153 = vector.broadcast %cst_78 : f32 to vector<8x128xf32>
    %154 = arith.addf %153, %152 : vector<8x128xf32>
    %155 = arith.divf %153, %154 : vector<8x128xf32>
    %156 = vector.extract_strided_slice %149 {offsets = [0, 128], sizes = [8, 128], strides = [1, 1]} : vector<8x512xf32> to vector<8x128xf32>
    %157 = arith.negf %156 : vector<8x128xf32>
    %158 = math.exp %157 : vector<8x128xf32>
    %cst_79 = arith.constant 1.000000e+00 : f32
    %159 = vector.broadcast %cst_79 : f32 to vector<8x128xf32>
    %160 = arith.addf %159, %158 : vector<8x128xf32>
    %161 = arith.divf %159, %160 : vector<8x128xf32>
    %162 = vector.extract_strided_slice %149 {offsets = [0, 256], sizes = [8, 128], strides = [1, 1]} : vector<8x512xf32> to vector<8x128xf32>
    %163 = math.tanh %162 : vector<8x128xf32>
    %164 = vector.extract_strided_slice %149 {offsets = [0, 384], sizes = [8, 128], strides = [1, 1]} : vector<8x512xf32> to vector<8x128xf32>
    %165 = arith.negf %164 : vector<8x128xf32>
    %166 = math.exp %165 : vector<8x128xf32>
    %cst_80 = arith.constant 1.000000e+00 : f32
    %167 = vector.broadcast %cst_80 : f32 to vector<8x128xf32>
    %168 = arith.addf %167, %166 : vector<8x128xf32>
    %169 = arith.divf %167, %168 : vector<8x128xf32>
    %170 = arith.mulf %161, %141 : vector<8x128xf32>
    %171 = arith.mulf %155, %163 : vector<8x128xf32>
    %172 = arith.addf %170, %171 : vector<8x128xf32>
    %173 = math.tanh %172 : vector<8x128xf32>
    %174 = arith.mulf %169, %173 : vector<8x128xf32>
    %c1_81 = arith.constant 1 : index
    %c0_82 = arith.constant 0 : index
    %c0_83 = arith.constant 0 : index
    %175 = vector.load %arg8[%c1_81, %c0_82, %c0_83] : memref<2x8x128xf32, #tpu.memory_space<vmem>>, vector<1x8x128xf32>
    %176 = vector.shape_cast %175 : vector<1x8x128xf32> to vector<8x128xf32>
    %177 = vector.shape_cast %174 : vector<8x128xf32> to vector<1x8x128xf32>
    tpu.vector_store %arg8[%c1_81, %c0_82, %c0_83], %177 {strides = array<i32>} : memref<2x8x128xf32, #tpu.memory_space<vmem>>, vector<1x8x128xf32>,
    %c1_84 = arith.constant 1 : index
    %c0_85 = arith.constant 0 : index
    %c0_86 = arith.constant 0 : index
    %178 = vector.load %arg9[%c1_84, %c0_85, %c0_86] : memref<2x8x128xf32, #tpu.memory_space<vmem>>, vector<1x8x128xf32>
    %179 = vector.shape_cast %178 : vector<1x8x128xf32> to vector<8x128xf32>
    %180 = vector.shape_cast %172 : vector<8x128xf32> to vector<1x8x128xf32>
    tpu.vector_store %arg9[%c1_84, %c0_85, %c0_86], %180 {strides = array<i32>} : memref<2x8x128xf32, #tpu.memory_space<vmem>>, vector<1x8x128xf32>,
    %181 = arith.truncf %174 : vector<8x128xf32> to vector<8x128xbf16>
    %c1_87 = arith.constant 1 : index
    %c0_88 = arith.constant 0 : index
    %c0_89 = arith.constant 0 : index
    %182 = vector.load %arg7[%c1_87, %c0_88, %c0_89] : memref<4x8x128xbf16, #tpu.memory_space<vmem>>, vector<1x8x128xbf16>
    %183 = vector.shape_cast %182 : vector<1x8x128xbf16> to vector<8x128xbf16>
    %184 = vector.shape_cast %181 : vector<8x128xbf16> to vector<1x8x128xbf16>
    tpu.vector_store %arg7[%c1_87, %c0_88, %c0_89], %184 {strides = array<i32>} : memref<4x8x128xbf16, #tpu.memory_space<vmem>>, vector<1x8x128xbf16>,
    %c2 = arith.constant 2 : index
    %c0_90 = arith.constant 0 : index
    %c0_91 = arith.constant 0 : index
    %185 = vector.load %arg2[%c2, %c0_90, %c0_91] : memref<4x8x128xbf16, #tpu.memory_space<vmem>>, vector<1x8x128xbf16>
    %186 = vector.shape_cast %185 : vector<1x8x128xbf16> to vector<8x128xbf16>
    %c0_92 = arith.constant 0 : index
    %c0_93 = arith.constant 0 : index
    %c0_94 = arith.constant 0 : index
    %187 = vector.load %arg8[%c0_92, %c0_93, %c0_94] : memref<2x8x128xf32, #tpu.memory_space<vmem>>, vector<1x8x128xf32>
    %188 = vector.shape_cast %187 : vector<1x8x128xf32> to vector<8x128xf32>
    %c0_95 = arith.constant 0 : index
    %c0_96 = arith.constant 0 : index
    %c0_97 = arith.constant 0 : index
    %189 = vector.load %arg9[%c0_95, %c0_96, %c0_97] : memref<2x8x128xf32, #tpu.memory_space<vmem>>, vector<1x8x128xf32>
    %190 = vector.shape_cast %189 : vector<1x8x128xf32> to vector<8x128xf32>
    %191 = arith.truncf %188 : vector<8x128xf32> to vector<8x128xbf16>
    %192 = tpu.concatenate %186, %191 in 1 : vector<8x128xbf16>, vector<8x128xbf16> -> vector<8x256xbf16>
    %c0_98 = arith.constant 0 : index
    %c0_99 = arith.constant 0 : index
    %193 = vector.load %arg3[%c0_98, %c0_99] : memref<256x512xbf16, #tpu.memory_space<vmem>>, vector<256x512xbf16>
    %cst_100 = arith.constant dense<0.000000e+00> : vector<8x512xf32>
    %194 = tpu.matmul %192, %193, %cst_100 {dimension_numbers = #tpu.dot_dimension_numbers<[1], [0], [0], [1], [0, 0, 1, 1], [], []>} : vector<8x256xbf16>, vector<256x512xbf16>, vector<8x512xf32> -> vector<8x512xf32>
    %c0_101 = arith.constant 0 : index
    %c0_102 = arith.constant 0 : index
    %195 = vector.load %arg4[%c0_101, %c0_102] : memref<1x512xf32, #tpu.memory_space<vmem>>, vector<1x512xf32>
    %196 = vector.broadcast %195 : vector<1x512xf32> to vector<8x512xf32>
    %197 = arith.addf %194, %196 : vector<8x512xf32>
    %198 = vector.extract_strided_slice %197 {offsets = [0, 0], sizes = [8, 128], strides = [1, 1]} : vector<8x512xf32> to vector<8x128xf32>
    %199 = arith.negf %198 : vector<8x128xf32>
    %200 = math.exp %199 : vector<8x128xf32>
    %cst_103 = arith.constant 1.000000e+00 : f32
    %201 = vector.broadcast %cst_103 : f32 to vector<8x128xf32>
    %202 = arith.addf %201, %200 : vector<8x128xf32>
    %203 = arith.divf %201, %202 : vector<8x128xf32>
    %204 = vector.extract_strided_slice %197 {offsets = [0, 128], sizes = [8, 128], strides = [1, 1]} : vector<8x512xf32> to vector<8x128xf32>
    %205 = arith.negf %204 : vector<8x128xf32>
    %206 = math.exp %205 : vector<8x128xf32>
    %cst_104 = arith.constant 1.000000e+00 : f32
    %207 = vector.broadcast %cst_104 : f32 to vector<8x128xf32>
    %208 = arith.addf %207, %206 : vector<8x128xf32>
    %209 = arith.divf %207, %208 : vector<8x128xf32>
    %210 = vector.extract_strided_slice %197 {offsets = [0, 256], sizes = [8, 128], strides = [1, 1]} : vector<8x512xf32> to vector<8x128xf32>
    %211 = math.tanh %210 : vector<8x128xf32>
    %212 = vector.extract_strided_slice %197 {offsets = [0, 384], sizes = [8, 128], strides = [1, 1]} : vector<8x512xf32> to vector<8x128xf32>
    %213 = arith.negf %212 : vector<8x128xf32>
    %214 = math.exp %213 : vector<8x128xf32>
    %cst_105 = arith.constant 1.000000e+00 : f32
    %215 = vector.broadcast %cst_105 : f32 to vector<8x128xf32>
    %216 = arith.addf %215, %214 : vector<8x128xf32>
    %217 = arith.divf %215, %216 : vector<8x128xf32>
    %218 = arith.mulf %209, %190 : vector<8x128xf32>
    %219 = arith.mulf %203, %211 : vector<8x128xf32>
    %220 = arith.addf %218, %219 : vector<8x128xf32>
    %221 = math.tanh %220 : vector<8x128xf32>
    %222 = arith.mulf %217, %221 : vector<8x128xf32>
    %c0_106 = arith.constant 0 : index
    %c0_107 = arith.constant 0 : index
    %c0_108 = arith.constant 0 : index
    %223 = vector.load %arg8[%c0_106, %c0_107, %c0_108] : memref<2x8x128xf32, #tpu.memory_space<vmem>>, vector<1x8x128xf32>
    %224 = vector.shape_cast %223 : vector<1x8x128xf32> to vector<8x128xf32>
    %225 = vector.shape_cast %222 : vector<8x128xf32> to vector<1x8x128xf32>
    tpu.vector_store %arg8[%c0_106, %c0_107, %c0_108], %225 {strides = array<i32>} : memref<2x8x128xf32, #tpu.memory_space<vmem>>, vector<1x8x128xf32>,
    %c0_109 = arith.constant 0 : index
    %c0_110 = arith.constant 0 : index
    %c0_111 = arith.constant 0 : index
    %226 = vector.load %arg9[%c0_109, %c0_110, %c0_111] : memref<2x8x128xf32, #tpu.memory_space<vmem>>, vector<1x8x128xf32>
    %227 = vector.shape_cast %226 : vector<1x8x128xf32> to vector<8x128xf32>
    %228 = vector.shape_cast %220 : vector<8x128xf32> to vector<1x8x128xf32>
    tpu.vector_store %arg9[%c0_109, %c0_110, %c0_111], %228 {strides = array<i32>} : memref<2x8x128xf32, #tpu.memory_space<vmem>>, vector<1x8x128xf32>,
    %c1_112 = arith.constant 1 : index
    %c0_113 = arith.constant 0 : index
    %c0_114 = arith.constant 0 : index
    %229 = vector.load %arg8[%c1_112, %c0_113, %c0_114] : memref<2x8x128xf32, #tpu.memory_space<vmem>>, vector<1x8x128xf32>
    %230 = vector.shape_cast %229 : vector<1x8x128xf32> to vector<8x128xf32>
    %c1_115 = arith.constant 1 : index
    %c0_116 = arith.constant 0 : index
    %c0_117 = arith.constant 0 : index
    %231 = vector.load %arg9[%c1_115, %c0_116, %c0_117] : memref<2x8x128xf32, #tpu.memory_space<vmem>>, vector<1x8x128xf32>
    %232 = vector.shape_cast %231 : vector<1x8x128xf32> to vector<8x128xf32>
    %233 = arith.truncf %222 : vector<8x128xf32> to vector<8x128xbf16>
    %234 = arith.truncf %230 : vector<8x128xf32> to vector<8x128xbf16>
    %235 = tpu.concatenate %233, %234 in 1 : vector<8x128xbf16>, vector<8x128xbf16> -> vector<8x256xbf16>
    %c0_118 = arith.constant 0 : index
    %c0_119 = arith.constant 0 : index
    %236 = vector.load %arg5[%c0_118, %c0_119] : memref<256x512xbf16, #tpu.memory_space<vmem>>, vector<256x512xbf16>
    %cst_120 = arith.constant dense<0.000000e+00> : vector<8x512xf32>
    %237 = tpu.matmul %235, %236, %cst_120 {dimension_numbers = #tpu.dot_dimension_numbers<[1], [0], [0], [1], [0, 0, 1, 1], [], []>} : vector<8x256xbf16>, vector<256x512xbf16>, vector<8x512xf32> -> vector<8x512xf32>
    %c0_121 = arith.constant 0 : index
    %c0_122 = arith.constant 0 : index
    %238 = vector.load %arg6[%c0_121, %c0_122] : memref<1x512xf32, #tpu.memory_space<vmem>>, vector<1x512xf32>
    %239 = vector.broadcast %238 : vector<1x512xf32> to vector<8x512xf32>
    %240 = arith.addf %237, %239 : vector<8x512xf32>
    %241 = vector.extract_strided_slice %240 {offsets = [0, 0], sizes = [8, 128], strides = [1, 1]} : vector<8x512xf32> to vector<8x128xf32>
    %242 = arith.negf %241 : vector<8x128xf32>
    %243 = math.exp %242 : vector<8x128xf32>
    %cst_123 = arith.constant 1.000000e+00 : f32
    %244 = vector.broadcast %cst_123 : f32 to vector<8x128xf32>
    %245 = arith.addf %244, %243 : vector<8x128xf32>
    %246 = arith.divf %244, %245 : vector<8x128xf32>
    %247 = vector.extract_strided_slice %240 {offsets = [0, 128], sizes = [8, 128], strides = [1, 1]} : vector<8x512xf32> to vector<8x128xf32>
    %248 = arith.negf %247 : vector<8x128xf32>
    %249 = math.exp %248 : vector<8x128xf32>
    %cst_124 = arith.constant 1.000000e+00 : f32
    %250 = vector.broadcast %cst_124 : f32 to vector<8x128xf32>
    %251 = arith.addf %250, %249 : vector<8x128xf32>
    %252 = arith.divf %250, %251 : vector<8x128xf32>
    %253 = vector.extract_strided_slice %240 {offsets = [0, 256], sizes = [8, 128], strides = [1, 1]} : vector<8x512xf32> to vector<8x128xf32>
    %254 = math.tanh %253 : vector<8x128xf32>
    %255 = vector.extract_strided_slice %240 {offsets = [0, 384], sizes = [8, 128], strides = [1, 1]} : vector<8x512xf32> to vector<8x128xf32>
    %256 = arith.negf %255 : vector<8x128xf32>
    %257 = math.exp %256 : vector<8x128xf32>
    %cst_125 = arith.constant 1.000000e+00 : f32
    %258 = vector.broadcast %cst_125 : f32 to vector<8x128xf32>
    %259 = arith.addf %258, %257 : vector<8x128xf32>
    %260 = arith.divf %258, %259 : vector<8x128xf32>
    %261 = arith.mulf %252, %232 : vector<8x128xf32>
    %262 = arith.mulf %246, %254 : vector<8x128xf32>
    %263 = arith.addf %261, %262 : vector<8x128xf32>
    %264 = math.tanh %263 : vector<8x128xf32>
    %265 = arith.mulf %260, %264 : vector<8x128xf32>
    %c1_126 = arith.constant 1 : index
    %c0_127 = arith.constant 0 : index
    %c0_128 = arith.constant 0 : index
    %266 = vector.load %arg8[%c1_126, %c0_127, %c0_128] : memref<2x8x128xf32, #tpu.memory_space<vmem>>, vector<1x8x128xf32>
    %267 = vector.shape_cast %266 : vector<1x8x128xf32> to vector<8x128xf32>
    %268 = vector.shape_cast %265 : vector<8x128xf32> to vector<1x8x128xf32>
    tpu.vector_store %arg8[%c1_126, %c0_127, %c0_128], %268 {strides = array<i32>} : memref<2x8x128xf32, #tpu.memory_space<vmem>>, vector<1x8x128xf32>,
    %c1_129 = arith.constant 1 : index
    %c0_130 = arith.constant 0 : index
    %c0_131 = arith.constant 0 : index
    %269 = vector.load %arg9[%c1_129, %c0_130, %c0_131] : memref<2x8x128xf32, #tpu.memory_space<vmem>>, vector<1x8x128xf32>
    %270 = vector.shape_cast %269 : vector<1x8x128xf32> to vector<8x128xf32>
    %271 = vector.shape_cast %263 : vector<8x128xf32> to vector<1x8x128xf32>
    tpu.vector_store %arg9[%c1_129, %c0_130, %c0_131], %271 {strides = array<i32>} : memref<2x8x128xf32, #tpu.memory_space<vmem>>, vector<1x8x128xf32>,
    %272 = arith.truncf %265 : vector<8x128xf32> to vector<8x128xbf16>
    %c2_132 = arith.constant 2 : index
    %c0_133 = arith.constant 0 : index
    %c0_134 = arith.constant 0 : index
    %273 = vector.load %arg7[%c2_132, %c0_133, %c0_134] : memref<4x8x128xbf16, #tpu.memory_space<vmem>>, vector<1x8x128xbf16>
    %274 = vector.shape_cast %273 : vector<1x8x128xbf16> to vector<8x128xbf16>
    %275 = vector.shape_cast %272 : vector<8x128xbf16> to vector<1x8x128xbf16>
    tpu.vector_store %arg7[%c2_132, %c0_133, %c0_134], %275 {strides = array<i32>} : memref<4x8x128xbf16, #tpu.memory_space<vmem>>, vector<1x8x128xbf16>,
    %c3 = arith.constant 3 : index
    %c0_135 = arith.constant 0 : index
    %c0_136 = arith.constant 0 : index
    %276 = vector.load %arg2[%c3, %c0_135, %c0_136] : memref<4x8x128xbf16, #tpu.memory_space<vmem>>, vector<1x8x128xbf16>
    %277 = vector.shape_cast %276 : vector<1x8x128xbf16> to vector<8x128xbf16>
    %c0_137 = arith.constant 0 : index
    %c0_138 = arith.constant 0 : index
    %c0_139 = arith.constant 0 : index
    %278 = vector.load %arg8[%c0_137, %c0_138, %c0_139] : memref<2x8x128xf32, #tpu.memory_space<vmem>>, vector<1x8x128xf32>
    %279 = vector.shape_cast %278 : vector<1x8x128xf32> to vector<8x128xf32>
    %c0_140 = arith.constant 0 : index
    %c0_141 = arith.constant 0 : index
    %c0_142 = arith.constant 0 : index
    %280 = vector.load %arg9[%c0_140, %c0_141, %c0_142] : memref<2x8x128xf32, #tpu.memory_space<vmem>>, vector<1x8x128xf32>
    %281 = vector.shape_cast %280 : vector<1x8x128xf32> to vector<8x128xf32>
    %282 = arith.truncf %279 : vector<8x128xf32> to vector<8x128xbf16>
    %283 = tpu.concatenate %277, %282 in 1 : vector<8x128xbf16>, vector<8x128xbf16> -> vector<8x256xbf16>
    %c0_143 = arith.constant 0 : index
    %c0_144 = arith.constant 0 : index
    %284 = vector.load %arg3[%c0_143, %c0_144] : memref<256x512xbf16, #tpu.memory_space<vmem>>, vector<256x512xbf16>
    %cst_145 = arith.constant dense<0.000000e+00> : vector<8x512xf32>
    %285 = tpu.matmul %283, %284, %cst_145 {dimension_numbers = #tpu.dot_dimension_numbers<[1], [0], [0], [1], [0, 0, 1, 1], [], []>} : vector<8x256xbf16>, vector<256x512xbf16>, vector<8x512xf32> -> vector<8x512xf32>
    %c0_146 = arith.constant 0 : index
    %c0_147 = arith.constant 0 : index
    %286 = vector.load %arg4[%c0_146, %c0_147] : memref<1x512xf32, #tpu.memory_space<vmem>>, vector<1x512xf32>
    %287 = vector.broadcast %286 : vector<1x512xf32> to vector<8x512xf32>
    %288 = arith.addf %285, %287 : vector<8x512xf32>
    %289 = vector.extract_strided_slice %288 {offsets = [0, 0], sizes = [8, 128], strides = [1, 1]} : vector<8x512xf32> to vector<8x128xf32>
    %290 = arith.negf %289 : vector<8x128xf32>
    %291 = math.exp %290 : vector<8x128xf32>
    %cst_148 = arith.constant 1.000000e+00 : f32
    %292 = vector.broadcast %cst_148 : f32 to vector<8x128xf32>
    %293 = arith.addf %292, %291 : vector<8x128xf32>
    %294 = arith.divf %292, %293 : vector<8x128xf32>
    %295 = vector.extract_strided_slice %288 {offsets = [0, 128], sizes = [8, 128], strides = [1, 1]} : vector<8x512xf32> to vector<8x128xf32>
    %296 = arith.negf %295 : vector<8x128xf32>
    %297 = math.exp %296 : vector<8x128xf32>
    %cst_149 = arith.constant 1.000000e+00 : f32
    %298 = vector.broadcast %cst_149 : f32 to vector<8x128xf32>
    %299 = arith.addf %298, %297 : vector<8x128xf32>
    %300 = arith.divf %298, %299 : vector<8x128xf32>
    %301 = vector.extract_strided_slice %288 {offsets = [0, 256], sizes = [8, 128], strides = [1, 1]} : vector<8x512xf32> to vector<8x128xf32>
    %302 = math.tanh %301 : vector<8x128xf32>
    %303 = vector.extract_strided_slice %288 {offsets = [0, 384], sizes = [8, 128], strides = [1, 1]} : vector<8x512xf32> to vector<8x128xf32>
    %304 = arith.negf %303 : vector<8x128xf32>
    %305 = math.exp %304 : vector<8x128xf32>
    %cst_150 = arith.constant 1.000000e+00 : f32
    %306 = vector.broadcast %cst_150 : f32 to vector<8x128xf32>
    %307 = arith.addf %306, %305 : vector<8x128xf32>
    %308 = arith.divf %306, %307 : vector<8x128xf32>
    %309 = arith.mulf %300, %281 : vector<8x128xf32>
    %310 = arith.mulf %294, %302 : vector<8x128xf32>
    %311 = arith.addf %309, %310 : vector<8x128xf32>
    %312 = math.tanh %311 : vector<8x128xf32>
    %313 = arith.mulf %308, %312 : vector<8x128xf32>
    %c0_151 = arith.constant 0 : index
    %c0_152 = arith.constant 0 : index
    %c0_153 = arith.constant 0 : index
    %314 = vector.load %arg8[%c0_151, %c0_152, %c0_153] : memref<2x8x128xf32, #tpu.memory_space<vmem>>, vector<1x8x128xf32>
    %315 = vector.shape_cast %314 : vector<1x8x128xf32> to vector<8x128xf32>
    %316 = vector.shape_cast %313 : vector<8x128xf32> to vector<1x8x128xf32>
    tpu.vector_store %arg8[%c0_151, %c0_152, %c0_153], %316 {strides = array<i32>} : memref<2x8x128xf32, #tpu.memory_space<vmem>>, vector<1x8x128xf32>,
    %c0_154 = arith.constant 0 : index
    %c0_155 = arith.constant 0 : index
    %c0_156 = arith.constant 0 : index
    %317 = vector.load %arg9[%c0_154, %c0_155, %c0_156] : memref<2x8x128xf32, #tpu.memory_space<vmem>>, vector<1x8x128xf32>
    %318 = vector.shape_cast %317 : vector<1x8x128xf32> to vector<8x128xf32>
    %319 = vector.shape_cast %311 : vector<8x128xf32> to vector<1x8x128xf32>
    tpu.vector_store %arg9[%c0_154, %c0_155, %c0_156], %319 {strides = array<i32>} : memref<2x8x128xf32, #tpu.memory_space<vmem>>, vector<1x8x128xf32>,
    %c1_157 = arith.constant 1 : index
    %c0_158 = arith.constant 0 : index
    %c0_159 = arith.constant 0 : index
    %320 = vector.load %arg8[%c1_157, %c0_158, %c0_159] : memref<2x8x128xf32, #tpu.memory_space<vmem>>, vector<1x8x128xf32>
    %321 = vector.shape_cast %320 : vector<1x8x128xf32> to vector<8x128xf32>
    %c1_160 = arith.constant 1 : index
    %c0_161 = arith.constant 0 : index
    %c0_162 = arith.constant 0 : index
    %322 = vector.load %arg9[%c1_160, %c0_161, %c0_162] : memref<2x8x128xf32, #tpu.memory_space<vmem>>, vector<1x8x128xf32>
    %323 = vector.shape_cast %322 : vector<1x8x128xf32> to vector<8x128xf32>
    %324 = arith.truncf %313 : vector<8x128xf32> to vector<8x128xbf16>
    %325 = arith.truncf %321 : vector<8x128xf32> to vector<8x128xbf16>
    %326 = tpu.concatenate %324, %325 in 1 : vector<8x128xbf16>, vector<8x128xbf16> -> vector<8x256xbf16>
    %c0_163 = arith.constant 0 : index
    %c0_164 = arith.constant 0 : index
    %327 = vector.load %arg5[%c0_163, %c0_164] : memref<256x512xbf16, #tpu.memory_space<vmem>>, vector<256x512xbf16>
    %cst_165 = arith.constant dense<0.000000e+00> : vector<8x512xf32>
    %328 = tpu.matmul %326, %327, %cst_165 {dimension_numbers = #tpu.dot_dimension_numbers<[1], [0], [0], [1], [0, 0, 1, 1], [], []>} : vector<8x256xbf16>, vector<256x512xbf16>, vector<8x512xf32> -> vector<8x512xf32>
    %c0_166 = arith.constant 0 : index
    %c0_167 = arith.constant 0 : index
    %329 = vector.load %arg6[%c0_166, %c0_167] : memref<1x512xf32, #tpu.memory_space<vmem>>, vector<1x512xf32>
    %330 = vector.broadcast %329 : vector<1x512xf32> to vector<8x512xf32>
    %331 = arith.addf %328, %330 : vector<8x512xf32>
    %332 = vector.extract_strided_slice %331 {offsets = [0, 0], sizes = [8, 128], strides = [1, 1]} : vector<8x512xf32> to vector<8x128xf32>
    %333 = arith.negf %332 : vector<8x128xf32>
    %334 = math.exp %333 : vector<8x128xf32>
    %cst_168 = arith.constant 1.000000e+00 : f32
    %335 = vector.broadcast %cst_168 : f32 to vector<8x128xf32>
    %336 = arith.addf %335, %334 : vector<8x128xf32>
    %337 = arith.divf %335, %336 : vector<8x128xf32>
    %338 = vector.extract_strided_slice %331 {offsets = [0, 128], sizes = [8, 128], strides = [1, 1]} : vector<8x512xf32> to vector<8x128xf32>
    %339 = arith.negf %338 : vector<8x128xf32>
    %340 = math.exp %339 : vector<8x128xf32>
    %cst_169 = arith.constant 1.000000e+00 : f32
    %341 = vector.broadcast %cst_169 : f32 to vector<8x128xf32>
    %342 = arith.addf %341, %340 : vector<8x128xf32>
    %343 = arith.divf %341, %342 : vector<8x128xf32>
    %344 = vector.extract_strided_slice %331 {offsets = [0, 256], sizes = [8, 128], strides = [1, 1]} : vector<8x512xf32> to vector<8x128xf32>
    %345 = math.tanh %344 : vector<8x128xf32>
    %346 = vector.extract_strided_slice %331 {offsets = [0, 384], sizes = [8, 128], strides = [1, 1]} : vector<8x512xf32> to vector<8x128xf32>
    %347 = arith.negf %346 : vector<8x128xf32>
    %348 = math.exp %347 : vector<8x128xf32>
    %cst_170 = arith.constant 1.000000e+00 : f32
    %349 = vector.broadcast %cst_170 : f32 to vector<8x128xf32>
    %350 = arith.addf %349, %348 : vector<8x128xf32>
    %351 = arith.divf %349, %350 : vector<8x128xf32>
    %352 = arith.mulf %343, %323 : vector<8x128xf32>
    %353 = arith.mulf %337, %345 : vector<8x128xf32>
    %354 = arith.addf %352, %353 : vector<8x128xf32>
    %355 = math.tanh %354 : vector<8x128xf32>
    %356 = arith.mulf %351, %355 : vector<8x128xf32>
    %c1_171 = arith.constant 1 : index
    %c0_172 = arith.constant 0 : index
    %c0_173 = arith.constant 0 : index
    %357 = vector.load %arg8[%c1_171, %c0_172, %c0_173] : memref<2x8x128xf32, #tpu.memory_space<vmem>>, vector<1x8x128xf32>
    %358 = vector.shape_cast %357 : vector<1x8x128xf32> to vector<8x128xf32>
    %359 = vector.shape_cast %356 : vector<8x128xf32> to vector<1x8x128xf32>
    tpu.vector_store %arg8[%c1_171, %c0_172, %c0_173], %359 {strides = array<i32>} : memref<2x8x128xf32, #tpu.memory_space<vmem>>, vector<1x8x128xf32>,
    %c1_174 = arith.constant 1 : index
    %c0_175 = arith.constant 0 : index
    %c0_176 = arith.constant 0 : index
    %360 = vector.load %arg9[%c1_174, %c0_175, %c0_176] : memref<2x8x128xf32, #tpu.memory_space<vmem>>, vector<1x8x128xf32>
    %361 = vector.shape_cast %360 : vector<1x8x128xf32> to vector<8x128xf32>
    %362 = vector.shape_cast %354 : vector<8x128xf32> to vector<1x8x128xf32>
    tpu.vector_store %arg9[%c1_174, %c0_175, %c0_176], %362 {strides = array<i32>} : memref<2x8x128xf32, #tpu.memory_space<vmem>>, vector<1x8x128xf32>,
    %363 = arith.truncf %356 : vector<8x128xf32> to vector<8x128xbf16>
    %c3_177 = arith.constant 3 : index
    %c0_178 = arith.constant 0 : index
    %c0_179 = arith.constant 0 : index
    %364 = vector.load %arg7[%c3_177, %c0_178, %c0_179] : memref<4x8x128xbf16, #tpu.memory_space<vmem>>, vector<1x8x128xbf16>
    %365 = vector.shape_cast %364 : vector<1x8x128xbf16> to vector<8x128xbf16>
    %366 = vector.shape_cast %363 : vector<8x128xbf16> to vector<1x8x128xbf16>
    tpu.vector_store %arg7[%c3_177, %c0_178, %c0_179], %366 {strides = array<i32>} : memref<4x8x128xbf16, #tpu.memory_space<vmem>>, vector<1x8x128xbf16>,
    return
  }
  func.func @transform_0(%arg0: i32, %arg1: i32) -> (i32, i32, i32) {
    %c0_i32 = arith.constant 0 : i32
    %c0_i32_0 = arith.constant 0 : i32
    return %arg1, %arg0, %c0_i32 : i32, i32, i32
  }
  func.func @transform_1(%arg0: i32, %arg1: i32) -> (i32, i32) {
    %c0_i32 = arith.constant 0 : i32
    %c0_i32_0 = arith.constant 0 : i32
    %c0_i32_1 = arith.constant 0 : i32
    return %c0_i32, %c0_i32_0 : i32, i32
  }
  func.func @transform_2(%arg0: i32, %arg1: i32) -> (i32, i32) {
    %c0_i32 = arith.constant 0 : i32
    %c0_i32_0 = arith.constant 0 : i32
    %c0_i32_1 = arith.constant 0 : i32
    return %c0_i32, %c0_i32_0 : i32, i32
  }
  func.func @transform_3(%arg0: i32, %arg1: i32) -> (i32, i32) {
    %c0_i32 = arith.constant 0 : i32
    %c0_i32_0 = arith.constant 0 : i32
    %c0_i32_1 = arith.constant 0 : i32
    return %c0_i32, %c0_i32_0 : i32, i32
  }
  func.func @transform_4(%arg0: i32, %arg1: i32) -> (i32, i32) {
    %c0_i32 = arith.constant 0 : i32
    %c0_i32_0 = arith.constant 0 : i32
    %c0_i32_1 = arith.constant 0 : i32
    return %c0_i32, %c0_i32_0 : i32, i32
  }
  func.func @transform_5(%arg0: i32, %arg1: i32) -> (i32, i32, i32) {
    %c0_i32 = arith.constant 0 : i32
    %c0_i32_0 = arith.constant 0 : i32
    return %arg1, %arg0, %c0_i32 : i32, i32, i32
  }
}

</mosaic_0001>

<llo_original>
// kernel: tpu_custom_call.1
$region0: #{tpu_custom_call.1}
  #allocation0 [shape = 'u32[]', space=smem, size = 0x4, offset = 0x4, fixed_abs, tag = 'smem constant byte address 0x4 - core index']
  #allocation1 [shape = 'u32[72,128]{1,0:T(1,128)}', space=vmem, size = 0x9000, scoped, tag = 'internal scratch']
  #allocation2 [shape = 'f32[2,8,128]{2,1,0:T(8,128)}', space=vmem, size = 0x2000, scoped, tag = 'scratch operand']
  #allocation3 [shape = 'f32[2,8,128]{2,1,0:T(8,128)}', space=vmem, size = 0x2000, scoped, tag = 'scratch operand']
  %s0 = inlined_call_operand.hbm [shape: bf16[12,8,128], index: 0, kind: input, shape index: {}]
  %s1 = inlined_call_operand.hbm [shape: bf16[256,512], index: 1, kind: input, shape index: {}]
  %s2 = inlined_call_operand.hbm [shape: f32[1,512], index: 2, kind: input, shape index: {}]
  %s3 = inlined_call_operand.hbm [shape: bf16[256,512], index: 3, kind: input, shape index: {}]
  %s4 = inlined_call_operand.hbm [shape: f32[1,512], index: 4, kind: input, shape index: {}]
  %s5 = inlined_call_operand.hbm [shape: bf16[12,8,128], index: 5, kind: output, shape index: {}]
  %s6 = sld [smem:[#allocation0]]
  $region77: #{tpu_custom_call.1} parent=0
    _
  %s8 = ssub.s32 1, %s6
  %s9 = scalar_select 0, %s8, %s6
  $region1: #{tpu_custom_call.1} parent=0
    #allocation4 [shape = 'u8[16384]{0}', space=vmem, size = 0x4000, scoped, tag = 'input window, operand 0']
    #allocation5 [shape = 's32[2]{0}', space=sflag, size = 0x8, scoped, tag = 'scoped memory for tpu_custom_call.1']
    #allocation6 [shape = 's32[2]{0}', space=sflag, size = 0x8, scoped, tag = 'scoped memory for tpu_custom_call.1']
    #allocation7 [shape = 'u8[262144]{0}', space=vmem, size = 0x40000, scoped, tag = 'input window, operand 1, single buffered']
    #allocation8 [shape = 's32[1]{0}', space=sflag, size = 0x4, scoped, tag = 'scoped memory for tpu_custom_call.1']
    #allocation9 [shape = 'u8[2048]{0}', space=vmem, size = 0x800, scoped, tag = 'input window, operand 2, single buffered']
    #allocation10 [shape = 'u8[262144]{0}', space=vmem, size = 0x40000, scoped, tag = 'input window, operand 3, single buffered']
    #allocation11 [shape = 's32[1]{0}', space=sflag, size = 0x4, scoped, tag = 'scoped memory for tpu_custom_call.1']
    #allocation12 [shape = 'u8[2048]{0}', space=vmem, size = 0x800, scoped, tag = 'input window, operand 4, single buffered']
    #allocation13 [shape = 'u8[16384]{0}', space=vmem, size = 0x4000, scoped, tag = 'output window, operand 0']
    %10 = vsyncpa [#allocation5], 0
    %s11 = scalar_lea.sflag [#allocation5], 1
    %12 = vsyncpa %s11, 0
    %13 = vsyncpa [#allocation8], 0
    %14 = vsyncpa [#allocation11], 0
    %15 = vsyncpa [#allocation6], 0
    %s16 = scalar_lea.sflag [#allocation6], 1
    %17 = vsyncpa %s16, 0
    loop: start=0, step=1, limit=5
    $region2: #{tpu_custom_call.1} parent=1 // loop_pre_header
      _
    $region3: #{tpu_custom_call.1} parent=1 // loop_header
      %s19 = sphi 0, %s23
      %p20 = scmp.ge.s32.totalorder %s19, 5
      %s26 = sphi 0, %s38
      %s27 = sphi 0, %s34
      %s28 = sphi 0, %s26
      %s29 = sphi 0, %s27
      %s30 = sphi 0, %s28
      %s31 = sphi 0, %s29
      %s43 = sphi 0, %s45
      %s46 = sphi 0, %s43
      %s47 = sphi 0, %s46
      %s63 = sphi 0, %s47
      %s67 = sphi 0, %s67
      %s69 = sphi 0, %s67
      %s70 = sphi 0, %s69
      %s84 = sphi 0, %s70
      %s88 = sphi 0, %s88
      %s90 = sphi 0, %s88
      %s91 = sphi 0, %s90
      %s105 = sphi 0, %s91
      %s109 = sphi 0, %s109
      %s111 = sphi 0, %s109
      %s112 = sphi 0, %s111
      %s126 = sphi 0, %s112
      %s130 = sphi 0, %s130
      %s132 = sphi 0, %s130
      %s133 = sphi 0, %s132
      %s147 = sphi 0, %s133
      %s155 = sphi 0, %s157
      %s158 = sphi 0, %s155
      %s159 = sphi 0, %s158
      %s175 = sphi 0, %s159
    $region4: #{tpu_custom_call.1} parent=1 // loop_header_branch
      %22 = sbr.rel (%p20) target = $region8
    $region5: #{tpu_custom_call.1} parent=1 // loop_body
      %s24 = ssub.s32 %s19, 1
      %s25 = ssub.s32 %s19, 2
      %s32 = sadd.s32 1, %s27
      %p33 = scmp.ge.s32.totalorder %s32, 3
      %s34 = scalar_select %p33, 0, %s32
      %s35 = sadd.s32 1, %s26
      %s36 = scalar_select %p33, %s35, %s26
      %p37 = scmp.ge.s32.totalorder %s36, 1
      %s38 = scalar_select %p37, 0, %s36
      %s39 = ssub.s32 %s27, %s34
      %s40 = ssub.s32 %s26, %s38
      %s41 = sor.u32 %s39, %s40
      %p42 = scmp.eq.s32.totalorder %s41, 0
      %s44 = sadd.s32 %s43, 1
      %s45 = scalar_select %p42, %s43, %s44
      %p48 = pneg %p42
      %p49 = scmp.eq.s32.totalorder %s19, 2
      %p50 = por %p48, %p49
      %p51 = scmp.ne.s32.totalorder %s43, %s46
      %p52 = scmp.eq.s32.totalorder %s19, 0
      %p53 = por %p51, %p52
      %p54 = scmp.ne.s32.totalorder %s43, %s46
      %p55 = scmp.eq.s32.totalorder %s24, 2
      %p56 = por %p54, %p55
      %p57 = scmp.ne.s32.totalorder %s46, %s47
      %p58 = scmp.eq.s32.totalorder %s24, 0
      %p59 = por %p57, %p58
      %p60 = scmp.ne.s32.totalorder %s46, %s47
      %p61 = scmp.eq.s32.totalorder %s25, 2
      %p62 = por %p60, %p61
      %p64 = scmp.ne.s32.totalorder %s47, %s63
      %p65 = scmp.eq.s32.totalorder %s25, 0
      %p66 = por %p64, %p65
      %s68 = sadd.s32 %s67, 1
      %p71 = scmp.eq.s32.totalorder %s19, 2
      %p72 = scmp.ne.s32.totalorder %s67, %s69
      %p73 = scmp.eq.s32.totalorder %s19, 0
      %p74 = por %p72, %p73
      %p75 = scmp.ne.s32.totalorder %s67, %s69
      %p76 = scmp.eq.s32.totalorder %s24, 2
      %p77 = por %p75, %p76
      %p78 = scmp.ne.s32.totalorder %s69, %s70
      %p79 = scmp.eq.s32.totalorder %s24, 0
      %p80 = por %p78, %p79
      %p81 = scmp.ne.s32.totalorder %s69, %s70
      %p82 = scmp.eq.s32.totalorder %s25, 2
      %p83 = por %p81, %p82
      %p85 = scmp.ne.s32.totalorder %s70, %s84
      %p86 = scmp.eq.s32.totalorder %s25, 0
      %p87 = por %p85, %p86
      %s89 = sadd.s32 %s88, 1
      %p92 = scmp.eq.s32.totalorder %s19, 2
      %p93 = scmp.ne.s32.totalorder %s88, %s90
      %p94 = scmp.eq.s32.totalorder %s19, 0
      %p95 = por %p93, %p94
      %p96 = scmp.ne.s32.totalorder %s88, %s90
      %p97 = scmp.eq.s32.totalorder %s24, 2
      %p98 = por %p96, %p97
      %p99 = scmp.ne.s32.totalorder %s90, %s91
      %p100 = scmp.eq.s32.totalorder %s24, 0
      %p101 = por %p99, %p100
      %p102 = scmp.ne.s32.totalorder %s90, %s91
      %p103 = scmp.eq.s32.totalorder %s25, 2
      %p104 = por %p102, %p103
      %p106 = scmp.ne.s32.totalorder %s91, %s105
      %p107 = scmp.eq.s32.totalorder %s25, 0
      %p108 = por %p106, %p107
      %s110 = sadd.s32 %s109, 1
      %p113 = scmp.eq.s32.totalorder %s19, 2
      %p114 = scmp.ne.s32.totalorder %s109, %s111
      %p115 = scmp.eq.s32.totalorder %s19, 0
      %p116 = por %p114, %p115
      %p117 = scmp.ne.s32.totalorder %s109, %s111
      %p118 = scmp.eq.s32.totalorder %s24, 2
      %p119 = por %p117, %p118
      %p120 = scmp.ne.s32.totalorder %s111, %s112
      %p121 = scmp.eq.s32.totalorder %s24, 0
      %p122 = por %p120, %p121
      %p123 = scmp.ne.s32.totalorder %s111, %s112
      %p124 = scmp.eq.s32.totalorder %s25, 2
      %p125 = por %p123, %p124
      %p127 = scmp.ne.s32.totalorder %s112, %s126
      %p128 = scmp.eq.s32.totalorder %s25, 0
      %p129 = por %p127, %p128
      %s131 = sadd.s32 %s130, 1
      %p134 = scmp.eq.s32.totalorder %s19, 2
      %p135 = scmp.ne.s32.totalorder %s130, %s132
      %p136 = scmp.eq.s32.totalorder %s19, 0
      %p137 = por %p135, %p136
      %p138 = scmp.ne.s32.totalorder %s130, %s132
      %p139 = scmp.eq.s32.totalorder %s24, 2
      %p140 = por %p138, %p139
      %p141 = scmp.ne.s32.totalorder %s132, %s133
      %p142 = scmp.eq.s32.totalorder %s24, 0
      %p143 = por %p141, %p142
      %p144 = scmp.ne.s32.totalorder %s132, %s133
      %p145 = scmp.eq.s32.totalorder %s25, 2
      %p146 = por %p144, %p145
      %p148 = scmp.ne.s32.totalorder %s133, %s147
      %p149 = scmp.eq.s32.totalorder %s25, 0
      %p150 = por %p148, %p149
      %s151 = ssub.s32 %s27, %s34
      %s152 = ssub.s32 %s26, %s38
      %s153 = sor.u32 %s151, %s152
      %p154 = scmp.eq.s32.totalorder %s153, 0
      %s156 = sadd.s32 %s155, 1
      %s157 = scalar_select %p154, %s155, %s156
      %p160 = pneg %p154
      %p161 = scmp.eq.s32.totalorder %s19, 2
      %p162 = por %p160, %p161
      %p163 = scmp.ne.s32.totalorder %s155, %s158
      %p164 = scmp.eq.s32.totalorder %s19, 0
      %p165 = por %p163, %p164
      %p166 = scmp.ne.s32.totalorder %s155, %s158
      %p167 = scmp.eq.s32.totalorder %s24, 2
      %p168 = por %p166, %p167
      %p169 = scmp.ne.s32.totalorder %s158, %s159
      %p170 = scmp.eq.s32.totalorder %s24, 0
      %p171 = por %p169, %p170
      %p172 = scmp.ne.s32.totalorder %s158, %s159
      %p173 = scmp.eq.s32.totalorder %s25, 2
      %p174 = por %p172, %p173
      %p176 = scmp.ne.s32.totalorder %s159, %s175
      %p177 = scmp.eq.s32.totalorder %s25, 0
      %p178 = por %p176, %p177
      %p179 = scmp.le.s32.totalorder 1, %s19
      %p180 = scmp.lt.s32.totalorder %s19, 4
      %p181 = pnand %p179, %p180
      %p182 = pneg %p181
      // Predicated region
      $region9: #{tpu_custom_call.1} parent=5 // pred_check
        _
      $region10: #{tpu_custom_call.1} parent=5 // pred_check_branch
        %184 = sbr.rel (%p181) target = $region12
      $region11: #{tpu_custom_call.1} parent=5 // pred_region
        %s185 = ssub.s32 %s19, 1
        // Predicated region
        $region13: #{tpu_custom_call.1} parent=11 // pred_check
          %p186 = pneg %p80
        $region14: #{tpu_custom_call.1} parent=11 // pred_check_branch
          %188 = sbr.rel (%p186) target = $region16
        $region15: #{tpu_custom_call.1} parent=11 // pred_region
          %190 = vsyncadd [#allocation8], 0
          %s191 = sshll.u32 %s1, 4
          %s192 = int_to_ptr.hbm [resolvable:$true] %s191
          %s193 = sshll.u32 [#allocation7], 4
          %s194 = int_to_ptr.vmem [resolvable:$true] %s193
          %199 = dma.hbm_to_vmem [thread:$0]  %s192, 8192, %s194, [#allocation8], 256, 256, 16
        $region16: #{tpu_custom_call.1} parent=11 // pred_fallthru
          _
        // Predicated region
        $region17: #{tpu_custom_call.1} parent=11 // pred_check
          %p200 = pneg %p101
        $region18: #{tpu_custom_call.1} parent=11 // pred_check_branch
          %202 = sbr.rel (%p200) target = $region20
        $region19: #{tpu_custom_call.1} parent=11 // pred_region
          %204 = vsyncadd [#allocation8], 0
          %s206 = sshll.u32 %s2, 4
          %s207 = int_to_ptr.hbm [resolvable:$true] %s206
          %s208 = sshll.u32 [#allocation9], 4
          %s209 = int_to_ptr.vmem [resolvable:$true] %s208
          %211 = dma.hbm_to_vmem [thread:$0]  %s207, 64, %s209, [#allocation8]
        $region20: #{tpu_custom_call.1} parent=11 // pred_fallthru
          _
        // Predicated region
        $region21: #{tpu_custom_call.1} parent=11 // pred_check
          %p212 = pneg %p122
        $region22: #{tpu_custom_call.1} parent=11 // pred_check_branch
          %214 = sbr.rel (%p212) target = $region24
        $region23: #{tpu_custom_call.1} parent=11 // pred_region
          %216 = vsyncadd [#allocation11], 0
          %s217 = sshll.u32 %s3, 4
          %s218 = int_to_ptr.hbm [resolvable:$true] %s217
          %s219 = sshll.u32 [#allocation10], 4
          %s220 = int_to_ptr.vmem [resolvable:$true] %s219
          %225 = dma.hbm_to_vmem [thread:$0]  %s218, 8192, %s220, [#allocation11], 256, 256, 16
        $region24: #{tpu_custom_call.1} parent=11 // pred_fallthru
          _
        // Predicated region
        $region25: #{tpu_custom_call.1} parent=11 // pred_check
          %p226 = pneg %p143
        $region26: #{tpu_custom_call.1} parent=11 // pred_check_branch
          %228 = sbr.rel (%p226) target = $region28
        $region27: #{tpu_custom_call.1} parent=11 // pred_region
          %230 = vsyncadd [#allocation11], 0
          %s232 = sshll.u32 %s4, 4
          %s233 = int_to_ptr.hbm [resolvable:$true] %s232
          %s234 = sshll.u32 [#allocation12], 4
          %s235 = int_to_ptr.vmem [resolvable:$true] %s234
          %237 = dma.hbm_to_vmem [thread:$0]  %s233, 64, %s235, [#allocation11]
        $region28: #{tpu_custom_call.1} parent=11 // pred_fallthru
          _
      $region12: #{tpu_custom_call.1} parent=5 // pred_fallthru
        _
      %p238 = scmp.lt.s32.totalorder %s19, 3
      // Predicated region
      $region29: #{tpu_custom_call.1} parent=5 // pred_check
        %p239 = pneg %p238
      $region30: #{tpu_custom_call.1} parent=5 // pred_check_branch
        %241 = sbr.rel (%p239) target = $region32
      $region31: #{tpu_custom_call.1} parent=5 // pred_region
        // Predicated region
        $region33: #{tpu_custom_call.1} parent=31 // pred_check
          %p242 = pneg %p53
        $region34: #{tpu_custom_call.1} parent=31 // pred_check_branch
          %244 = sbr.rel (%p242) target = $region36
        $region35: #{tpu_custom_call.1} parent=31 // pred_region
          %s245 = sand.u32 %s43, 1
          %s246 = scalar_lea.sflag [#allocation5], %s245
          %s247 = sand.u32 %s43, 1
          %s248 = smul.addr %s247, 16
          %s249 = scalar_lea.vmem [#allocation4], %s248
          %s250 = smul.u32 4, %s27
          %252 = vsyncadd %s246, 0
          %s253 = sadd.s32 %s26, %s250
          %s254 = smul.addr %s253, 4
          %s255 = scalar_lea.hbm %s0, %s254
          %s256 = sshll.u32 %s255, 4
          %s257 = int_to_ptr.hbm [resolvable:$true] %s256
          %s258 = sshll.u32 %s249, 4
          %s259 = int_to_ptr.vmem [resolvable:$true] %s258
          %264 = dma.hbm_to_vmem [thread:$0]  %s257, 256, %s259, %s246, 64, 64, 4
        $region36: #{tpu_custom_call.1} parent=31 // pred_fallthru
          _
      $region32: #{tpu_custom_call.1} parent=5 // pred_fallthru
        _
      %p265 = scmp.le.s32.totalorder 1, %s19
      %p266 = scmp.lt.s32.totalorder %s19, 4
      %p267 = pnand %p265, %p266
      %p268 = pneg %p267
      // Predicated region
      $region37: #{tpu_custom_call.1} parent=5 // pred_check
        _
      $region38: #{tpu_custom_call.1} parent=5 // pred_check_branch
        %270 = sbr.rel (%p267) target = $region40
      $region39: #{tpu_custom_call.1} parent=5 // pred_region
        %s271 = ssub.s32 %s19, 1
        %s272 = sand.u32 %s46, 1
        %s273 = scalar_lea.sflag [#allocation5], %s272
        %s274 = sand.u32 %s46, 1
        %s275 = smul.addr %s274, 16
        %s276 = scalar_lea.vmem [#allocation4], %s275
        // Predicated region
        $region41: #{tpu_custom_call.1} parent=39 // pred_check
          %p277 = pneg %p59
        $region42: #{tpu_custom_call.1} parent=39 // pred_check_branch
          %279 = sbr.rel (%p277) target = $region44
        $region43: #{tpu_custom_call.1} parent=39 // pred_region
          %281 = dma.done %s273, 256
        $region44: #{tpu_custom_call.1} parent=39 // pred_fallthru
          _
        // Predicated region
        $region45: #{tpu_custom_call.1} parent=39 // pred_check
          %p282 = pneg %p80
        $region46: #{tpu_custom_call.1} parent=39 // pred_check_branch
          %284 = sbr.rel (%p282) target = $region48
        $region47: #{tpu_custom_call.1} parent=39 // pred_region
          %286 = dma.done [#allocation8], 8192
        $region48: #{tpu_custom_call.1} parent=39 // pred_fallthru
          _
        // Predicated region
        $region49: #{tpu_custom_call.1} parent=39 // pred_check
          %p287 = pneg %p101
        $region50: #{tpu_custom_call.1} parent=39 // pred_check_branch
          %289 = sbr.rel (%p287) target = $region52
        $region51: #{tpu_custom_call.1} parent=39 // pred_region
          %291 = dma.done [#allocation8], 64
        $region52: #{tpu_custom_call.1} parent=39 // pred_fallthru
          _
        // Predicated region
        $region53: #{tpu_custom_call.1} parent=39 // pred_check
          %p292 = pneg %p122
        $region54: #{tpu_custom_call.1} parent=39 // pred_check_branch
          %294 = sbr.rel (%p292) target = $region56
        $region55: #{tpu_custom_call.1} parent=39 // pred_region
          %296 = dma.done [#allocation11], 8192
        $region56: #{tpu_custom_call.1} parent=39 // pred_fallthru
          _
        // Predicated region
        $region57: #{tpu_custom_call.1} parent=39 // pred_check
          %p297 = pneg %p143
        $region58: #{tpu_custom_call.1} parent=39 // pred_check_branch
          %299 = sbr.rel (%p297) target = $region60
        $region59: #{tpu_custom_call.1} parent=39 // pred_region
          %301 = dma.done [#allocation11], 64
        $region60: #{tpu_custom_call.1} parent=39 // pred_fallthru
          _
        %s302 = sand.u32 %s46, 1
        %s303 = scalar_lea.sflag [#allocation5], %s302
        %s304 = sand.u32 %s46, 1
        %s305 = smul.addr %s304, 16
        %s306 = scalar_lea.vmem [#allocation4], %s305
        %p307 = pneg %p59
        %p308 = pneg %p56
        %p309 = pneg %p80
        %p310 = pneg %p77
        %p311 = pneg %p101
        %p312 = pneg %p98
        %p313 = pneg %p122
        %p314 = pneg %p119
        %p315 = pneg %p143
        %p316 = pneg %p140
        %p317 = pneg %p171
        %p318 = pneg %p168
        %s319 = sand.u32 %s158, 1
        %s320 = scalar_lea.sflag [#allocation6], %s319
        %s321 = sand.u32 %s158, 1
        %s322 = smul.addr %s321, 16
        %s323 = scalar_lea.vmem [#allocation13], %s322
        %s324 = smul.u32 4, %s29
        %s325 = smul.u32 4, %s29
        %p326 = scmp.eq.s32.totalorder %s29, 0
        // Predicated region
        $region61: #{tpu_custom_call.1} parent=39 // pred_check
          %p327 = pneg %p326
        $region62: #{tpu_custom_call.1} parent=39 // pred_check_branch
          %329 = sbr.rel (%p327) target = $region64
        $region63: #{tpu_custom_call.1} parent=39 // pred_region
          %330 = vst [vmem:[#allocation2] sm:$0xff] 0.0
          %331 = vst [vmem:[#allocation2 + $0x8] sm:$0xff] 0.0
          %332 = vst [vmem:[#allocation3] sm:$0xff] 0.0
          %333 = vst [vmem:[#allocation3 + $0x8] sm:$0xff] 0.0
        $region64: #{tpu_custom_call.1} parent=39 // pred_fallthru
          _
        %v334 = vld [vmem:[%s276] sm:$0xf]
        %v335 = vld [vmem:[#allocation2] sm:$0xff]
        %v336 = vld [vmem:[#allocation3] sm:$0xff]
        %v337 = vpack.c.bf16 %v335, %v335
        %v338 = vld [vmem:[#allocation7] sm:$0xff]
        %v339 = vld [vmem:[#allocation7 + $0x8] sm:$0xff]
        %v340 = vld [vmem:[#allocation7 + $0x10] sm:$0xff]
        %v341 = vld [vmem:[#allocation7 + $0x18] sm:$0xff]
        %v342 = vld [vmem:[#allocation7 + $0x20] sm:$0xff]
        %v343 = vld [vmem:[#allocation7 + $0x28] sm:$0xff]
        %v344 = vld [vmem:[#allocation7 + $0x30] sm:$0xff]
        %v345 = vld [vmem:[#allocation7 + $0x38] sm:$0xff]
        %v346 = vld [vmem:[#allocation7 + $0x40] sm:$0xff]
        %v347 = vld [vmem:[#allocation7 + $0x48] sm:$0xff]
        %v348 = vld [vmem:[#allocation7 + $0x50] sm:$0xff]
        %v349 = vld [vmem:[#allocation7 + $0x58] sm:$0xff]
        %v350 = vld [vmem:[#allocation7 + $0x60] sm:$0xff]
        %v351 = vld [vmem:[#allocation7 + $0x68] sm:$0xff]
        %v352 = vld [vmem:[#allocation7 + $0x70] sm:$0xff]
        %v353 = vld [vmem:[#allocation7 + $0x78] sm:$0xff]
        %v354 = vld [vmem:[#allocation7 + $0x80] sm:$0xff]
        %v355 = vld [vmem:[#allocation7 + $0x88] sm:$0xff]
        %v356 = vld [vmem:[#allocation7 + $0x90] sm:$0xff]
        %v357 = vld [vmem:[#allocation7 + $0x98] sm:$0xff]
        %v358 = vld [vmem:[#allocation7 + $0xa0] sm:$0xff]
        %v359 = vld [vmem:[#allocation7 + $0xa8] sm:$0xff]
        %v360 = vld [vmem:[#allocation7 + $0xb0] sm:$0xff]
        %v361 = vld [vmem:[#allocation7 + $0xb8] sm:$0xff]
        %v362 = vld [vmem:[#allocation7 + $0xc0] sm:$0xff]
        %v363 = vld [vmem:[#allocation7 + $0xc8] sm:$0xff]
        %v364 = vld [vmem:[#allocation7 + $0xd0] sm:$0xff]
        %v365 = vld [vmem:[#allocation7 + $0xd8] sm:$0xff]
        %v366 = vld [vmem:[#allocation7 + $0xe0] sm:$0xff]
        %v367 = vld [vmem:[#allocation7 + $0xe8] sm:$0xff]
        %v368 = vld [vmem:[#allocation7 + $0xf0] sm:$0xff]
        %v369 = vld [vmem:[#allocation7 + $0xf8] sm:$0xff]
        %v370 = vld [vmem:[#allocation7 + $0x100] sm:$0xff]
        %v371 = vld [vmem:[#allocation7 + $0x108] sm:$0xff]
        %v372 = vld [vmem:[#allocation7 + $0x110] sm:$0xff]
        %v373 = vld [vmem:[#allocation7 + $0x118] sm:$0xff]
        %v374 = vld [vmem:[#allocation7 + $0x120] sm:$0xff]
        %v375 = vld [vmem:[#allocation7 + $0x128] sm:$0xff]
        %v376 = vld [vmem:[#allocation7 + $0x130] sm:$0xff]
        %v377 = vld [vmem:[#allocation7 + $0x138] sm:$0xff]
        %v378 = vld [vmem:[#allocation7 + $0x140] sm:$0xff]
        %v379 = vld [vmem:[#allocation7 + $0x148] sm:$0xff]
        %v380 = vld [vmem:[#allocation7 + $0x150] sm:$0xff]
        %v381 = vld [vmem:[#allocation7 + $0x158] sm:$0xff]
        %v382 = vld [vmem:[#allocation7 + $0x160] sm:$0xff]
        %v383 = vld [vmem:[#allocation7 + $0x168] sm:$0xff]
        %v384 = vld [vmem:[#allocation7 + $0x170] sm:$0xff]
        %v385 = vld [vmem:[#allocation7 + $0x178] sm:$0xff]
        %v386 = vld [vmem:[#allocation7 + $0x180] sm:$0xff]
        %v387 = vld [vmem:[#allocation7 + $0x188] sm:$0xff]
        %v388 = vld [vmem:[#allocation7 + $0x190] sm:$0xff]
        %v389 = vld [vmem:[#allocation7 + $0x198] sm:$0xff]
        %v390 = vld [vmem:[#allocation7 + $0x1a0] sm:$0xff]
        %v391 = vld [vmem:[#allocation7 + $0x1a8] sm:$0xff]
        %v392 = vld [vmem:[#allocation7 + $0x1b0] sm:$0xff]
        %v393 = vld [vmem:[#allocation7 + $0x1b8] sm:$0xff]
        %v394 = vld [vmem:[#allocation7 + $0x1c0] sm:$0xff]
        %v395 = vld [vmem:[#allocation7 + $0x1c8] sm:$0xff]
        %v396 = vld [vmem:[#allocation7 + $0x1d0] sm:$0xff]
        %v397 = vld [vmem:[#allocation7 + $0x1d8] sm:$0xff]
        %v398 = vld [vmem:[#allocation7 + $0x1e0] sm:$0xff]
        %v399 = vld [vmem:[#allocation7 + $0x1e8] sm:$0xff]
        %v400 = vld [vmem:[#allocation7 + $0x1f0] sm:$0xff]
        %v401 = vld [vmem:[#allocation7 + $0x1f8] sm:$0xff]
        %v402 = vld [vmem:[#allocation9] sm:$0xf]
        %v404 = vperm.slane %v402, 0
        %v405 = vperm.slane %v402, 1
        %v406 = vperm.slane %v402, 2
        %v407 = vperm.slane %v402, 3
        %v476 = vunpack.c.l.b16 %v338
        %v477 = vunpack.c.h.b16 %v338
        %v478 = vunpack.c.l.b16 %v339
        %v479 = vunpack.c.h.b16 %v339
        %v480 = vunpack.c.l.b16 %v340
        %v481 = vunpack.c.h.b16 %v340
        %v482 = vunpack.c.l.b16 %v341
        %v483 = vunpack.c.h.b16 %v341
        %v484 = vunpack.c.l.b16 %v342
        %v485 = vunpack.c.h.b16 %v342
        %v486 = vunpack.c.l.b16 %v343
        %v487 = vunpack.c.h.b16 %v343
        %v488 = vunpack.c.l.b16 %v344
        %v489 = vunpack.c.h.b16 %v344
        %v490 = vunpack.c.l.b16 %v345
        %v491 = vunpack.c.h.b16 %v345
        %v492 = vunpack.c.l.b16 %v346
        %v493 = vunpack.c.h.b16 %v346
        %v494 = vunpack.c.l.b16 %v347
        %v495 = vunpack.c.h.b16 %v347
        %v496 = vunpack.c.l.b16 %v348
        %v497 = vunpack.c.h.b16 %v348
        %v498 = vunpack.c.l.b16 %v349
        %v499 = vunpack.c.h.b16 %v349
        %v500 = vunpack.c.l.b16 %v350
        %v501 = vunpack.c.h.b16 %v350
        %v502 = vunpack.c.l.b16 %v351
        %v503 = vunpack.c.h.b16 %v351
        %v504 = vunpack.c.l.b16 %v352
        %v505 = vunpack.c.h.b16 %v352
        %v506 = vunpack.c.l.b16 %v353
        %v507 = vunpack.c.h.b16 %v353
        %v508 = vunpack.c.l.b16 %v354
        %v509 = vunpack.c.h.b16 %v354
        %v510 = vunpack.c.l.b16 %v355
        %v511 = vunpack.c.h.b16 %v355
        %v512 = vunpack.c.l.b16 %v356
        %v513 = vunpack.c.h.b16 %v356
        %v514 = vunpack.c.l.b16 %v357
        %v515 = vunpack.c.h.b16 %v357
        %v516 = vunpack.c.l.b16 %v358
        %v517 = vunpack.c.h.b16 %v358
        %v518 = vunpack.c.l.b16 %v359
        %v519 = vunpack.c.h.b16 %v359
        %v520 = vunpack.c.l.b16 %v360
        %v521 = vunpack.c.h.b16 %v360
        %v522 = vunpack.c.l.b16 %v361
        %v523 = vunpack.c.h.b16 %v361
        %v524 = vunpack.c.l.b16 %v362
        %v525 = vunpack.c.h.b16 %v362
        %v526 = vunpack.c.l.b16 %v363
        %v527 = vunpack.c.h.b16 %v363
        %v528 = vunpack.c.l.b16 %v364
        %v529 = vunpack.c.h.b16 %v364
        %v530 = vunpack.c.l.b16 %v365
        %v531 = vunpack.c.h.b16 %v365
        %v532 = vunpack.c.l.b16 %v366
        %v533 = vunpack.c.h.b16 %v366
        %v534 = vunpack.c.l.b16 %v367
        %v535 = vunpack.c.h.b16 %v367
        %v536 = vunpack.c.l.b16 %v368
        %v537 = vunpack.c.h.b16 %v368
        %v538 = vunpack.c.l.b16 %v369
        %v539 = vunpack.c.h.b16 %v369
        %v540 = vunpack.c.l.b16 %v370
        %v541 = vunpack.c.h.b16 %v370
        %v542 = vunpack.c.l.b16 %v371
        %v543 = vunpack.c.h.b16 %v371
        %v544 = vunpack.c.l.b16 %v372
        %v545 = vunpack.c.h.b16 %v372
        %v546 = vunpack.c.l.b16 %v373
        %v547 = vunpack.c.h.b16 %v373
        %v548 = vunpack.c.l.b16 %v374
        %v549 = vunpack.c.h.b16 %v374
        %v550 = vunpack.c.l.b16 %v375
        %v551 = vunpack.c.h.b16 %v375
        %v552 = vunpack.c.l.b16 %v376
        %v553 = vunpack.c.h.b16 %v376
        %v554 = vunpack.c.l.b16 %v377
        %v555 = vunpack.c.h.b16 %v377
        %v556 = vunpack.c.l.b16 %v378
        %v557 = vunpack.c.h.b16 %v378
        %v558 = vunpack.c.l.b16 %v379
        %v559 = vunpack.c.h.b16 %v379
        %v560 = vunpack.c.l.b16 %v380
        %v561 = vunpack.c.h.b16 %v380
        %v562 = vunpack.c.l.b16 %v381
        %v563 = vunpack.c.h.b16 %v381
        %v564 = vunpack.c.l.b16 %v382
        %v565 = vunpack.c.h.b16 %v382
        %v566 = vunpack.c.l.b16 %v383
        %v567 = vunpack.c.h.b16 %v383
        %v568 = vunpack.c.l.b16 %v384
        %v569 = vunpack.c.h.b16 %v384
        %v570 = vunpack.c.l.b16 %v385
        %v571 = vunpack.c.h.b16 %v385
        %v572 = vunpack.c.l.b16 %v386
        %v573 = vunpack.c.h.b16 %v386
        %v574 = vunpack.c.l.b16 %v387
        %v575 = vunpack.c.h.b16 %v387
        %v576 = vunpack.c.l.b16 %v388
        %v577 = vunpack.c.h.b16 %v388
        %v578 = vunpack.c.l.b16 %v389
        %v579 = vunpack.c.h.b16 %v389
        %v580 = vunpack.c.l.b16 %v390
        %v581 = vunpack.c.h.b16 %v390
        %v582 = vunpack.c.l.b16 %v391
        %v583 = vunpack.c.h.b16 %v391
        %v584 = vunpack.c.l.b16 %v392
        %v585 = vunpack.c.h.b16 %v392
        %v586 = vunpack.c.l.b16 %v393
        %v587 = vunpack.c.h.b16 %v393
        %v588 = vunpack.c.l.b16 %v394
        %v589 = vunpack.c.h.b16 %v394
        %v590 = vunpack.c.l.b16 %v395
        %v591 = vunpack.c.h.b16 %v395
        %v592 = vunpack.c.l.b16 %v396
        %v593 = vunpack.c.h.b16 %v396
        %v594 = vunpack.c.l.b16 %v397
        %v595 = vunpack.c.h.b16 %v397
        %v596 = vunpack.c.l.b16 %v398
        %v597 = vunpack.c.h.b16 %v398
        %v598 = vunpack.c.l.b16 %v399
        %v599 = vunpack.c.h.b16 %v399
        %v600 = vunpack.c.l.b16 %v400
        %v601 = vunpack.c.h.b16 %v400
        %v602 = vunpack.c.l.b16 %v401
        %v603 = vunpack.c.h.b16 %v401
        %v604 = vpack.c.b16 %v480, %v476
        %v605 = vpack.c.b16 %v481, %v477
        %v606 = vpack.c.b16 %v482, %v478
        %v607 = vpack.c.b16 %v483, %v479
        %v608 = vpack.c.b16 %v488, %v484
        %v609 = vpack.c.b16 %v489, %v485
        %v610 = vpack.c.b16 %v490, %v486
        %v611 = vpack.c.b16 %v491, %v487
        %v612 = vpack.c.b16 %v496, %v492
        %v613 = vpack.c.b16 %v497, %v493
        %v614 = vpack.c.b16 %v498, %v494
        %v615 = vpack.c.b16 %v499, %v495
        %v616 = vpack.c.b16 %v504, %v500
        %v617 = vpack.c.b16 %v505, %v501
        %v618 = vpack.c.b16 %v506, %v502
        %v619 = vpack.c.b16 %v507, %v503
        %v620 = vpack.c.b16 %v512, %v508
        %v621 = vpack.c.b16 %v513, %v509
        %v622 = vpack.c.b16 %v514, %v510
        %v623 = vpack.c.b16 %v515, %v511
        %v624 = vpack.c.b16 %v520, %v516
        %v625 = vpack.c.b16 %v521, %v517
        %v626 = vpack.c.b16 %v522, %v518
        %v627 = vpack.c.b16 %v523, %v519
        %v628 = vpack.c.b16 %v528, %v524
        %v629 = vpack.c.b16 %v529, %v525
        %v630 = vpack.c.b16 %v530, %v526
        %v631 = vpack.c.b16 %v531, %v527
        %v632 = vpack.c.b16 %v536, %v532
        %v633 = vpack.c.b16 %v537, %v533
        %v634 = vpack.c.b16 %v538, %v534
        %v635 = vpack.c.b16 %v539, %v535
        %v636 = vpack.c.b16 %v544, %v540
        %v637 = vpack.c.b16 %v545, %v541
        %v638 = vpack.c.b16 %v546, %v542
        %v639 = vpack.c.b16 %v547, %v543
        %v640 = vpack.c.b16 %v552, %v548
        %v641 = vpack.c.b16 %v553, %v549
        %v642 = vpack.c.b16 %v554, %v550
        %v643 = vpack.c.b16 %v555, %v551
        %v644 = vpack.c.b16 %v560, %v556
        %v645 = vpack.c.b16 %v561, %v557
        %v646 = vpack.c.b16 %v562, %v558
        %v647 = vpack.c.b16 %v563, %v559
        %v648 = vpack.c.b16 %v568, %v564
        %v649 = vpack.c.b16 %v569, %v565
        %v650 = vpack.c.b16 %v570, %v566
        %v651 = vpack.c.b16 %v571, %v567
        %v652 = vpack.c.b16 %v576, %v572
        %v653 = vpack.c.b16 %v577, %v573
        %v654 = vpack.c.b16 %v578, %v574
        %v655 = vpack.c.b16 %v579, %v575
        %v656 = vpack.c.b16 %v584, %v580
        %v657 = vpack.c.b16 %v585, %v581
        %v658 = vpack.c.b16 %v586, %v582
        %v659 = vpack.c.b16 %v587, %v583
        %v660 = vpack.c.b16 %v592, %v588
        %v661 = vpack.c.b16 %v593, %v589
        %v662 = vpack.c.b16 %v594, %v590
        %v663 = vpack.c.b16 %v595, %v591
        %v664 = vpack.c.b16 %v600, %v596
        %v665 = vpack.c.b16 %v601, %v597
        %v666 = vpack.c.b16 %v602, %v598
        %v667 = vpack.c.b16 %v603, %v599
        %732 = vmatpush.bf16.msra.mxu0 %v632
        %733 = vmatpush.bf16.msra.mxu0 %v628
        %734 = vmatpush.bf16.msra.mxu0 %v624
        %735 = vmatpush.bf16.msra.mxu0 %v620
        %736 = vmatpush.bf16.msra.mxu0 %v616
        %737 = vmatpush.bf16.msra.mxu0 %v612
        %738 = vmatpush.bf16.msra.mxu0 %v608
        %739 = vmatpush.bf16.msra.mxu0 %v604
        %740 = vmatmul.bf16.gmra.mxu0 %v334
        %v741 = vpop.f32.mrf.mxu0
        %v742 = vadd.f32 %v404, %v741
        %v743 = vpop.f32.mrf.mxu0
        %744 = vdwg.mxu0
        %745 = vmatpush.bf16.msra.mxu0 %v664
        %746 = vmatpush.bf16.msra.mxu0 %v660
        %747 = vmatpush.bf16.msra.mxu0 %v656
        %748 = vmatpush.bf16.msra.mxu0 %v652
        %749 = vmatpush.bf16.msra.mxu0 %v648
        %750 = vmatpush.bf16.msra.mxu0 %v644
        %751 = vmatpush.bf16.msra.mxu0 %v640
        %752 = vmatpush.bf16.msra.mxu0 %v636
        %753 = vmatmul.bf16.gmra.mxu0 %v337
        %v754 = vpop.f32.mrf.mxu0
        %v755 = vadd.f32 %v742, %v754
        %v756 = vpop.f32.mrf.mxu0
        %757 = vdwg.mxu0
        %758 = vmatpush.bf16.msra.mxu0 %v633
        %759 = vmatpush.bf16.msra.mxu0 %v629
        %760 = vmatpush.bf16.msra.mxu0 %v625
        %761 = vmatpush.bf16.msra.mxu0 %v621
        %762 = vmatpush.bf16.msra.mxu0 %v617
        %763 = vmatpush.bf16.msra.mxu0 %v613
        %764 = vmatpush.bf16.msra.mxu0 %v609
        %765 = vmatpush.bf16.msra.mxu0 %v605
        %766 = vmatmul.bf16.gmra.mxu0 %v334
        %v767 = vpop.f32.mrf.mxu0
        %v768 = vadd.f32 %v405, %v767
        %v769 = vpop.f32.mrf.mxu0
        %770 = vdwg.mxu0
        %771 = vmatpush.bf16.msra.mxu0 %v665
        %772 = vmatpush.bf16.msra.mxu0 %v661
        %773 = vmatpush.bf16.msra.mxu0 %v657
        %774 = vmatpush.bf16.msra.mxu0 %v653
        %775 = vmatpush.bf16.msra.mxu0 %v649
        %776 = vmatpush.bf16.msra.mxu0 %v645
        %777 = vmatpush.bf16.msra.mxu0 %v641
        %778 = vmatpush.bf16.msra.mxu0 %v637
        %779 = vmatmul.bf16.gmra.mxu0 %v337
        %v780 = vpop.f32.mrf.mxu0
        %v781 = vadd.f32 %v768, %v780
        %v782 = vpop.f32.mrf.mxu0
        %783 = vdwg.mxu0
        %784 = vmatpush.bf16.msra.mxu0 %v634
        %785 = vmatpush.bf16.msra.mxu0 %v630
        %786 = vmatpush.bf16.msra.mxu0 %v626
        %787 = vmatpush.bf16.msra.mxu0 %v622
        %788 = vmatpush.bf16.msra.mxu0 %v618
        %789 = vmatpush.bf16.msra.mxu0 %v614
        %790 = vmatpush.bf16.msra.mxu0 %v610
        %791 = vmatpush.bf16.msra.mxu0 %v606
        %792 = vmatmul.bf16.gmra.mxu0 %v334
        %v793 = vpop.f32.mrf.mxu0
        %v794 = vadd.f32 %v406, %v793
        %v795 = vpop.f32.mrf.mxu0
        %796 = vdwg.mxu0
        %797 = vmatpush.bf16.msra.mxu0 %v666
        %798 = vmatpush.bf16.msra.mxu0 %v662
        %799 = vmatpush.bf16.msra.mxu0 %v658
        %800 = vmatpush.bf16.msra.mxu0 %v654
        %801 = vmatpush.bf16.msra.mxu0 %v650
        %802 = vmatpush.bf16.msra.mxu0 %v646
        %803 = vmatpush.bf16.msra.mxu0 %v642
        %804 = vmatpush.bf16.msra.mxu0 %v638
        %805 = vmatmul.bf16.gmra.mxu0 %v337
        %v806 = vpop.f32.mrf.mxu0
        %v807 = vadd.f32 %v794, %v806
        %v808 = vpop.f32.mrf.mxu0
        %809 = vdwg.mxu0
        %810 = vmatpush.bf16.msra.mxu0 %v635
        %811 = vmatpush.bf16.msra.mxu0 %v631
        %812 = vmatpush.bf16.msra.mxu0 %v627
        %813 = vmatpush.bf16.msra.mxu0 %v623
        %814 = vmatpush.bf16.msra.mxu0 %v619
        %815 = vmatpush.bf16.msra.mxu0 %v615
        %816 = vmatpush.bf16.msra.mxu0 %v611
        %817 = vmatpush.bf16.msra.mxu0 %v607
        %818 = vmatmul.bf16.gmra.mxu0 %v334
        %v819 = vpop.f32.mrf.mxu0
        %v820 = vadd.f32 %v407, %v819
        %v821 = vpop.f32.mrf.mxu0
        %822 = vdwg.mxu0
        %823 = vmatpush.bf16.msra.mxu0 %v667
        %824 = vmatpush.bf16.msra.mxu0 %v663
        %825 = vmatpush.bf16.msra.mxu0 %v659
        %826 = vmatpush.bf16.msra.mxu0 %v655
        %827 = vmatpush.bf16.msra.mxu0 %v651
        %828 = vmatpush.bf16.msra.mxu0 %v647
        %829 = vmatpush.bf16.msra.mxu0 %v643
        %830 = vmatpush.bf16.msra.mxu0 %v639
        %831 = vmatmul.bf16.gmra.mxu0 %v337
        %v832 = vpop.f32.mrf.mxu0
        %v833 = vadd.f32 %v820, %v832
        %v834 = vpop.f32.mrf.mxu0
        %835 = vdwg.mxu0
        %v836 = vxor.u32 %v755, 2147483648
        %v837 = vmul.f32 %v836, 1.442695
        %v838 = vpow.pop %v837
        %v839 = vadd.f32 %v838, 1.0
        %v840 = vrcp.pop %v839
        %v841 = vmul.f32 %v839, %v840
        %v842 = vsub.f32 1.0, %v841
        %v843 = vmul.f32 %v840, %v842
        %v844 = vadd.f32 %v840, %v843
        %vm845 = vweird.f32 %v839
        %vm846 = vweird.f32 %v840
        %vm847 = vmor %vm845, %vm846
        %v848 = vsel %vm847, %v840, %v844
        %v849 = vand.u32 2147483647, %v839
        %vm850 = vcmp.eq.f32.partialorder %v849, 8.507059e+37
        %v851 = vand.u32 %v839, 2147483648
        %v852 = vor.u32 1.1754944e-38, %v851
        %v853 = vsel %vm850, %v852, %v848
        %v854 = vmul.f32 1.0, %v853
        %v855 = vxor.u32 %v781, 2147483648
        %v856 = vmul.f32 %v855, 1.442695
        %v857 = vpow.pop %v856
        %v858 = vadd.f32 %v857, 1.0
        %v859 = vrcp.pop %v858
        %v860 = vmul.f32 %v858, %v859
        %v861 = vsub.f32 1.0, %v860
        %v862 = vmul.f32 %v859, %v861
        %v863 = vadd.f32 %v859, %v862
        %vm864 = vweird.f32 %v858
        %vm865 = vweird.f32 %v859
        %vm866 = vmor %vm864, %vm865
        %v867 = vsel %vm866, %v859, %v863
        %v868 = vand.u32 2147483647, %v858
        %vm869 = vcmp.eq.f32.partialorder %v868, 8.507059e+37
        %v870 = vand.u32 %v858, 2147483648
        %v871 = vor.u32 1.1754944e-38, %v870
        %v872 = vsel %vm869, %v871, %v867
        %v873 = vmul.f32 1.0, %v872
        %v874 = vtanh.pop %v807
        %v875 = vxor.u32 %v833, 2147483648
        %v876 = vmul.f32 %v875, 1.442695
        %v877 = vpow.pop %v876
        %v878 = vadd.f32 %v877, 1.0
        %v879 = vrcp.pop %v878
        %v880 = vmul.f32 %v878, %v879
        %v881 = vsub.f32 1.0, %v880
        %v882 = vmul.f32 %v879, %v881
        %v883 = vadd.f32 %v879, %v882
        %vm884 = vweird.f32 %v878
        %vm885 = vweird.f32 %v879
        %vm886 = vmor %vm884, %vm885
        %v887 = vsel %vm886, %v879, %v883
        %v888 = vand.u32 2147483647, %v878
        %vm889 = vcmp.eq.f32.partialorder %v888, 8.507059e+37
        %v890 = vand.u32 %v878, 2147483648
        %v891 = vor.u32 1.1754944e-38, %v890
        %v892 = vsel %vm889, %v891, %v887
        %v893 = vmul.f32 1.0, %v892
        %v894 = vmul.f32 %v873, %v336
        %v895 = vmul.f32 %v854, %v874
        %v896 = vadd.f32 %v894, %v895
        %v897 = vtanh.pop %v896
        %v898 = vmul.f32 %v893, %v897
        %899 = vst [vmem:[#allocation2] sm:$0xff] %v898
        %900 = vst [vmem:[#allocation3] sm:$0xff] %v896
        %s901 = scalar_lea.vmem [#allocation2], 8
        %v902 = vld [vmem:[%s901] sm:$0xff]
        %s903 = scalar_lea.vmem [#allocation3], 8
        %v904 = vld [vmem:[%s903] sm:$0xff]
        %v905 = vpack.c.bf16 %v898, %v898
        %v906 = vpack.c.bf16 %v902, %v902
        %v907 = vld [vmem:[#allocation10] sm:$0xff]
        %v908 = vld [vmem:[#allocation10 + $0x8] sm:$0xff]
        %v909 = vld [vmem:[#allocation10 + $0x10] sm:$0xff]
        %v910 = vld [vmem:[#allocation10 + $0x18] sm:$0xff]
        %v911 = vld [vmem:[#allocation10 + $0x20] sm:$0xff]
        %v912 = vld [vmem:[#allocation10 + $0x28] sm:$0xff]
        %v913 = vld [vmem:[#allocation10 + $0x30] sm:$0xff]
        %v914 = vld [vmem:[#allocation10 + $0x38] sm:$0xff]
        %v915 = vld [vmem:[#allocation10 + $0x40] sm:$0xff]
        %v916 = vld [vmem:[#allocation10 + $0x48] sm:$0xff]
        %v917 = vld [vmem:[#allocation10 + $0x50] sm:$0xff]
        %v918 = vld [vmem:[#allocation10 + $0x58] sm:$0xff]
        %v919 = vld [vmem:[#allocation10 + $0x60] sm:$0xff]
        %v920 = vld [vmem:[#allocation10 + $0x68] sm:$0xff]
        %v921 = vld [vmem:[#allocation10 + $0x70] sm:$0xff]
        %v922 = vld [vmem:[#allocation10 + $0x78] sm:$0xff]
        %v923 = vld [vmem:[#allocation10 + $0x80] sm:$0xff]
        %v924 = vld [vmem:[#allocation10 + $0x88] sm:$0xff]
        %v925 = vld [vmem:[#allocation10 + $0x90] sm:$0xff]
        %v926 = vld [vmem:[#allocation10 + $0x98] sm:$0xff]
        %v927 = vld [vmem:[#allocation10 + $0xa0] sm:$0xff]
        %v928 = vld [vmem:[#allocation10 + $0xa8] sm:$0xff]
        %v929 = vld [vmem:[#allocation10 + $0xb0] sm:$0xff]
        %v930 = vld [vmem:[#allocation10 + $0xb8] sm:$0xff]
        %v931 = vld [vmem:[#allocation10 + $0xc0] sm:$0xff]
        %v932 = vld [vmem:[#allocation10 + $0xc8] sm:$0xff]
        %v933 = vld [vmem:[#allocation10 + $0xd0] sm:$0xff]
        %v934 = vld [vmem:[#allocation10 + $0xd8] sm:$0xff]
        %v935 = vld [vmem:[#allocation10 + $0xe0] sm:$0xff]
        %v936 = vld [vmem:[#allocation10 + $0xe8] sm:$0xff]
        %v937 = vld [vmem:[#allocation10 + $0xf0] sm:$0xff]
        %v938 = vld [vmem:[#allocation10 + $0xf8] sm:$0xff]
        %v939 = vld [vmem:[#allocation10 + $0x100] sm:$0xff]
        %v940 = vld [vmem:[#allocation10 + $0x108] sm:$0xff]
        %v941 = vld [vmem:[#allocation10 + $0x110] sm:$0xff]
        %v942 = vld [vmem:[#allocation10 + $0x118] sm:$0xff]
        %v943 = vld [vmem:[#allocation10 + $0x120] sm:$0xff]
        %v944 = vld [vmem:[#allocation10 + $0x128] sm:$0xff]
        %v945 = vld [vmem:[#allocation10 + $0x130] sm:$0xff]
        %v946 = vld [vmem:[#allocation10 + $0x138] sm:$0xff]
        %v947 = vld [vmem:[#allocation10 + $0x140] sm:$0xff]
        %v948 = vld [vmem:[#allocation10 + $0x148] sm:$0xff]
        %v949 = vld [vmem:[#allocation10 + $0x150] sm:$0xff]
        %v950 = vld [vmem:[#allocation10 + $0x158] sm:$0xff]
        %v951 = vld [vmem:[#allocation10 + $0x160] sm:$0xff]
        %v952 = vld [vmem:[#allocation10 + $0x168] sm:$0xff]
        %v953 = vld [vmem:[#allocation10 + $0x170] sm:$0xff]
        %v954 = vld [vmem:[#allocation10 + $0x178] sm:$0xff]
        %v955 = vld [vmem:[#allocation10 + $0x180] sm:$0xff]
        %v956 = vld [vmem:[#allocation10 + $0x188] sm:$0xff]
        %v957 = vld [vmem:[#allocation10 + $0x190] sm:$0xff]
        %v958 = vld [vmem:[#allocation10 + $0x198] sm:$0xff]
        %v959 = vld [vmem:[#allocation10 + $0x1a0] sm:$0xff]
        %v960 = vld [vmem:[#allocation10 + $0x1a8] sm:$0xff]
        %v961 = vld [vmem:[#allocation10 + $0x1b0] sm:$0xff]
        %v962 = vld [vmem:[#allocation10 + $0x1b8] sm:$0xff]
        %v963 = vld [vmem:[#allocation10 + $0x1c0] sm:$0xff]
        %v964 = vld [vmem:[#allocation10 + $0x1c8] sm:$0xff]
        %v965 = vld [vmem:[#allocation10 + $0x1d0] sm:$0xff]
        %v966 = vld [vmem:[#allocation10 + $0x1d8] sm:$0xff]
        %v967 = vld [vmem:[#allocation10 + $0x1e0] sm:$0xff]
        %v968 = vld [vmem:[#allocation10 + $0x1e8] sm:$0xff]
        %v969 = vld [vmem:[#allocation10 + $0x1f0] sm:$0xff]
        %v970 = vld [vmem:[#allocation10 + $0x1f8] sm:$0xff]
        %v971 = vld [vmem:[#allocation12] sm:$0xf]
        %v973 = vperm.slane %v971, 0
        %v974 = vperm.slane %v971, 1
        %v975 = vperm.slane %v971, 2
        %v976 = vperm.slane %v971, 3
        %v1045 = vunpack.c.l.b16 %v907
        %v1046 = vunpack.c.h.b16 %v907
        %v1047 = vunpack.c.l.b16 %v908
        %v1048 = vunpack.c.h.b16 %v908
        %v1049 = vunpack.c.l.b16 %v909
        %v1050 = vunpack.c.h.b16 %v909
        %v1051 = vunpack.c.l.b16 %v910
        %v1052 = vunpack.c.h.b16 %v910
        %v1053 = vunpack.c.l.b16 %v911
        %v1054 = vunpack.c.h.b16 %v911
        %v1055 = vunpack.c.l.b16 %v912
        %v1056 = vunpack.c.h.b16 %v912
        %v1057 = vunpack.c.l.b16 %v913
        %v1058 = vunpack.c.h.b16 %v913
        %v1059 = vunpack.c.l.b16 %v914
        %v1060 = vunpack.c.h.b16 %v914
        %v1061 = vunpack.c.l.b16 %v915
        %v1062 = vunpack.c.h.b16 %v915
        %v1063 = vunpack.c.l.b16 %v916
        %v1064 = vunpack.c.h.b16 %v916
        %v1065 = vunpack.c.l.b16 %v917
        %v1066 = vunpack.c.h.b16 %v917
        %v1067 = vunpack.c.l.b16 %v918
        %v1068 = vunpack.c.h.b16 %v918
        %v1069 = vunpack.c.l.b16 %v919
        %v1070 = vunpack.c.h.b16 %v919
        %v1071 = vunpack.c.l.b16 %v920
        %v1072 = vunpack.c.h.b16 %v920
        %v1073 = vunpack.c.l.b16 %v921
        %v1074 = vunpack.c.h.b16 %v921
        %v1075 = vunpack.c.l.b16 %v922
        %v1076 = vunpack.c.h.b16 %v922
        %v1077 = vunpack.c.l.b16 %v923
        %v1078 = vunpack.c.h.b16 %v923
        %v1079 = vunpack.c.l.b16 %v924
        %v1080 = vunpack.c.h.b16 %v924
        %v1081 = vunpack.c.l.b16 %v925
        %v1082 = vunpack.c.h.b16 %v925
        %v1083 = vunpack.c.l.b16 %v926
        %v1084 = vunpack.c.h.b16 %v926
        %v1085 = vunpack.c.l.b16 %v927
        %v1086 = vunpack.c.h.b16 %v927
        %v1087 = vunpack.c.l.b16 %v928
        %v1088 = vunpack.c.h.b16 %v928
        %v1089 = vunpack.c.l.b16 %v929
        %v1090 = vunpack.c.h.b16 %v929
        %v1091 = vunpack.c.l.b16 %v930
        %v1092 = vunpack.c.h.b16 %v930
        %v1093 = vunpack.c.l.b16 %v931
        %v1094 = vunpack.c.h.b16 %v931
        %v1095 = vunpack.c.l.b16 %v932
        %v1096 = vunpack.c.h.b16 %v932
        %v1097 = vunpack.c.l.b16 %v933
        %v1098 = vunpack.c.h.b16 %v933
        %v1099 = vunpack.c.l.b16 %v934
        %v1100 = vunpack.c.h.b16 %v934
        %v1101 = vunpack.c.l.b16 %v935
        %v1102 = vunpack.c.h.b16 %v935
        %v1103 = vunpack.c.l.b16 %v936
        %v1104 = vunpack.c.h.b16 %v936
        %v1105 = vunpack.c.l.b16 %v937
        %v1106 = vunpack.c.h.b16 %v937
        %v1107 = vunpack.c.l.b16 %v938
        %v1108 = vunpack.c.h.b16 %v938
        %v1109 = vunpack.c.l.b16 %v939
        %v1110 = vunpack.c.h.b16 %v939
        %v1111 = vunpack.c.l.b16 %v940
        %v1112 = vunpack.c.h.b16 %v940
        %v1113 = vunpack.c.l.b16 %v941
        %v1114 = vunpack.c.h.b16 %v941
        %v1115 = vunpack.c.l.b16 %v942
        %v1116 = vunpack.c.h.b16 %v942
        %v1117 = vunpack.c.l.b16 %v943
        %v1118 = vunpack.c.h.b16 %v943
        %v1119 = vunpack.c.l.b16 %v944
        %v1120 = vunpack.c.h.b16 %v944
        %v1121 = vunpack.c.l.b16 %v945
        %v1122 = vunpack.c.h.b16 %v945
        %v1123 = vunpack.c.l.b16 %v946
        %v1124 = vunpack.c.h.b16 %v946
        %v1125 = vunpack.c.l.b16 %v947
        %v1126 = vunpack.c.h.b16 %v947
        %v1127 = vunpack.c.l.b16 %v948
        %v1128 = vunpack.c.h.b16 %v948
        %v1129 = vunpack.c.l.b16 %v949
        %v1130 = vunpack.c.h.b16 %v949
        %v1131 = vunpack.c.l.b16 %v950
        %v1132 = vunpack.c.h.b16 %v950
        %v1133 = vunpack.c.l.b16 %v951
        %v1134 = vunpack.c.h.b16 %v951
        %v1135 = vunpack.c.l.b16 %v952
        %v1136 = vunpack.c.h.b16 %v952
        %v1137 = vunpack.c.l.b16 %v953
        %v1138 = vunpack.c.h.b16 %v953
        %v1139 = vunpack.c.l.b16 %v954
        %v1140 = vunpack.c.h.b16 %v954
        %v1141 = vunpack.c.l.b16 %v955
        %v1142 = vunpack.c.h.b16 %v955
        %v1143 = vunpack.c.l.b16 %v956
        %v1144 = vunpack.c.h.b16 %v956
        %v1145 = vunpack.c.l.b16 %v957
        %v1146 = vunpack.c.h.b16 %v957
        %v1147 = vunpack.c.l.b16 %v958
        %v1148 = vunpack.c.h.b16 %v958
        %v1149 = vunpack.c.l.b16 %v959
        %v1150 = vunpack.c.h.b16 %v959
        %v1151 = vunpack.c.l.b16 %v960
        %v1152 = vunpack.c.h.b16 %v960
        %v1153 = vunpack.c.l.b16 %v961
        %v1154 = vunpack.c.h.b16 %v961
        %v1155 = vunpack.c.l.b16 %v962
        %v1156 = vunpack.c.h.b16 %v962
        %v1157 = vunpack.c.l.b16 %v963
        %v1158 = vunpack.c.h.b16 %v963
        %v1159 = vunpack.c.l.b16 %v964
        %v1160 = vunpack.c.h.b16 %v964
        %v1161 = vunpack.c.l.b16 %v965
        %v1162 = vunpack.c.h.b16 %v965
        %v1163 = vunpack.c.l.b16 %v966
        %v1164 = vunpack.c.h.b16 %v966
        %v1165 = vunpack.c.l.b16 %v967
        %v1166 = vunpack.c.h.b16 %v967
        %v1167 = vunpack.c.l.b16 %v968
        %v1168 = vunpack.c.h.b16 %v968
        %v1169 = vunpack.c.l.b16 %v969
        %v1170 = vunpack.c.h.b16 %v969
        %v1171 = vunpack.c.l.b16 %v970
        %v1172 = vunpack.c.h.b16 %v970
        %v1173 = vpack.c.b16 %v1049, %v1045
        %v1174 = vpack.c.b16 %v1050, %v1046
        %v1175 = vpack.c.b16 %v1051, %v1047
        %v1176 = vpack.c.b16 %v1052, %v1048
        %v1177 = vpack.c.b16 %v1057, %v1053
        %v1178 = vpack.c.b16 %v1058, %v1054
        %v1179 = vpack.c.b16 %v1059, %v1055
        %v1180 = vpack.c.b16 %v1060, %v1056
        %v1181 = vpack.c.b16 %v1065, %v1061
        %v1182 = vpack.c.b16 %v1066, %v1062
        %v1183 = vpack.c.b16 %v1067, %v1063
        %v1184 = vpack.c.b16 %v1068, %v1064
        %v1185 = vpack.c.b16 %v1073, %v1069
        %v1186 = vpack.c.b16 %v1074, %v1070
        %v1187 = vpack.c.b16 %v1075, %v1071
        %v1188 = vpack.c.b16 %v1076, %v1072
        %v1189 = vpack.c.b16 %v1081, %v1077
        %v1190 = vpack.c.b16 %v1082, %v1078
        %v1191 = vpack.c.b16 %v1083, %v1079
        %v1192 = vpack.c.b16 %v1084, %v1080
        %v1193 = vpack.c.b16 %v1089, %v1085
        %v1194 = vpack.c.b16 %v1090, %v1086
        %v1195 = vpack.c.b16 %v1091, %v1087
        %v1196 = vpack.c.b16 %v1092, %v1088
        %v1197 = vpack.c.b16 %v1097, %v1093
        %v1198 = vpack.c.b16 %v1098, %v1094
        %v1199 = vpack.c.b16 %v1099, %v1095
        %v1200 = vpack.c.b16 %v1100, %v1096
        %v1201 = vpack.c.b16 %v1105, %v1101
        %v1202 = vpack.c.b16 %v1106, %v1102
        %v1203 = vpack.c.b16 %v1107, %v1103
        %v1204 = vpack.c.b16 %v1108, %v1104
        %v1205 = vpack.c.b16 %v1113, %v1109
        %v1206 = vpack.c.b16 %v1114, %v1110
        %v1207 = vpack.c.b16 %v1115, %v1111
        %v1208 = vpack.c.b16 %v1116, %v1112
        %v1209 = vpack.c.b16 %v1121, %v1117
        %v1210 = vpack.c.b16 %v1122, %v1118
        %v1211 = vpack.c.b16 %v1123, %v1119
        %v1212 = vpack.c.b16 %v1124, %v1120
        %v1213 = vpack.c.b16 %v1129, %v1125
        %v1214 = vpack.c.b16 %v1130, %v1126
        %v1215 = vpack.c.b16 %v1131, %v1127
        %v1216 = vpack.c.b16 %v1132, %v1128
        %v1217 = vpack.c.b16 %v1137, %v1133
        %v1218 = vpack.c.b16 %v1138, %v1134
        %v1219 = vpack.c.b16 %v1139, %v1135
        %v1220 = vpack.c.b16 %v1140, %v1136
        %v1221 = vpack.c.b16 %v1145, %v1141
        %v1222 = vpack.c.b16 %v1146, %v1142
        %v1223 = vpack.c.b16 %v1147, %v1143
        %v1224 = vpack.c.b16 %v1148, %v1144
        %v1225 = vpack.c.b16 %v1153, %v1149
        %v1226 = vpack.c.b16 %v1154, %v1150
        %v1227 = vpack.c.b16 %v1155, %v1151
        %v1228 = vpack.c.b16 %v1156, %v1152
        %v1229 = vpack.c.b16 %v1161, %v1157
        %v1230 = vpack.c.b16 %v1162, %v1158
        %v1231 = vpack.c.b16 %v1163, %v1159
        %v1232 = vpack.c.b16 %v1164, %v1160
        %v1233 = vpack.c.b16 %v1169, %v1165
        %v1234 = vpack.c.b16 %v1170, %v1166
        %v1235 = vpack.c.b16 %v1171, %v1167
        %v1236 = vpack.c.b16 %v1172, %v1168
        %1301 = vmatpush.bf16.msra.mxu0 %v1201
        %1302 = vmatpush.bf16.msra.mxu0 %v1197
        %1303 = vmatpush.bf16.msra.mxu0 %v1193
        %1304 = vmatpush.bf16.msra.mxu0 %v1189
        %1305 = vmatpush.bf16.msra.mxu0 %v1185
        %1306 = vmatpush.bf16.msra.mxu0 %v1181
        %1307 = vmatpush.bf16.msra.mxu0 %v1177
        %1308 = vmatpush.bf16.msra.mxu0 %v1173
        %1309 = vmatmul.bf16.gmra.mxu0 %v905
        %v1310 = vpop.f32.mrf.mxu0
        %v1311 = vadd.f32 %v973, %v1310
        %v1312 = vpop.f32.mrf.mxu0
        %1313 = vdwg.mxu0
        %1314 = vmatpush.bf16.msra.mxu0 %v1233
        %1315 = vmatpush.bf16.msra.mxu0 %v1229
        %1316 = vmatpush.bf16.msra.mxu0 %v1225
        %1317 = vmatpush.bf16.msra.mxu0 %v1221
        %1318 = vmatpush.bf16.msra.mxu0 %v1217
        %1319 = vmatpush.bf16.msra.mxu0 %v1213
        %1320 = vmatpush.bf16.msra.mxu0 %v1209
        %1321 = vmatpush.bf16.msra.mxu0 %v1205
        %1322 = vmatmul.bf16.gmra.mxu0 %v906
        %v1323 = vpop.f32.mrf.mxu0
        %v1324 = vadd.f32 %v1311, %v1323
        %v1325 = vpop.f32.mrf.mxu0
        %1326 = vdwg.mxu0
        %1327 = vmatpush.bf16.msra.mxu0 %v1202
        %1328 = vmatpush.bf16.msra.mxu0 %v1198
        %1329 = vmatpush.bf16.msra.mxu0 %v1194
        %1330 = vmatpush.bf16.msra.mxu0 %v1190
        %1331 = vmatpush.bf16.msra.mxu0 %v1186
        %1332 = vmatpush.bf16.msra.mxu0 %v1182
        %1333 = vmatpush.bf16.msra.mxu0 %v1178
        %1334 = vmatpush.bf16.msra.mxu0 %v1174
        %1335 = vmatmul.bf16.gmra.mxu0 %v905
        %v1336 = vpop.f32.mrf.mxu0
        %v1337 = vadd.f32 %v974, %v1336
        %v1338 = vpop.f32.mrf.mxu0
        %1339 = vdwg.mxu0
        %1340 = vmatpush.bf16.msra.mxu0 %v1234
        %1341 = vmatpush.bf16.msra.mxu0 %v1230
        %1342 = vmatpush.bf16.msra.mxu0 %v1226
        %1343 = vmatpush.bf16.msra.mxu0 %v1222
        %1344 = vmatpush.bf16.msra.mxu0 %v1218
        %1345 = vmatpush.bf16.msra.mxu0 %v1214
        %1346 = vmatpush.bf16.msra.mxu0 %v1210
        %1347 = vmatpush.bf16.msra.mxu0 %v1206
        %1348 = vmatmul.bf16.gmra.mxu0 %v906
        %v1349 = vpop.f32.mrf.mxu0
        %v1350 = vadd.f32 %v1337, %v1349
        %v1351 = vpop.f32.mrf.mxu0
        %1352 = vdwg.mxu0
        %1353 = vmatpush.bf16.msra.mxu0 %v1203
        %1354 = vmatpush.bf16.msra.mxu0 %v1199
        %1355 = vmatpush.bf16.msra.mxu0 %v1195
        %1356 = vmatpush.bf16.msra.mxu0 %v1191
        %1357 = vmatpush.bf16.msra.mxu0 %v1187
        %1358 = vmatpush.bf16.msra.mxu0 %v1183
        %1359 = vmatpush.bf16.msra.mxu0 %v1179
        %1360 = vmatpush.bf16.msra.mxu0 %v1175
        %1361 = vmatmul.bf16.gmra.mxu0 %v905
        %v1362 = vpop.f32.mrf.mxu0
        %v1363 = vadd.f32 %v975, %v1362
        %v1364 = vpop.f32.mrf.mxu0
        %1365 = vdwg.mxu0
        %1366 = vmatpush.bf16.msra.mxu0 %v1235
        %1367 = vmatpush.bf16.msra.mxu0 %v1231
        %1368 = vmatpush.bf16.msra.mxu0 %v1227
        %1369 = vmatpush.bf16.msra.mxu0 %v1223
        %1370 = vmatpush.bf16.msra.mxu0 %v1219
        %1371 = vmatpush.bf16.msra.mxu0 %v1215
        %1372 = vmatpush.bf16.msra.mxu0 %v1211
        %1373 = vmatpush.bf16.msra.mxu0 %v1207
        %1374 = vmatmul.bf16.gmra.mxu0 %v906
        %v1375 = vpop.f32.mrf.mxu0
        %v1376 = vadd.f32 %v1363, %v1375
        %v1377 = vpop.f32.mrf.mxu0
        %1378 = vdwg.mxu0
        %1379 = vmatpush.bf16.msra.mxu0 %v1204
        %1380 = vmatpush.bf16.msra.mxu0 %v1200
        %1381 = vmatpush.bf16.msra.mxu0 %v1196
        %1382 = vmatpush.bf16.msra.mxu0 %v1192
        %1383 = vmatpush.bf16.msra.mxu0 %v1188
        %1384 = vmatpush.bf16.msra.mxu0 %v1184
        %1385 = vmatpush.bf16.msra.mxu0 %v1180
        %1386 = vmatpush.bf16.msra.mxu0 %v1176
        %1387 = vmatmul.bf16.gmra.mxu0 %v905
        %v1388 = vpop.f32.mrf.mxu0
        %v1389 = vadd.f32 %v976, %v1388
        %v1390 = vpop.f32.mrf.mxu0
        %1391 = vdwg.mxu0
        %1392 = vmatpush.bf16.msra.mxu0 %v1236
        %1393 = vmatpush.bf16.msra.mxu0 %v1232
        %1394 = vmatpush.bf16.msra.mxu0 %v1228
        %1395 = vmatpush.bf16.msra.mxu0 %v1224
        %1396 = vmatpush.bf16.msra.mxu0 %v1220
        %1397 = vmatpush.bf16.msra.mxu0 %v1216
        %1398 = vmatpush.bf16.msra.mxu0 %v1212
        %1399 = vmatpush.bf16.msra.mxu0 %v1208
        %1400 = vmatmul.bf16.gmra.mxu0 %v906
        %v1401 = vpop.f32.mrf.mxu0
        %v1402 = vadd.f32 %v1389, %v1401
        %v1403 = vpop.f32.mrf.mxu0
        %1404 = vdwg.mxu0
        %v1405 = vxor.u32 %v1324, 2147483648
        %v1406 = vmul.f32 %v1405, 1.442695
        %v1407 = vpow.pop %v1406
        %v1408 = vadd.f32 %v1407, 1.0
        %v1409 = vrcp.pop %v1408
        %v1410 = vmul.f32 %v1408, %v1409
        %v1411 = vsub.f32 1.0, %v1410
        %v1412 = vmul.f32 %v1409, %v1411
        %v1413 = vadd.f32 %v1409, %v1412
        %vm1414 = vweird.f32 %v1408
        %vm1415 = vweird.f32 %v1409
        %vm1416 = vmor %vm1414, %vm1415
        %v1417 = vsel %vm1416, %v1409, %v1413
        %v1418 = vand.u32 2147483647, %v1408
        %vm1419 = vcmp.eq.f32.partialorder %v1418, 8.507059e+37
        %v1420 = vand.u32 %v1408, 2147483648
        %v1421 = vor.u32 1.1754944e-38, %v1420
        %v1422 = vsel %vm1419, %v1421, %v1417
        %v1423 = vmul.f32 1.0, %v1422
        %v1424 = vxor.u32 %v1350, 2147483648
        %v1425 = vmul.f32 %v1424, 1.442695
        %v1426 = vpow.pop %v1425
        %v1427 = vadd.f32 %v1426, 1.0
        %v1428 = vrcp.pop %v1427
        %v1429 = vmul.f32 %v1427, %v1428
        %v1430 = vsub.f32 1.0, %v1429
        %v1431 = vmul.f32 %v1428, %v1430
        %v1432 = vadd.f32 %v1428, %v1431
        %vm1433 = vweird.f32 %v1427
        %vm1434 = vweird.f32 %v1428
        %vm1435 = vmor %vm1433, %vm1434
        %v1436 = vsel %vm1435, %v1428, %v1432
        %v1437 = vand.u32 2147483647, %v1427
        %vm1438 = vcmp.eq.f32.partialorder %v1437, 8.507059e+37
        %v1439 = vand.u32 %v1427, 2147483648
        %v1440 = vor.u32 1.1754944e-38, %v1439
        %v1441 = vsel %vm1438, %v1440, %v1436
        %v1442 = vmul.f32 1.0, %v1441
        %v1443 = vtanh.pop %v1376
        %v1444 = vxor.u32 %v1402, 2147483648
        %v1445 = vmul.f32 %v1444, 1.442695
        %v1446 = vpow.pop %v1445
        %v1447 = vadd.f32 %v1446, 1.0
        %v1448 = vrcp.pop %v1447
        %v1449 = vmul.f32 %v1447, %v1448
        %v1450 = vsub.f32 1.0, %v1449
        %v1451 = vmul.f32 %v1448, %v1450
        %v1452 = vadd.f32 %v1448, %v1451
        %vm1453 = vweird.f32 %v1447
        %vm1454 = vweird.f32 %v1448
        %vm1455 = vmor %vm1453, %vm1454
        %v1456 = vsel %vm1455, %v1448, %v1452
        %v1457 = vand.u32 2147483647, %v1447
        %vm1458 = vcmp.eq.f32.partialorder %v1457, 8.507059e+37
        %v1459 = vand.u32 %v1447, 2147483648
        %v1460 = vor.u32 1.1754944e-38, %v1459
        %v1461 = vsel %vm1458, %v1460, %v1456
        %v1462 = vmul.f32 1.0, %v1461
        %v1463 = vmul.f32 %v1442, %v904
        %v1464 = vmul.f32 %v1423, %v1443
        %v1465 = vadd.f32 %v1463, %v1464
        %v1466 = vtanh.pop %v1465
        %v1467 = vmul.f32 %v1462, %v1466
        %1468 = vst [vmem:[%s901] sm:$0xff] %v1467
        %1469 = vst [vmem:[%s903] sm:$0xff] %v1465
        %v1470 = vpack.c.bf16 %v1467, %v1467
        %1471 = vst [vmem:[%s323] sm:$0xf] %v1470
        %s1472 = scalar_lea.vmem %s276, 4 [#allocation4]
        %v1473 = vld [vmem:[%s1472] sm:$0xf]
        %v1474 = vld [vmem:[#allocation2] sm:$0xff]
        %v1475 = vld [vmem:[#allocation3] sm:$0xff]
        %v1476 = vpack.c.bf16 %v1474, %v1474
        %v1477 = vld [vmem:[#allocation7] sm:$0xff]
        %v1478 = vld [vmem:[#allocation7 + $0x8] sm:$0xff]
        %v1479 = vld [vmem:[#allocation7 + $0x10] sm:$0xff]
        %v1480 = vld [vmem:[#allocation7 + $0x18] sm:$0xff]
        %v1481 = vld [vmem:[#allocation7 + $0x20] sm:$0xff]
        %v1482 = vld [vmem:[#allocation7 + $0x28] sm:$0xff]
        %v1483 = vld [vmem:[#allocation7 + $0x30] sm:$0xff]
        %v1484 = vld [vmem:[#allocation7 + $0x38] sm:$0xff]
        %v1485 = vld [vmem:[#allocation7 + $0x40] sm:$0xff]
        %v1486 = vld [vmem:[#allocation7 + $0x48] sm:$0xff]
        %v1487 = vld [vmem:[#allocation7 + $0x50] sm:$0xff]
        %v1488 = vld [vmem:[#allocation7 + $0x58] sm:$0xff]
        %v1489 = vld [vmem:[#allocation7 + $0x60] sm:$0xff]
        %v1490 = vld [vmem:[#allocation7 + $0x68] sm:$0xff]
        %v1491 = vld [vmem:[#allocation7 + $0x70] sm:$0xff]
        %v1492 = vld [vmem:[#allocation7 + $0x78] sm:$0xff]
        %v1493 = vld [vmem:[#allocation7 + $0x80] sm:$0xff]
        %v1494 = vld [vmem:[#allocation7 + $0x88] sm:$0xff]
        %v1495 = vld [vmem:[#allocation7 + $0x90] sm:$0xff]
        %v1496 = vld [vmem:[#allocation7 + $0x98] sm:$0xff]
        %v1497 = vld [vmem:[#allocation7 + $0xa0] sm:$0xff]
        %v1498 = vld [vmem:[#allocation7 + $0xa8] sm:$0xff]
        %v1499 = vld [vmem:[#allocation7 + $0xb0] sm:$0xff]
        %v1500 = vld [vmem:[#allocation7 + $0xb8] sm:$0xff]
        %v1501 = vld [vmem:[#allocation7 + $0xc0] sm:$0xff]
        %v1502 = vld [vmem:[#allocation7 + $0xc8] sm:$0xff]
        %v1503 = vld [vmem:[#allocation7 + $0xd0] sm:$0xff]
        %v1504 = vld [vmem:[#allocation7 + $0xd8] sm:$0xff]
        %v1505 = vld [vmem:[#allocation7 + $0xe0] sm:$0xff]
        %v1506 = vld [vmem:[#allocation7 + $0xe8] sm:$0xff]
        %v1507 = vld [vmem:[#allocation7 + $0xf0] sm:$0xff]
        %v1508 = vld [vmem:[#allocation7 + $0xf8] sm:$0xff]
        %v1509 = vld [vmem:[#allocation7 + $0x100] sm:$0xff]
        %v1510 = vld [vmem:[#allocation7 + $0x108] sm:$0xff]
        %v1511 = vld [vmem:[#allocation7 + $0x110] sm:$0xff]
        %v1512 = vld [vmem:[#allocation7 + $0x118] sm:$0xff]
        %v1513 = vld [vmem:[#allocation7 + $0x120] sm:$0xff]
        %v1514 = vld [vmem:[#allocation7 + $0x128] sm:$0xff]
        %v1515 = vld [vmem:[#allocation7 + $0x130] sm:$0xff]
        %v1516 = vld [vmem:[#allocation7 + $0x138] sm:$0xff]
        %v1517 = vld [vmem:[#allocation7 + $0x140] sm:$0xff]
        %v1518 = vld [vmem:[#allocation7 + $0x148] sm:$0xff]
        %v1519 = vld [vmem:[#allocation7 + $0x150] sm:$0xff]
        %v1520 = vld [vmem:[#allocation7 + $0x158] sm:$0xff]
        %v1521 = vld [vmem:[#allocation7 + $0x160] sm:$0xff]
        %v1522 = vld [vmem:[#allocation7 + $0x168] sm:$0xff]
        %v1523 = vld [vmem:[#allocation7 + $0x170] sm:$0xff]
        %v1524 = vld [vmem:[#allocation7 + $0x178] sm:$0xff]
        %v1525 = vld [vmem:[#allocation7 + $0x180] sm:$0xff]
        %v1526 = vld [vmem:[#allocation7 + $0x188] sm:$0xff]
        %v1527 = vld [vmem:[#allocation7 + $0x190] sm:$0xff]
        %v1528 = vld [vmem:[#allocation7 + $0x198] sm:$0xff]
        %v1529 = vld [vmem:[#allocation7 + $0x1a0] sm:$0xff]
        %v1530 = vld [vmem:[#allocation7 + $0x1a8] sm:$0xff]
        %v1531 = vld [vmem:[#allocation7 + $0x1b0] sm:$0xff]
        %v1532 = vld [vmem:[#allocation7 + $0x1b8] sm:$0xff]
        %v1533 = vld [vmem:[#allocation7 + $0x1c0] sm:$0xff]
        %v1534 = vld [vmem:[#allocation7 + $0x1c8] sm:$0xff]
        %v1535 = vld [vmem:[#allocation7 + $0x1d0] sm:$0xff]
        %v1536 = vld [vmem:[#allocation7 + $0x1d8] sm:$0xff]
        %v1537 = vld [vmem:[#allocation7 + $0x1e0] sm:$0xff]
        %v1538 = vld [vmem:[#allocation7 + $0x1e8] sm:$0xff]
        %v1539 = vld [vmem:[#allocation7 + $0x1f0] sm:$0xff]
        %v1540 = vld [vmem:[#allocation7 + $0x1f8] sm:$0xff]
        %v1541 = vld [vmem:[#allocation9] sm:$0xf]
        %v1543 = vperm.slane %v1541, 0
        %v1544 = vperm.slane %v1541, 1
        %v1545 = vperm.slane %v1541, 2
        %v1546 = vperm.slane %v1541, 3
        %v1615 = vunpack.c.l.b16 %v1477
        %v1616 = vunpack.c.h.b16 %v1477
        %v1617 = vunpack.c.l.b16 %v1478
        %v1618 = vunpack.c.h.b16 %v1478
        %v1619 = vunpack.c.l.b16 %v1479
        %v1620 = vunpack.c.h.b16 %v1479
        %v1621 = vunpack.c.l.b16 %v1480
        %v1622 = vunpack.c.h.b16 %v1480
        %v1623 = vunpack.c.l.b16 %v1481
        %v1624 = vunpack.c.h.b16 %v1481
        %v1625 = vunpack.c.l.b16 %v1482
        %v1626 = vunpack.c.h.b16 %v1482
        %v1627 = vunpack.c.l.b16 %v1483
        %v1628 = vunpack.c.h.b16 %v1483
        %v1629 = vunpack.c.l.b16 %v1484
        %v1630 = vunpack.c.h.b16 %v1484
        %v1631 = vunpack.c.l.b16 %v1485
        %v1632 = vunpack.c.h.b16 %v1485
        %v1633 = vunpack.c.l.b16 %v1486
        %v1634 = vunpack.c.h.b16 %v1486
        %v1635 = vunpack.c.l.b16 %v1487
        %v1636 = vunpack.c.h.b16 %v1487
        %v1637 = vunpack.c.l.b16 %v1488
        %v1638 = vunpack.c.h.b16 %v1488
        %v1639 = vunpack.c.l.b16 %v1489
        %v1640 = vunpack.c.h.b16 %v1489
        %v1641 = vunpack.c.l.b16 %v1490
        %v1642 = vunpack.c.h.b16 %v1490
        %v1643 = vunpack.c.l.b16 %v1491
        %v1644 = vunpack.c.h.b16 %v1491
        %v1645 = vunpack.c.l.b16 %v1492
        %v1646 = vunpack.c.h.b16 %v1492
        %v1647 = vunpack.c.l.b16 %v1493
        %v1648 = vunpack.c.h.b16 %v1493
        %v1649 = vunpack.c.l.b16 %v1494
        %v1650 = vunpack.c.h.b16 %v1494
        %v1651 = vunpack.c.l.b16 %v1495
        %v1652 = vunpack.c.h.b16 %v1495
        %v1653 = vunpack.c.l.b16 %v1496
        %v1654 = vunpack.c.h.b16 %v1496
        %v1655 = vunpack.c.l.b16 %v1497
        %v1656 = vunpack.c.h.b16 %v1497
        %v1657 = vunpack.c.l.b16 %v1498
        %v1658 = vunpack.c.h.b16 %v1498
        %v1659 = vunpack.c.l.b16 %v1499
        %v1660 = vunpack.c.h.b16 %v1499
        %v1661 = vunpack.c.l.b16 %v1500
        %v1662 = vunpack.c.h.b16 %v1500
        %v1663 = vunpack.c.l.b16 %v1501
        %v1664 = vunpack.c.h.b16 %v1501
        %v1665 = vunpack.c.l.b16 %v1502
        %v1666 = vunpack.c.h.b16 %v1502
        %v1667 = vunpack.c.l.b16 %v1503
        %v1668 = vunpack.c.h.b16 %v1503
        %v1669 = vunpack.c.l.b16 %v1504
        %v1670 = vunpack.c.h.b16 %v1504
        %v1671 = vunpack.c.l.b16 %v1505
        %v1672 = vunpack.c.h.b16 %v1505
        %v1673 = vunpack.c.l.b16 %v1506
        %v1674 = vunpack.c.h.b16 %v1506
        %v1675 = vunpack.c.l.b16 %v1507
        %v1676 = vunpack.c.h.b16 %v1507
        %v1677 = vunpack.c.l.b16 %v1508
        %v1678 = vunpack.c.h.b16 %v1508
        %v1679 = vunpack.c.l.b16 %v1509
        %v1680 = vunpack.c.h.b16 %v1509
        %v1681 = vunpack.c.l.b16 %v1510
        %v1682 = vunpack.c.h.b16 %v1510
        %v1683 = vunpack.c.l.b16 %v1511
        %v1684 = vunpack.c.h.b16 %v1511
        %v1685 = vunpack.c.l.b16 %v1512
        %v1686 = vunpack.c.h.b16 %v1512
        %v1687 = vunpack.c.l.b16 %v1513
        %v1688 = vunpack.c.h.b16 %v1513
        %v1689 = vunpack.c.l.b16 %v1514
        %v1690 = vunpack.c.h.b16 %v1514
        %v1691 = vunpack.c.l.b16 %v1515
        %v1692 = vunpack.c.h.b16 %v1515
        %v1693 = vunpack.c.l.b16 %v1516
        %v1694 = vunpack.c.h.b16 %v1516
        %v1695 = vunpack.c.l.b16 %v1517
        %v1696 = vunpack.c.h.b16 %v1517
        %v1697 = vunpack.c.l.b16 %v1518
        %v1698 = vunpack.c.h.b16 %v1518
        %v1699 = vunpack.c.l.b16 %v1519
        %v1700 = vunpack.c.h.b16 %v1519
        %v1701 = vunpack.c.l.b16 %v1520
        %v1702 = vunpack.c.h.b16 %v1520
        %v1703 = vunpack.c.l.b16 %v1521
        %v1704 = vunpack.c.h.b16 %v1521
        %v1705 = vunpack.c.l.b16 %v1522
        %v1706 = vunpack.c.h.b16 %v1522
        %v1707 = vunpack.c.l.b16 %v1523
        %v1708 = vunpack.c.h.b16 %v1523
        %v1709 = vunpack.c.l.b16 %v1524
        %v1710 = vunpack.c.h.b16 %v1524
        %v1711 = vunpack.c.l.b16 %v1525
        %v1712 = vunpack.c.h.b16 %v1525
        %v1713 = vunpack.c.l.b16 %v1526
        %v1714 = vunpack.c.h.b16 %v1526
        %v1715 = vunpack.c.l.b16 %v1527
        %v1716 = vunpack.c.h.b16 %v1527
        %v1717 = vunpack.c.l.b16 %v1528
        %v1718 = vunpack.c.h.b16 %v1528
        %v1719 = vunpack.c.l.b16 %v1529
        %v1720 = vunpack.c.h.b16 %v1529
        %v1721 = vunpack.c.l.b16 %v1530
        %v1722 = vunpack.c.h.b16 %v1530
        %v1723 = vunpack.c.l.b16 %v1531
        %v1724 = vunpack.c.h.b16 %v1531
        %v1725 = vunpack.c.l.b16 %v1532
        %v1726 = vunpack.c.h.b16 %v1532
        %v1727 = vunpack.c.l.b16 %v1533
        %v1728 = vunpack.c.h.b16 %v1533
        %v1729 = vunpack.c.l.b16 %v1534
        %v1730 = vunpack.c.h.b16 %v1534
        %v1731 = vunpack.c.l.b16 %v1535
        %v1732 = vunpack.c.h.b16 %v1535
        %v1733 = vunpack.c.l.b16 %v1536
        %v1734 = vunpack.c.h.b16 %v1536
        %v1735 = vunpack.c.l.b16 %v1537
        %v1736 = vunpack.c.h.b16 %v1537
        %v1737 = vunpack.c.l.b16 %v1538
        %v1738 = vunpack.c.h.b16 %v1538
        %v1739 = vunpack.c.l.b16 %v1539
        %v1740 = vunpack.c.h.b16 %v1539
        %v1741 = vunpack.c.l.b16 %v1540
        %v1742 = vunpack.c.h.b16 %v1540
        %v1743 = vpack.c.b16 %v1619, %v1615
        %v1744 = vpack.c.b16 %v1620, %v1616
        %v1745 = vpack.c.b16 %v1621, %v1617
        %v1746 = vpack.c.b16 %v1622, %v1618
        %v1747 = vpack.c.b16 %v1627, %v1623
        %v1748 = vpack.c.b16 %v1628, %v1624
        %v1749 = vpack.c.b16 %v1629, %v1625
        %v1750 = vpack.c.b16 %v1630, %v1626
        %v1751 = vpack.c.b16 %v1635, %v1631
        %v1752 = vpack.c.b16 %v1636, %v1632
        %v1753 = vpack.c.b16 %v1637, %v1633
        %v1754 = vpack.c.b16 %v1638, %v1634
        %v1755 = vpack.c.b16 %v1643, %v1639
        %v1756 = vpack.c.b16 %v1644, %v1640
        %v1757 = vpack.c.b16 %v1645, %v1641
        %v1758 = vpack.c.b16 %v1646, %v1642
        %v1759 = vpack.c.b16 %v1651, %v1647
        %v1760 = vpack.c.b16 %v1652, %v1648
        %v1761 = vpack.c.b16 %v1653, %v1649
        %v1762 = vpack.c.b16 %v1654, %v1650
        %v1763 = vpack.c.b16 %v1659, %v1655
        %v1764 = vpack.c.b16 %v1660, %v1656
        %v1765 = vpack.c.b16 %v1661, %v1657
        %v1766 = vpack.c.b16 %v1662, %v1658
        %v1767 = vpack.c.b16 %v1667, %v1663
        %v1768 = vpack.c.b16 %v1668, %v1664
        %v1769 = vpack.c.b16 %v1669, %v1665
        %v1770 = vpack.c.b16 %v1670, %v1666
        %v1771 = vpack.c.b16 %v1675, %v1671
        %v1772 = vpack.c.b16 %v1676, %v1672
        %v1773 = vpack.c.b16 %v1677, %v1673
        %v1774 = vpack.c.b16 %v1678, %v1674
        %v1775 = vpack.c.b16 %v1683, %v1679
        %v1776 = vpack.c.b16 %v1684, %v1680
        %v1777 = vpack.c.b16 %v1685, %v1681
        %v1778 = vpack.c.b16 %v1686, %v1682
        %v1779 = vpack.c.b16 %v1691, %v1687
        %v1780 = vpack.c.b16 %v1692, %v1688
        %v1781 = vpack.c.b16 %v1693, %v1689
        %v1782 = vpack.c.b16 %v1694, %v1690
        %v1783 = vpack.c.b16 %v1699, %v1695
        %v1784 = vpack.c.b16 %v1700, %v1696
        %v1785 = vpack.c.b16 %v1701, %v1697
        %v1786 = vpack.c.b16 %v1702, %v1698
        %v1787 = vpack.c.b16 %v1707, %v1703
        %v1788 = vpack.c.b16 %v1708, %v1704
        %v1789 = vpack.c.b16 %v1709, %v1705
        %v1790 = vpack.c.b16 %v1710, %v1706
        %v1791 = vpack.c.b16 %v1715, %v1711
        %v1792 = vpack.c.b16 %v1716, %v1712
        %v1793 = vpack.c.b16 %v1717, %v1713
        %v1794 = vpack.c.b16 %v1718, %v1714
        %v1795 = vpack.c.b16 %v1723, %v1719
        %v1796 = vpack.c.b16 %v1724, %v1720
        %v1797 = vpack.c.b16 %v1725, %v1721
        %v1798 = vpack.c.b16 %v1726, %v1722
        %v1799 = vpack.c.b16 %v1731, %v1727
        %v1800 = vpack.c.b16 %v1732, %v1728
        %v1801 = vpack.c.b16 %v1733, %v1729
        %v1802 = vpack.c.b16 %v1734, %v1730
        %v1803 = vpack.c.b16 %v1739, %v1735
        %v1804 = vpack.c.b16 %v1740, %v1736
        %v1805 = vpack.c.b16 %v1741, %v1737
        %v1806 = vpack.c.b16 %v1742, %v1738
        %1871 = vmatpush.bf16.msra.mxu0 %v1771
        %1872 = vmatpush.bf16.msra.mxu0 %v1767
        %1873 = vmatpush.bf16.msra.mxu0 %v1763
        %1874 = vmatpush.bf16.msra.mxu0 %v1759
        %1875 = vmatpush.bf16.msra.mxu0 %v1755
        %1876 = vmatpush.bf16.msra.mxu0 %v1751
        %1877 = vmatpush.bf16.msra.mxu0 %v1747
        %1878 = vmatpush.bf16.msra.mxu0 %v1743
        %1879 = vmatmul.bf16.gmra.mxu0 %v1473
        %v1880 = vpop.f32.mrf.mxu0
        %v1881 = vadd.f32 %v1543, %v1880
        %v1882 = vpop.f32.mrf.mxu0
        %1883 = vdwg.mxu0
        %1884 = vmatpush.bf16.msra.mxu0 %v1803
        %1885 = vmatpush.bf16.msra.mxu0 %v1799
        %1886 = vmatpush.bf16.msra.mxu0 %v1795
        %1887 = vmatpush.bf16.msra.mxu0 %v1791
        %1888 = vmatpush.bf16.msra.mxu0 %v1787
        %1889 = vmatpush.bf16.msra.mxu0 %v1783
        %1890 = vmatpush.bf16.msra.mxu0 %v1779
        %1891 = vmatpush.bf16.msra.mxu0 %v1775
        %1892 = vmatmul.bf16.gmra.mxu0 %v1476
        %v1893 = vpop.f32.mrf.mxu0
        %v1894 = vadd.f32 %v1881, %v1893
        %v1895 = vpop.f32.mrf.mxu0
        %1896 = vdwg.mxu0
        %1897 = vmatpush.bf16.msra.mxu0 %v1772
        %1898 = vmatpush.bf16.msra.mxu0 %v1768
        %1899 = vmatpush.bf16.msra.mxu0 %v1764
        %1900 = vmatpush.bf16.msra.mxu0 %v1760
        %1901 = vmatpush.bf16.msra.mxu0 %v1756
        %1902 = vmatpush.bf16.msra.mxu0 %v1752
        %1903 = vmatpush.bf16.msra.mxu0 %v1748
        %1904 = vmatpush.bf16.msra.mxu0 %v1744
        %1905 = vmatmul.bf16.gmra.mxu0 %v1473
        %v1906 = vpop.f32.mrf.mxu0
        %v1907 = vadd.f32 %v1544, %v1906
        %v1908 = vpop.f32.mrf.mxu0
        %1909 = vdwg.mxu0
        %1910 = vmatpush.bf16.msra.mxu0 %v1804
        %1911 = vmatpush.bf16.msra.mxu0 %v1800
        %1912 = vmatpush.bf16.msra.mxu0 %v1796
        %1913 = vmatpush.bf16.msra.mxu0 %v1792
        %1914 = vmatpush.bf16.msra.mxu0 %v1788
        %1915 = vmatpush.bf16.msra.mxu0 %v1784
        %1916 = vmatpush.bf16.msra.mxu0 %v1780
        %1917 = vmatpush.bf16.msra.mxu0 %v1776
        %1918 = vmatmul.bf16.gmra.mxu0 %v1476
        %v1919 = vpop.f32.mrf.mxu0
        %v1920 = vadd.f32 %v1907, %v1919
        %v1921 = vpop.f32.mrf.mxu0
        %1922 = vdwg.mxu0
        %1923 = vmatpush.bf16.msra.mxu0 %v1773
        %1924 = vmatpush.bf16.msra.mxu0 %v1769
        %1925 = vmatpush.bf16.msra.mxu0 %v1765
        %1926 = vmatpush.bf16.msra.mxu0 %v1761
        %1927 = vmatpush.bf16.msra.mxu0 %v1757
        %1928 = vmatpush.bf16.msra.mxu0 %v1753
        %1929 = vmatpush.bf16.msra.mxu0 %v1749
        %1930 = vmatpush.bf16.msra.mxu0 %v1745
        %1931 = vmatmul.bf16.gmra.mxu0 %v1473
        %v1932 = vpop.f32.mrf.mxu0
        %v1933 = vadd.f32 %v1545, %v1932
        %v1934 = vpop.f32.mrf.mxu0
        %1935 = vdwg.mxu0
        %1936 = vmatpush.bf16.msra.mxu0 %v1805
        %1937 = vmatpush.bf16.msra.mxu0 %v1801
        %1938 = vmatpush.bf16.msra.mxu0 %v1797
        %1939 = vmatpush.bf16.msra.mxu0 %v1793
        %1940 = vmatpush.bf16.msra.mxu0 %v1789
        %1941 = vmatpush.bf16.msra.mxu0 %v1785
        %1942 = vmatpush.bf16.msra.mxu0 %v1781
        %1943 = vmatpush.bf16.msra.mxu0 %v1777
        %1944 = vmatmul.bf16.gmra.mxu0 %v1476
        %v1945 = vpop.f32.mrf.mxu0
        %v1946 = vadd.f32 %v1933, %v1945
        %v1947 = vpop.f32.mrf.mxu0
        %1948 = vdwg.mxu0
        %1949 = vmatpush.bf16.msra.mxu0 %v1774
        %1950 = vmatpush.bf16.msra.mxu0 %v1770
        %1951 = vmatpush.bf16.msra.mxu0 %v1766
        %1952 = vmatpush.bf16.msra.mxu0 %v1762
        %1953 = vmatpush.bf16.msra.mxu0 %v1758
        %1954 = vmatpush.bf16.msra.mxu0 %v1754
        %1955 = vmatpush.bf16.msra.mxu0 %v1750
        %1956 = vmatpush.bf16.msra.mxu0 %v1746
        %1957 = vmatmul.bf16.gmra.mxu0 %v1473
        %v1958 = vpop.f32.mrf.mxu0
        %v1959 = vadd.f32 %v1546, %v1958
        %v1960 = vpop.f32.mrf.mxu0
        %1961 = vdwg.mxu0
        %1962 = vmatpush.bf16.msra.mxu0 %v1806
        %1963 = vmatpush.bf16.msra.mxu0 %v1802
        %1964 = vmatpush.bf16.msra.mxu0 %v1798
        %1965 = vmatpush.bf16.msra.mxu0 %v1794
        %1966 = vmatpush.bf16.msra.mxu0 %v1790
        %1967 = vmatpush.bf16.msra.mxu0 %v1786
        %1968 = vmatpush.bf16.msra.mxu0 %v1782
        %1969 = vmatpush.bf16.msra.mxu0 %v1778
        %1970 = vmatmul.bf16.gmra.mxu0 %v1476
        %v1971 = vpop.f32.mrf.mxu0
        %v1972 = vadd.f32 %v1959, %v1971
        %v1973 = vpop.f32.mrf.mxu0
        %1974 = vdwg.mxu0
        %v1975 = vxor.u32 %v1894, 2147483648
        %v1976 = vmul.f32 %v1975, 1.442695
        %v1977 = vpow.pop %v1976
        %v1978 = vadd.f32 %v1977, 1.0
        %v1979 = vrcp.pop %v1978
        %v1980 = vmul.f32 %v1978, %v1979
        %v1981 = vsub.f32 1.0, %v1980
        %v1982 = vmul.f32 %v1979, %v1981
        %v1983 = vadd.f32 %v1979, %v1982
        %vm1984 = vweird.f32 %v1978
        %vm1985 = vweird.f32 %v1979
        %vm1986 = vmor %vm1984, %vm1985
        %v1987 = vsel %vm1986, %v1979, %v1983
        %v1988 = vand.u32 2147483647, %v1978
        %vm1989 = vcmp.eq.f32.partialorder %v1988, 8.507059e+37
        %v1990 = vand.u32 %v1978, 2147483648
        %v1991 = vor.u32 1.1754944e-38, %v1990
        %v1992 = vsel %vm1989, %v1991, %v1987
        %v1993 = vmul.f32 1.0, %v1992
        %v1994 = vxor.u32 %v1920, 2147483648
        %v1995 = vmul.f32 %v1994, 1.442695
        %v1996 = vpow.pop %v1995
        %v1997 = vadd.f32 %v1996, 1.0
        %v1998 = vrcp.pop %v1997
        %v1999 = vmul.f32 %v1997, %v1998
        %v2000 = vsub.f32 1.0, %v1999
        %v2001 = vmul.f32 %v1998, %v2000
        %v2002 = vadd.f32 %v1998, %v2001
        %vm2003 = vweird.f32 %v1997
        %vm2004 = vweird.f32 %v1998
        %vm2005 = vmor %vm2003, %vm2004
        %v2006 = vsel %vm2005, %v1998, %v2002
        %v2007 = vand.u32 2147483647, %v1997
        %vm2008 = vcmp.eq.f32.partialorder %v2007, 8.507059e+37
        %v2009 = vand.u32 %v1997, 2147483648
        %v2010 = vor.u32 1.1754944e-38, %v2009
        %v2011 = vsel %vm2008, %v2010, %v2006
        %v2012 = vmul.f32 1.0, %v2011
        %v2013 = vtanh.pop %v1946
        %v2014 = vxor.u32 %v1972, 2147483648
        %v2015 = vmul.f32 %v2014, 1.442695
        %v2016 = vpow.pop %v2015
        %v2017 = vadd.f32 %v2016, 1.0
        %v2018 = vrcp.pop %v2017
        %v2019 = vmul.f32 %v2017, %v2018
        %v2020 = vsub.f32 1.0, %v2019
        %v2021 = vmul.f32 %v2018, %v2020
        %v2022 = vadd.f32 %v2018, %v2021
        %vm2023 = vweird.f32 %v2017
        %vm2024 = vweird.f32 %v2018
        %vm2025 = vmor %vm2023, %vm2024
        %v2026 = vsel %vm2025, %v2018, %v2022
        %v2027 = vand.u32 2147483647, %v2017
        %vm2028 = vcmp.eq.f32.partialorder %v2027, 8.507059e+37
        %v2029 = vand.u32 %v2017, 2147483648
        %v2030 = vor.u32 1.1754944e-38, %v2029
        %v2031 = vsel %vm2028, %v2030, %v2026
        %v2032 = vmul.f32 1.0, %v2031
        %v2033 = vmul.f32 %v2012, %v1475
        %v2034 = vmul.f32 %v1993, %v2013
        %v2035 = vadd.f32 %v2033, %v2034
        %v2036 = vtanh.pop %v2035
        %v2037 = vmul.f32 %v2032, %v2036
        %2038 = vst [vmem:[#allocation2] sm:$0xff] %v2037
        %2039 = vst [vmem:[#allocation3] sm:$0xff] %v2035
        %v2040 = vld [vmem:[%s901] sm:$0xff]
        %v2041 = vld [vmem:[%s903] sm:$0xff]
        %v2042 = vpack.c.bf16 %v2037, %v2037
        %v2043 = vpack.c.bf16 %v2040, %v2040
        %v2044 = vld [vmem:[#allocation10] sm:$0xff]
        %v2045 = vld [vmem:[#allocation10 + $0x8] sm:$0xff]
        %v2046 = vld [vmem:[#allocation10 + $0x10] sm:$0xff]
        %v2047 = vld [vmem:[#allocation10 + $0x18] sm:$0xff]
        %v2048 = vld [vmem:[#allocation10 + $0x20] sm:$0xff]
        %v2049 = vld [vmem:[#allocation10 + $0x28] sm:$0xff]
        %v2050 = vld [vmem:[#allocation10 + $0x30] sm:$0xff]
        %v2051 = vld [vmem:[#allocation10 + $0x38] sm:$0xff]
        %v2052 = vld [vmem:[#allocation10 + $0x40] sm:$0xff]
        %v2053 = vld [vmem:[#allocation10 + $0x48] sm:$0xff]
        %v2054 = vld [vmem:[#allocation10 + $0x50] sm:$0xff]
        %v2055 = vld [vmem:[#allocation10 + $0x58] sm:$0xff]
        %v2056 = vld [vmem:[#allocation10 + $0x60] sm:$0xff]
        %v2057 = vld [vmem:[#allocation10 + $0x68] sm:$0xff]
        %v2058 = vld [vmem:[#allocation10 + $0x70] sm:$0xff]
        %v2059 = vld [vmem:[#allocation10 + $0x78] sm:$0xff]
        %v2060 = vld [vmem:[#allocation10 + $0x80] sm:$0xff]
        %v2061 = vld [vmem:[#allocation10 + $0x88] sm:$0xff]
        %v2062 = vld [vmem:[#allocation10 + $0x90] sm:$0xff]
        %v2063 = vld [vmem:[#allocation10 + $0x98] sm:$0xff]
        %v2064 = vld [vmem:[#allocation10 + $0xa0] sm:$0xff]
        %v2065 = vld [vmem:[#allocation10 + $0xa8] sm:$0xff]
        %v2066 = vld [vmem:[#allocation10 + $0xb0] sm:$0xff]
        %v2067 = vld [vmem:[#allocation10 + $0xb8] sm:$0xff]
        %v2068 = vld [vmem:[#allocation10 + $0xc0] sm:$0xff]
        %v2069 = vld [vmem:[#allocation10 + $0xc8] sm:$0xff]
        %v2070 = vld [vmem:[#allocation10 + $0xd0] sm:$0xff]
        %v2071 = vld [vmem:[#allocation10 + $0xd8] sm:$0xff]
        %v2072 = vld [vmem:[#allocation10 + $0xe0] sm:$0xff]
        %v2073 = vld [vmem:[#allocation10 + $0xe8] sm:$0xff]
        %v2074 = vld [vmem:[#allocation10 + $0xf0] sm:$0xff]
        %v2075 = vld [vmem:[#allocation10 + $0xf8] sm:$0xff]
        %v2076 = vld [vmem:[#allocation10 + $0x100] sm:$0xff]
        %v2077 = vld [vmem:[#allocation10 + $0x108] sm:$0xff]
        %v2078 = vld [vmem:[#allocation10 + $0x110] sm:$0xff]
        %v2079 = vld [vmem:[#allocation10 + $0x118] sm:$0xff]
        %v2080 = vld [vmem:[#allocation10 + $0x120] sm:$0xff]
        %v2081 = vld [vmem:[#allocation10 + $0x128] sm:$0xff]
        %v2082 = vld [vmem:[#allocation10 + $0x130] sm:$0xff]
        %v2083 = vld [vmem:[#allocation10 + $0x138] sm:$0xff]
        %v2084 = vld [vmem:[#allocation10 + $0x140] sm:$0xff]
        %v2085 = vld [vmem:[#allocation10 + $0x148] sm:$0xff]
        %v2086 = vld [vmem:[#allocation10 + $0x150] sm:$0xff]
        %v2087 = vld [vmem:[#allocation10 + $0x158] sm:$0xff]
        %v2088 = vld [vmem:[#allocation10 + $0x160] sm:$0xff]
        %v2089 = vld [vmem:[#allocation10 + $0x168] sm:$0xff]
        %v2090 = vld [vmem:[#allocation10 + $0x170] sm:$0xff]
        %v2091 = vld [vmem:[#allocation10 + $0x178] sm:$0xff]
        %v2092 = vld [vmem:[#allocation10 + $0x180] sm:$0xff]
        %v2093 = vld [vmem:[#allocation10 + $0x188] sm:$0xff]
        %v2094 = vld [vmem:[#allocation10 + $0x190] sm:$0xff]
        %v2095 = vld [vmem:[#allocation10 + $0x198] sm:$0xff]
        %v2096 = vld [vmem:[#allocation10 + $0x1a0] sm:$0xff]
        %v2097 = vld [vmem:[#allocation10 + $0x1a8] sm:$0xff]
        %v2098 = vld [vmem:[#allocation10 + $0x1b0] sm:$0xff]
        %v2099 = vld [vmem:[#allocation10 + $0x1b8] sm:$0xff]
        %v2100 = vld [vmem:[#allocation10 + $0x1c0] sm:$0xff]
        %v2101 = vld [vmem:[#allocation10 + $0x1c8] sm:$0xff]
        %v2102 = vld [vmem:[#allocation10 + $0x1d0] sm:$0xff]
        %v2103 = vld [vmem:[#allocation10 + $0x1d8] sm:$0xff]
        %v2104 = vld [vmem:[#allocation10 + $0x1e0] sm:$0xff]
        %v2105 = vld [vmem:[#allocation10 + $0x1e8] sm:$0xff]
        %v2106 = vld [vmem:[#allocation10 + $0x1f0] sm:$0xff]
        %v2107 = vld [vmem:[#allocation10 + $0x1f8] sm:$0xff]
        %v2108 = vld [vmem:[#allocation12] sm:$0xf]
        %v2110 = vperm.slane %v2108, 0
        %v2111 = vperm.slane %v2108, 1
        %v2112 = vperm.slane %v2108, 2
        %v2113 = vperm.slane %v2108, 3
        %v2182 = vunpack.c.l.b16 %v2044
        %v2183 = vunpack.c.h.b16 %v2044
        %v2184 = vunpack.c.l.b16 %v2045
        %v2185 = vunpack.c.h.b16 %v2045
        %v2186 = vunpack.c.l.b16 %v2046
        %v2187 = vunpack.c.h.b16 %v2046
        %v2188 = vunpack.c.l.b16 %v2047
        %v2189 = vunpack.c.h.b16 %v2047
        %v2190 = vunpack.c.l.b16 %v2048
        %v2191 = vunpack.c.h.b16 %v2048
        %v2192 = vunpack.c.l.b16 %v2049
        %v2193 = vunpack.c.h.b16 %v2049
        %v2194 = vunpack.c.l.b16 %v2050
        %v2195 = vunpack.c.h.b16 %v2050
        %v2196 = vunpack.c.l.b16 %v2051
        %v2197 = vunpack.c.h.b16 %v2051
        %v2198 = vunpack.c.l.b16 %v2052
        %v2199 = vunpack.c.h.b16 %v2052
        %v2200 = vunpack.c.l.b16 %v2053
        %v2201 = vunpack.c.h.b16 %v2053
        %v2202 = vunpack.c.l.b16 %v2054
        %v2203 = vunpack.c.h.b16 %v2054
        %v2204 = vunpack.c.l.b16 %v2055
        %v2205 = vunpack.c.h.b16 %v2055
        %v2206 = vunpack.c.l.b16 %v2056
        %v2207 = vunpack.c.h.b16 %v2056
        %v2208 = vunpack.c.l.b16 %v2057
        %v2209 = vunpack.c.h.b16 %v2057
        %v2210 = vunpack.c.l.b16 %v2058
        %v2211 = vunpack.c.h.b16 %v2058
        %v2212 = vunpack.c.l.b16 %v2059
        %v2213 = vunpack.c.h.b16 %v2059
        %v2214 = vunpack.c.l.b16 %v2060
        %v2215 = vunpack.c.h.b16 %v2060
        %v2216 = vunpack.c.l.b16 %v2061
        %v2217 = vunpack.c.h.b16 %v2061
        %v2218 = vunpack.c.l.b16 %v2062
        %v2219 = vunpack.c.h.b16 %v2062
        %v2220 = vunpack.c.l.b16 %v2063
        %v2221 = vunpack.c.h.b16 %v2063
        %v2222 = vunpack.c.l.b16 %v2064
        %v2223 = vunpack.c.h.b16 %v2064
        %v2224 = vunpack.c.l.b16 %v2065
        %v2225 = vunpack.c.h.b16 %v2065
        %v2226 = vunpack.c.l.b16 %v2066
        %v2227 = vunpack.c.h.b16 %v2066
        %v2228 = vunpack.c.l.b16 %v2067
        %v2229 = vunpack.c.h.b16 %v2067
        %v2230 = vunpack.c.l.b16 %v2068
        %v2231 = vunpack.c.h.b16 %v2068
        %v2232 = vunpack.c.l.b16 %v2069
        %v2233 = vunpack.c.h.b16 %v2069
        %v2234 = vunpack.c.l.b16 %v2070
        %v2235 = vunpack.c.h.b16 %v2070
        %v2236 = vunpack.c.l.b16 %v2071
        %v2237 = vunpack.c.h.b16 %v2071
        %v2238 = vunpack.c.l.b16 %v2072
        %v2239 = vunpack.c.h.b16 %v2072
        %v2240 = vunpack.c.l.b16 %v2073
        %v2241 = vunpack.c.h.b16 %v2073
        %v2242 = vunpack.c.l.b16 %v2074
        %v2243 = vunpack.c.h.b16 %v2074
        %v2244 = vunpack.c.l.b16 %v2075
        %v2245 = vunpack.c.h.b16 %v2075
        %v2246 = vunpack.c.l.b16 %v2076
        %v2247 = vunpack.c.h.b16 %v2076
        %v2248 = vunpack.c.l.b16 %v2077
        %v2249 = vunpack.c.h.b16 %v2077
        %v2250 = vunpack.c.l.b16 %v2078
        %v2251 = vunpack.c.h.b16 %v2078
        %v2252 = vunpack.c.l.b16 %v2079
        %v2253 = vunpack.c.h.b16 %v2079
        %v2254 = vunpack.c.l.b16 %v2080
        %v2255 = vunpack.c.h.b16 %v2080
        %v2256 = vunpack.c.l.b16 %v2081
        %v2257 = vunpack.c.h.b16 %v2081
        %v2258 = vunpack.c.l.b16 %v2082
        %v2259 = vunpack.c.h.b16 %v2082
        %v2260 = vunpack.c.l.b16 %v2083
        %v2261 = vunpack.c.h.b16 %v2083
        %v2262 = vunpack.c.l.b16 %v2084
        %v2263 = vunpack.c.h.b16 %v2084
        %v2264 = vunpack.c.l.b16 %v2085
        %v2265 = vunpack.c.h.b16 %v2085
        %v2266 = vunpack.c.l.b16 %v2086
        %v2267 = vunpack.c.h.b16 %v2086
        %v2268 = vunpack.c.l.b16 %v2087
        %v2269 = vunpack.c.h.b16 %v2087
        %v2270 = vunpack.c.l.b16 %v2088
        %v2271 = vunpack.c.h.b16 %v2088
        %v2272 = vunpack.c.l.b16 %v2089
        %v2273 = vunpack.c.h.b16 %v2089
        %v2274 = vunpack.c.l.b16 %v2090
        %v2275 = vunpack.c.h.b16 %v2090
        %v2276 = vunpack.c.l.b16 %v2091
        %v2277 = vunpack.c.h.b16 %v2091
        %v2278 = vunpack.c.l.b16 %v2092
        %v2279 = vunpack.c.h.b16 %v2092
        %v2280 = vunpack.c.l.b16 %v2093
        %v2281 = vunpack.c.h.b16 %v2093
        %v2282 = vunpack.c.l.b16 %v2094
        %v2283 = vunpack.c.h.b16 %v2094
        %v2284 = vunpack.c.l.b16 %v2095
        %v2285 = vunpack.c.h.b16 %v2095
        %v2286 = vunpack.c.l.b16 %v2096
        %v2287 = vunpack.c.h.b16 %v2096
        %v2288 = vunpack.c.l.b16 %v2097
        %v2289 = vunpack.c.h.b16 %v2097
        %v2290 = vunpack.c.l.b16 %v2098
        %v2291 = vunpack.c.h.b16 %v2098
        %v2292 = vunpack.c.l.b16 %v2099
        %v2293 = vunpack.c.h.b16 %v2099
        %v2294 = vunpack.c.l.b16 %v2100
        %v2295 = vunpack.c.h.b16 %v2100
        %v2296 = vunpack.c.l.b16 %v2101
        %v2297 = vunpack.c.h.b16 %v2101
        %v2298 = vunpack.c.l.b16 %v2102
        %v2299 = vunpack.c.h.b16 %v2102
        %v2300 = vunpack.c.l.b16 %v2103
        %v2301 = vunpack.c.h.b16 %v2103
        %v2302 = vunpack.c.l.b16 %v2104
        %v2303 = vunpack.c.h.b16 %v2104
        %v2304 = vunpack.c.l.b16 %v2105
        %v2305 = vunpack.c.h.b16 %v2105
        %v2306 = vunpack.c.l.b16 %v2106
        %v2307 = vunpack.c.h.b16 %v2106
        %v2308 = vunpack.c.l.b16 %v2107
        %v2309 = vunpack.c.h.b16 %v2107
        %v2310 = vpack.c.b16 %v2186, %v2182
        %v2311 = vpack.c.b16 %v2187, %v2183
        %v2312 = vpack.c.b16 %v2188, %v2184
        %v2313 = vpack.c.b16 %v2189, %v2185
        %v2314 = vpack.c.b16 %v2194, %v2190
        %v2315 = vpack.c.b16 %v2195, %v2191
        %v2316 = vpack.c.b16 %v2196, %v2192
        %v2317 = vpack.c.b16 %v2197, %v2193
        %v2318 = vpack.c.b16 %v2202, %v2198
        %v2319 = vpack.c.b16 %v2203, %v2199
        %v2320 = vpack.c.b16 %v2204, %v2200
        %v2321 = vpack.c.b16 %v2205, %v2201
        %v2322 = vpack.c.b16 %v2210, %v2206
        %v2323 = vpack.c.b16 %v2211, %v2207
        %v2324 = vpack.c.b16 %v2212, %v2208
        %v2325 = vpack.c.b16 %v2213, %v2209
        %v2326 = vpack.c.b16 %v2218, %v2214
        %v2327 = vpack.c.b16 %v2219, %v2215
        %v2328 = vpack.c.b16 %v2220, %v2216
        %v2329 = vpack.c.b16 %v2221, %v2217
        %v2330 = vpack.c.b16 %v2226, %v2222
        %v2331 = vpack.c.b16 %v2227, %v2223
        %v2332 = vpack.c.b16 %v2228, %v2224
        %v2333 = vpack.c.b16 %v2229, %v2225
        %v2334 = vpack.c.b16 %v2234, %v2230
        %v2335 = vpack.c.b16 %v2235, %v2231
        %v2336 = vpack.c.b16 %v2236, %v2232
        %v2337 = vpack.c.b16 %v2237, %v2233
        %v2338 = vpack.c.b16 %v2242, %v2238
        %v2339 = vpack.c.b16 %v2243, %v2239
        %v2340 = vpack.c.b16 %v2244, %v2240
        %v2341 = vpack.c.b16 %v2245, %v2241
        %v2342 = vpack.c.b16 %v2250, %v2246
        %v2343 = vpack.c.b16 %v2251, %v2247
        %v2344 = vpack.c.b16 %v2252, %v2248
        %v2345 = vpack.c.b16 %v2253, %v2249
        %v2346 = vpack.c.b16 %v2258, %v2254
        %v2347 = vpack.c.b16 %v2259, %v2255
        %v2348 = vpack.c.b16 %v2260, %v2256
        %v2349 = vpack.c.b16 %v2261, %v2257
        %v2350 = vpack.c.b16 %v2266, %v2262
        %v2351 = vpack.c.b16 %v2267, %v2263
        %v2352 = vpack.c.b16 %v2268, %v2264
        %v2353 = vpack.c.b16 %v2269, %v2265
        %v2354 = vpack.c.b16 %v2274, %v2270
        %v2355 = vpack.c.b16 %v2275, %v2271
        %v2356 = vpack.c.b16 %v2276, %v2272
        %v2357 = vpack.c.b16 %v2277, %v2273
        %v2358 = vpack.c.b16 %v2282, %v2278
        %v2359 = vpack.c.b16 %v2283, %v2279
        %v2360 = vpack.c.b16 %v2284, %v2280
        %v2361 = vpack.c.b16 %v2285, %v2281
        %v2362 = vpack.c.b16 %v2290, %v2286
        %v2363 = vpack.c.b16 %v2291, %v2287
        %v2364 = vpack.c.b16 %v2292, %v2288
        %v2365 = vpack.c.b16 %v2293, %v2289
        %v2366 = vpack.c.b16 %v2298, %v2294
        %v2367 = vpack.c.b16 %v2299, %v2295
        %v2368 = vpack.c.b16 %v2300, %v2296
        %v2369 = vpack.c.b16 %v2301, %v2297
        %v2370 = vpack.c.b16 %v2306, %v2302
        %v2371 = vpack.c.b16 %v2307, %v2303
        %v2372 = vpack.c.b16 %v2308, %v2304
        %v2373 = vpack.c.b16 %v2309, %v2305
        %2438 = vmatpush.bf16.msra.mxu0 %v2338
        %2439 = vmatpush.bf16.msra.mxu0 %v2334
        %2440 = vmatpush.bf16.msra.mxu0 %v2330
        %2441 = vmatpush.bf16.msra.mxu0 %v2326
        %2442 = vmatpush.bf16.msra.mxu0 %v2322
        %2443 = vmatpush.bf16.msra.mxu0 %v2318
        %2444 = vmatpush.bf16.msra.mxu0 %v2314
        %2445 = vmatpush.bf16.msra.mxu0 %v2310
        %2446 = vmatmul.bf16.gmra.mxu0 %v2042
        %v2447 = vpop.f32.mrf.mxu0
        %v2448 = vadd.f32 %v2110, %v2447
        %v2449 = vpop.f32.mrf.mxu0
        %2450 = vdwg.mxu0
        %2451 = vmatpush.bf16.msra.mxu0 %v2370
        %2452 = vmatpush.bf16.msra.mxu0 %v2366
        %2453 = vmatpush.bf16.msra.mxu0 %v2362
        %2454 = vmatpush.bf16.msra.mxu0 %v2358
        %2455 = vmatpush.bf16.msra.mxu0 %v2354
        %2456 = vmatpush.bf16.msra.mxu0 %v2350
        %2457 = vmatpush.bf16.msra.mxu0 %v2346
        %2458 = vmatpush.bf16.msra.mxu0 %v2342
        %2459 = vmatmul.bf16.gmra.mxu0 %v2043
        %v2460 = vpop.f32.mrf.mxu0
        %v2461 = vadd.f32 %v2448, %v2460
        %v2462 = vpop.f32.mrf.mxu0
        %2463 = vdwg.mxu0
        %2464 = vmatpush.bf16.msra.mxu0 %v2339
        %2465 = vmatpush.bf16.msra.mxu0 %v2335
        %2466 = vmatpush.bf16.msra.mxu0 %v2331
        %2467 = vmatpush.bf16.msra.mxu0 %v2327
        %2468 = vmatpush.bf16.msra.mxu0 %v2323
        %2469 = vmatpush.bf16.msra.mxu0 %v2319
        %2470 = vmatpush.bf16.msra.mxu0 %v2315
        %2471 = vmatpush.bf16.msra.mxu0 %v2311
        %2472 = vmatmul.bf16.gmra.mxu0 %v2042
        %v2473 = vpop.f32.mrf.mxu0
        %v2474 = vadd.f32 %v2111, %v2473
        %v2475 = vpop.f32.mrf.mxu0
        %2476 = vdwg.mxu0
        %2477 = vmatpush.bf16.msra.mxu0 %v2371
        %2478 = vmatpush.bf16.msra.mxu0 %v2367
        %2479 = vmatpush.bf16.msra.mxu0 %v2363
        %2480 = vmatpush.bf16.msra.mxu0 %v2359
        %2481 = vmatpush.bf16.msra.mxu0 %v2355
        %2482 = vmatpush.bf16.msra.mxu0 %v2351
        %2483 = vmatpush.bf16.msra.mxu0 %v2347
        %2484 = vmatpush.bf16.msra.mxu0 %v2343
        %2485 = vmatmul.bf16.gmra.mxu0 %v2043
        %v2486 = vpop.f32.mrf.mxu0
        %v2487 = vadd.f32 %v2474, %v2486
        %v2488 = vpop.f32.mrf.mxu0
        %2489 = vdwg.mxu0
        %2490 = vmatpush.bf16.msra.mxu0 %v2340
        %2491 = vmatpush.bf16.msra.mxu0 %v2336
        %2492 = vmatpush.bf16.msra.mxu0 %v2332
        %2493 = vmatpush.bf16.msra.mxu0 %v2328
        %2494 = vmatpush.bf16.msra.mxu0 %v2324
        %2495 = vmatpush.bf16.msra.mxu0 %v2320
        %2496 = vmatpush.bf16.msra.mxu0 %v2316
        %2497 = vmatpush.bf16.msra.mxu0 %v2312
        %2498 = vmatmul.bf16.gmra.mxu0 %v2042
        %v2499 = vpop.f32.mrf.mxu0
        %v2500 = vadd.f32 %v2112, %v2499
        %v2501 = vpop.f32.mrf.mxu0
        %2502 = vdwg.mxu0
        %2503 = vmatpush.bf16.msra.mxu0 %v2372
        %2504 = vmatpush.bf16.msra.mxu0 %v2368
        %2505 = vmatpush.bf16.msra.mxu0 %v2364
        %2506 = vmatpush.bf16.msra.mxu0 %v2360
        %2507 = vmatpush.bf16.msra.mxu0 %v2356
        %2508 = vmatpush.bf16.msra.mxu0 %v2352
        %2509 = vmatpush.bf16.msra.mxu0 %v2348
        %2510 = vmatpush.bf16.msra.mxu0 %v2344
        %2511 = vmatmul.bf16.gmra.mxu0 %v2043
        %v2512 = vpop.f32.mrf.mxu0
        %v2513 = vadd.f32 %v2500, %v2512
        %v2514 = vpop.f32.mrf.mxu0
        %2515 = vdwg.mxu0
        %2516 = vmatpush.bf16.msra.mxu0 %v2341
        %2517 = vmatpush.bf16.msra.mxu0 %v2337
        %2518 = vmatpush.bf16.msra.mxu0 %v2333
        %2519 = vmatpush.bf16.msra.mxu0 %v2329
        %2520 = vmatpush.bf16.msra.mxu0 %v2325
        %2521 = vmatpush.bf16.msra.mxu0 %v2321
        %2522 = vmatpush.bf16.msra.mxu0 %v2317
        %2523 = vmatpush.bf16.msra.mxu0 %v2313
        %2524 = vmatmul.bf16.gmra.mxu0 %v2042
        %v2525 = vpop.f32.mrf.mxu0
        %v2526 = vadd.f32 %v2113, %v2525
        %v2527 = vpop.f32.mrf.mxu0
        %2528 = vdwg.mxu0
        %2529 = vmatpush.bf16.msra.mxu0 %v2373
        %2530 = vmatpush.bf16.msra.mxu0 %v2369
        %2531 = vmatpush.bf16.msra.mxu0 %v2365
        %2532 = vmatpush.bf16.msra.mxu0 %v2361
        %2533 = vmatpush.bf16.msra.mxu0 %v2357
        %2534 = vmatpush.bf16.msra.mxu0 %v2353
        %2535 = vmatpush.bf16.msra.mxu0 %v2349
        %2536 = vmatpush.bf16.msra.mxu0 %v2345
        %2537 = vmatmul.bf16.gmra.mxu0 %v2043
        %v2538 = vpop.f32.mrf.mxu0
        %v2539 = vadd.f32 %v2526, %v2538
        %v2540 = vpop.f32.mrf.mxu0
        %2541 = vdwg.mxu0
        %v2542 = vxor.u32 %v2461, 2147483648
        %v2543 = vmul.f32 %v2542, 1.442695
        %v2544 = vpow.pop %v2543
        %v2545 = vadd.f32 %v2544, 1.0
        %v2546 = vrcp.pop %v2545
        %v2547 = vmul.f32 %v2545, %v2546
        %v2548 = vsub.f32 1.0, %v2547
        %v2549 = vmul.f32 %v2546, %v2548
        %v2550 = vadd.f32 %v2546, %v2549
        %vm2551 = vweird.f32 %v2545
        %vm2552 = vweird.f32 %v2546
        %vm2553 = vmor %vm2551, %vm2552
        %v2554 = vsel %vm2553, %v2546, %v2550
        %v2555 = vand.u32 2147483647, %v2545
        %vm2556 = vcmp.eq.f32.partialorder %v2555, 8.507059e+37
        %v2557 = vand.u32 %v2545, 2147483648
        %v2558 = vor.u32 1.1754944e-38, %v2557
        %v2559 = vsel %vm2556, %v2558, %v2554
        %v2560 = vmul.f32 1.0, %v2559
        %v2561 = vxor.u32 %v2487, 2147483648
        %v2562 = vmul.f32 %v2561, 1.442695
        %v2563 = vpow.pop %v2562
        %v2564 = vadd.f32 %v2563, 1.0
        %v2565 = vrcp.pop %v2564
        %v2566 = vmul.f32 %v2564, %v2565
        %v2567 = vsub.f32 1.0, %v2566
        %v2568 = vmul.f32 %v2565, %v2567
        %v2569 = vadd.f32 %v2565, %v2568
        %vm2570 = vweird.f32 %v2564
        %vm2571 = vweird.f32 %v2565
        %vm2572 = vmor %vm2570, %vm2571
        %v2573 = vsel %vm2572, %v2565, %v2569
        %v2574 = vand.u32 2147483647, %v2564
        %vm2575 = vcmp.eq.f32.partialorder %v2574, 8.507059e+37
        %v2576 = vand.u32 %v2564, 2147483648
        %v2577 = vor.u32 1.1754944e-38, %v2576
        %v2578 = vsel %vm2575, %v2577, %v2573
        %v2579 = vmul.f32 1.0, %v2578
        %v2580 = vtanh.pop %v2513
        %v2581 = vxor.u32 %v2539, 2147483648
        %v2582 = vmul.f32 %v2581, 1.442695
        %v2583 = vpow.pop %v2582
        %v2584 = vadd.f32 %v2583, 1.0
        %v2585 = vrcp.pop %v2584
        %v2586 = vmul.f32 %v2584, %v2585
        %v2587 = vsub.f32 1.0, %v2586
        %v2588 = vmul.f32 %v2585, %v2587
        %v2589 = vadd.f32 %v2585, %v2588
        %vm2590 = vweird.f32 %v2584
        %vm2591 = vweird.f32 %v2585
        %vm2592 = vmor %vm2590, %vm2591
        %v2593 = vsel %vm2592, %v2585, %v2589
        %v2594 = vand.u32 2147483647, %v2584
        %vm2595 = vcmp.eq.f32.partialorder %v2594, 8.507059e+37
        %v2596 = vand.u32 %v2584, 2147483648
        %v2597 = vor.u32 1.1754944e-38, %v2596
        %v2598 = vsel %vm2595, %v2597, %v2593
        %v2599 = vmul.f32 1.0, %v2598
        %v2600 = vmul.f32 %v2579, %v2041
        %v2601 = vmul.f32 %v2560, %v2580
        %v2602 = vadd.f32 %v2600, %v2601
        %v2603 = vtanh.pop %v2602
        %v2604 = vmul.f32 %v2599, %v2603
        %2605 = vst [vmem:[%s901] sm:$0xff] %v2604
        %2606 = vst [vmem:[%s903] sm:$0xff] %v2602
        %v2607 = vpack.c.bf16 %v2604, %v2604
        %s2608 = scalar_lea.vmem %s323, 4 [#allocation13]
        %2609 = vst [vmem:[%s2608] sm:$0xf] %v2607
        %s2610 = scalar_lea.vmem %s276, 8 [#allocation4]
        %v2611 = vld [vmem:[%s2610] sm:$0xf]
        %v2612 = vld [vmem:[#allocation2] sm:$0xff]
        %v2613 = vld [vmem:[#allocation3] sm:$0xff]
        %v2614 = vpack.c.bf16 %v2612, %v2612
        %v2615 = vld [vmem:[#allocation7] sm:$0xff]
        %v2616 = vld [vmem:[#allocation7 + $0x8] sm:$0xff]
        %v2617 = vld [vmem:[#allocation7 + $0x10] sm:$0xff]
        %v2618 = vld [vmem:[#allocation7 + $0x18] sm:$0xff]
        %v2619 = vld [vmem:[#allocation7 + $0x20] sm:$0xff]
        %v2620 = vld [vmem:[#allocation7 + $0x28] sm:$0xff]
        %v2621 = vld [vmem:[#allocation7 + $0x30] sm:$0xff]
        %v2622 = vld [vmem:[#allocation7 + $0x38] sm:$0xff]
        %v2623 = vld [vmem:[#allocation7 + $0x40] sm:$0xff]
        %v2624 = vld [vmem:[#allocation7 + $0x48] sm:$0xff]
        %v2625 = vld [vmem:[#allocation7 + $0x50] sm:$0xff]
        %v2626 = vld [vmem:[#allocation7 + $0x58] sm:$0xff]
        %v2627 = vld [vmem:[#allocation7 + $0x60] sm:$0xff]
        %v2628 = vld [vmem:[#allocation7 + $0x68] sm:$0xff]
        %v2629 = vld [vmem:[#allocation7 + $0x70] sm:$0xff]
        %v2630 = vld [vmem:[#allocation7 + $0x78] sm:$0xff]
        %v2631 = vld [vmem:[#allocation7 + $0x80] sm:$0xff]
        %v2632 = vld [vmem:[#allocation7 + $0x88] sm:$0xff]
        %v2633 = vld [vmem:[#allocation7 + $0x90] sm:$0xff]
        %v2634 = vld [vmem:[#allocation7 + $0x98] sm:$0xff]
        %v2635 = vld [vmem:[#allocation7 + $0xa0] sm:$0xff]
        %v2636 = vld [vmem:[#allocation7 + $0xa8] sm:$0xff]
        %v2637 = vld [vmem:[#allocation7 + $0xb0] sm:$0xff]
        %v2638 = vld [vmem:[#allocation7 + $0xb8] sm:$0xff]
        %v2639 = vld [vmem:[#allocation7 + $0xc0] sm:$0xff]
        %v2640 = vld [vmem:[#allocation7 + $0xc8] sm:$0xff]
        %v2641 = vld [vmem:[#allocation7 + $0xd0] sm:$0xff]
        %v2642 = vld [vmem:[#allocation7 + $0xd8] sm:$0xff]
        %v2643 = vld [vmem:[#allocation7 + $0xe0] sm:$0xff]
        %v2644 = vld [vmem:[#allocation7 + $0xe8] sm:$0xff]
        %v2645 = vld [vmem:[#allocation7 + $0xf0] sm:$0xff]
        %v2646 = vld [vmem:[#allocation7 + $0xf8] sm:$0xff]
        %v2647 = vld [vmem:[#allocation7 + $0x100] sm:$0xff]
        %v2648 = vld [vmem:[#allocation7 + $0x108] sm:$0xff]
        %v2649 = vld [vmem:[#allocation7 + $0x110] sm:$0xff]
        %v2650 = vld [vmem:[#allocation7 + $0x118] sm:$0xff]
        %v2651 = vld [vmem:[#allocation7 + $0x120] sm:$0xff]
        %v2652 = vld [vmem:[#allocation7 + $0x128] sm:$0xff]
        %v2653 = vld [vmem:[#allocation7 + $0x130] sm:$0xff]
        %v2654 = vld [vmem:[#allocation7 + $0x138] sm:$0xff]
        %v2655 = vld [vmem:[#allocation7 + $0x140] sm:$0xff]
        %v2656 = vld [vmem:[#allocation7 + $0x148] sm:$0xff]
        %v2657 = vld [vmem:[#allocation7 + $0x150] sm:$0xff]
        %v2658 = vld [vmem:[#allocation7 + $0x158] sm:$0xff]
        %v2659 = vld [vmem:[#allocation7 + $0x160] sm:$0xff]
        %v2660 = vld [vmem:[#allocation7 + $0x168] sm:$0xff]
        %v2661 = vld [vmem:[#allocation7 + $0x170] sm:$0xff]
        %v2662 = vld [vmem:[#allocation7 + $0x178] sm:$0xff]
        %v2663 = vld [vmem:[#allocation7 + $0x180] sm:$0xff]
        %v2664 = vld [vmem:[#allocation7 + $0x188] sm:$0xff]
        %v2665 = vld [vmem:[#allocation7 + $0x190] sm:$0xff]
        %v2666 = vld [vmem:[#allocation7 + $0x198] sm:$0xff]
        %v2667 = vld [vmem:[#allocation7 + $0x1a0] sm:$0xff]
        %v2668 = vld [vmem:[#allocation7 + $0x1a8] sm:$0xff]
        %v2669 = vld [vmem:[#allocation7 + $0x1b0] sm:$0xff]
        %v2670 = vld [vmem:[#allocation7 + $0x1b8] sm:$0xff]
        %v2671 = vld [vmem:[#allocation7 + $0x1c0] sm:$0xff]
        %v2672 = vld [vmem:[#allocation7 + $0x1c8] sm:$0xff]
        %v2673 = vld [vmem:[#allocation7 + $0x1d0] sm:$0xff]
        %v2674 = vld [vmem:[#allocation7 + $0x1d8] sm:$0xff]
        %v2675 = vld [vmem:[#allocation7 + $0x1e0] sm:$0xff]
        %v2676 = vld [vmem:[#allocation7 + $0x1e8] sm:$0xff]
        %v2677 = vld [vmem:[#allocation7 + $0x1f0] sm:$0xff]
        %v2678 = vld [vmem:[#allocation7 + $0x1f8] sm:$0xff]
        %v2679 = vld [vmem:[#allocation9] sm:$0xf]
        %v2681 = vperm.slane %v2679, 0
        %v2682 = vperm.slane %v2679, 1
        %v2683 = vperm.slane %v2679, 2
        %v2684 = vperm.slane %v2679, 3
        %v2753 = vunpack.c.l.b16 %v2615
        %v2754 = vunpack.c.h.b16 %v2615
        %v2755 = vunpack.c.l.b16 %v2616
        %v2756 = vunpack.c.h.b16 %v2616
        %v2757 = vunpack.c.l.b16 %v2617
        %v2758 = vunpack.c.h.b16 %v2617
        %v2759 = vunpack.c.l.b16 %v2618
        %v2760 = vunpack.c.h.b16 %v2618
        %v2761 = vunpack.c.l.b16 %v2619
        %v2762 = vunpack.c.h.b16 %v2619
        %v2763 = vunpack.c.l.b16 %v2620
        %v2764 = vunpack.c.h.b16 %v2620
        %v2765 = vunpack.c.l.b16 %v2621
        %v2766 = vunpack.c.h.b16 %v2621
        %v2767 = vunpack.c.l.b16 %v2622
        %v2768 = vunpack.c.h.b16 %v2622
        %v2769 = vunpack.c.l.b16 %v2623
        %v2770 = vunpack.c.h.b16 %v2623
        %v2771 = vunpack.c.l.b16 %v2624
        %v2772 = vunpack.c.h.b16 %v2624
        %v2773 = vunpack.c.l.b16 %v2625
        %v2774 = vunpack.c.h.b16 %v2625
        %v2775 = vunpack.c.l.b16 %v2626
        %v2776 = vunpack.c.h.b16 %v2626
        %v2777 = vunpack.c.l.b16 %v2627
        %v2778 = vunpack.c.h.b16 %v2627
        %v2779 = vunpack.c.l.b16 %v2628
        %v2780 = vunpack.c.h.b16 %v2628
        %v2781 = vunpack.c.l.b16 %v2629
        %v2782 = vunpack.c.h.b16 %v2629
        %v2783 = vunpack.c.l.b16 %v2630
        %v2784 = vunpack.c.h.b16 %v2630
        %v2785 = vunpack.c.l.b16 %v2631
        %v2786 = vunpack.c.h.b16 %v2631
        %v2787 = vunpack.c.l.b16 %v2632
        %v2788 = vunpack.c.h.b16 %v2632
        %v2789 = vunpack.c.l.b16 %v2633
        %v2790 = vunpack.c.h.b16 %v2633
        %v2791 = vunpack.c.l.b16 %v2634
        %v2792 = vunpack.c.h.b16 %v2634
        %v2793 = vunpack.c.l.b16 %v2635
        %v2794 = vunpack.c.h.b16 %v2635
        %v2795 = vunpack.c.l.b16 %v2636
        %v2796 = vunpack.c.h.b16 %v2636
        %v2797 = vunpack.c.l.b16 %v2637
        %v2798 = vunpack.c.h.b16 %v2637
        %v2799 = vunpack.c.l.b16 %v2638
        %v2800 = vunpack.c.h.b16 %v2638
        %v2801 = vunpack.c.l.b16 %v2639
        %v2802 = vunpack.c.h.b16 %v2639
        %v2803 = vunpack.c.l.b16 %v2640
        %v2804 = vunpack.c.h.b16 %v2640
        %v2805 = vunpack.c.l.b16 %v2641
        %v2806 = vunpack.c.h.b16 %v2641
        %v2807 = vunpack.c.l.b16 %v2642
        %v2808 = vunpack.c.h.b16 %v2642
        %v2809 = vunpack.c.l.b16 %v2643
        %v2810 = vunpack.c.h.b16 %v2643
        %v2811 = vunpack.c.l.b16 %v2644
        %v2812 = vunpack.c.h.b16 %v2644
        %v2813 = vunpack.c.l.b16 %v2645
        %v2814 = vunpack.c.h.b16 %v2645
        %v2815 = vunpack.c.l.b16 %v2646
        %v2816 = vunpack.c.h.b16 %v2646
        %v2817 = vunpack.c.l.b16 %v2647
        %v2818 = vunpack.c.h.b16 %v2647
        %v2819 = vunpack.c.l.b16 %v2648
        %v2820 = vunpack.c.h.b16 %v2648
        %v2821 = vunpack.c.l.b16 %v2649
        %v2822 = vunpack.c.h.b16 %v2649
        %v2823 = vunpack.c.l.b16 %v2650
        %v2824 = vunpack.c.h.b16 %v2650
        %v2825 = vunpack.c.l.b16 %v2651
        %v2826 = vunpack.c.h.b16 %v2651
        %v2827 = vunpack.c.l.b16 %v2652
        %v2828 = vunpack.c.h.b16 %v2652
        %v2829 = vunpack.c.l.b16 %v2653
        %v2830 = vunpack.c.h.b16 %v2653
        %v2831 = vunpack.c.l.b16 %v2654
        %v2832 = vunpack.c.h.b16 %v2654
        %v2833 = vunpack.c.l.b16 %v2655
        %v2834 = vunpack.c.h.b16 %v2655
        %v2835 = vunpack.c.l.b16 %v2656
        %v2836 = vunpack.c.h.b16 %v2656
        %v2837 = vunpack.c.l.b16 %v2657
        %v2838 = vunpack.c.h.b16 %v2657
        %v2839 = vunpack.c.l.b16 %v2658
        %v2840 = vunpack.c.h.b16 %v2658
        %v2841 = vunpack.c.l.b16 %v2659
        %v2842 = vunpack.c.h.b16 %v2659
        %v2843 = vunpack.c.l.b16 %v2660
        %v2844 = vunpack.c.h.b16 %v2660
        %v2845 = vunpack.c.l.b16 %v2661
        %v2846 = vunpack.c.h.b16 %v2661
        %v2847 = vunpack.c.l.b16 %v2662
        %v2848 = vunpack.c.h.b16 %v2662
        %v2849 = vunpack.c.l.b16 %v2663
        %v2850 = vunpack.c.h.b16 %v2663
        %v2851 = vunpack.c.l.b16 %v2664
        %v2852 = vunpack.c.h.b16 %v2664
        %v2853 = vunpack.c.l.b16 %v2665
        %v2854 = vunpack.c.h.b16 %v2665
        %v2855 = vunpack.c.l.b16 %v2666
        %v2856 = vunpack.c.h.b16 %v2666
        %v2857 = vunpack.c.l.b16 %v2667
        %v2858 = vunpack.c.h.b16 %v2667
        %v2859 = vunpack.c.l.b16 %v2668
        %v2860 = vunpack.c.h.b16 %v2668
        %v2861 = vunpack.c.l.b16 %v2669
        %v2862 = vunpack.c.h.b16 %v2669
        %v2863 = vunpack.c.l.b16 %v2670
        %v2864 = vunpack.c.h.b16 %v2670
        %v2865 = vunpack.c.l.b16 %v2671
        %v2866 = vunpack.c.h.b16 %v2671
        %v2867 = vunpack.c.l.b16 %v2672
        %v2868 = vunpack.c.h.b16 %v2672
        %v2869 = vunpack.c.l.b16 %v2673
        %v2870 = vunpack.c.h.b16 %v2673
        %v2871 = vunpack.c.l.b16 %v2674
        %v2872 = vunpack.c.h.b16 %v2674
        %v2873 = vunpack.c.l.b16 %v2675
        %v2874 = vunpack.c.h.b16 %v2675
        %v2875 = vunpack.c.l.b16 %v2676
        %v2876 = vunpack.c.h.b16 %v2676
        %v2877 = vunpack.c.l.b16 %v2677
        %v2878 = vunpack.c.h.b16 %v2677
        %v2879 = vunpack.c.l.b16 %v2678
        %v2880 = vunpack.c.h.b16 %v2678
        %v2881 = vpack.c.b16 %v2757, %v2753
        %v2882 = vpack.c.b16 %v2758, %v2754
        %v2883 = vpack.c.b16 %v2759, %v2755
        %v2884 = vpack.c.b16 %v2760, %v2756
        %v2885 = vpack.c.b16 %v2765, %v2761
        %v2886 = vpack.c.b16 %v2766, %v2762
        %v2887 = vpack.c.b16 %v2767, %v2763
        %v2888 = vpack.c.b16 %v2768, %v2764
        %v2889 = vpack.c.b16 %v2773, %v2769
        %v2890 = vpack.c.b16 %v2774, %v2770
        %v2891 = vpack.c.b16 %v2775, %v2771
        %v2892 = vpack.c.b16 %v2776, %v2772
        %v2893 = vpack.c.b16 %v2781, %v2777
        %v2894 = vpack.c.b16 %v2782, %v2778
        %v2895 = vpack.c.b16 %v2783, %v2779
        %v2896 = vpack.c.b16 %v2784, %v2780
        %v2897 = vpack.c.b16 %v2789, %v2785
        %v2898 = vpack.c.b16 %v2790, %v2786
        %v2899 = vpack.c.b16 %v2791, %v2787
        %v2900 = vpack.c.b16 %v2792, %v2788
        %v2901 = vpack.c.b16 %v2797, %v2793
        %v2902 = vpack.c.b16 %v2798, %v2794
        %v2903 = vpack.c.b16 %v2799, %v2795
        %v2904 = vpack.c.b16 %v2800, %v2796
        %v2905 = vpack.c.b16 %v2805, %v2801
        %v2906 = vpack.c.b16 %v2806, %v2802
        %v2907 = vpack.c.b16 %v2807, %v2803
        %v2908 = vpack.c.b16 %v2808, %v2804
        %v2909 = vpack.c.b16 %v2813, %v2809
        %v2910 = vpack.c.b16 %v2814, %v2810
        %v2911 = vpack.c.b16 %v2815, %v2811
        %v2912 = vpack.c.b16 %v2816, %v2812
        %v2913 = vpack.c.b16 %v2821, %v2817
        %v2914 = vpack.c.b16 %v2822, %v2818
        %v2915 = vpack.c.b16 %v2823, %v2819
        %v2916 = vpack.c.b16 %v2824, %v2820
        %v2917 = vpack.c.b16 %v2829, %v2825
        %v2918 = vpack.c.b16 %v2830, %v2826
        %v2919 = vpack.c.b16 %v2831, %v2827
        %v2920 = vpack.c.b16 %v2832, %v2828
        %v2921 = vpack.c.b16 %v2837, %v2833
        %v2922 = vpack.c.b16 %v2838, %v2834
        %v2923 = vpack.c.b16 %v2839, %v2835
        %v2924 = vpack.c.b16 %v2840, %v2836
        %v2925 = vpack.c.b16 %v2845, %v2841
        %v2926 = vpack.c.b16 %v2846, %v2842
        %v2927 = vpack.c.b16 %v2847, %v2843
        %v2928 = vpack.c.b16 %v2848, %v2844
        %v2929 = vpack.c.b16 %v2853, %v2849
        %v2930 = vpack.c.b16 %v2854, %v2850
        %v2931 = vpack.c.b16 %v2855, %v2851
        %v2932 = vpack.c.b16 %v2856, %v2852
        %v2933 = vpack.c.b16 %v2861, %v2857
        %v2934 = vpack.c.b16 %v2862, %v2858
        %v2935 = vpack.c.b16 %v2863, %v2859
        %v2936 = vpack.c.b16 %v2864, %v2860
        %v2937 = vpack.c.b16 %v2869, %v2865
        %v2938 = vpack.c.b16 %v2870, %v2866
        %v2939 = vpack.c.b16 %v2871, %v2867
        %v2940 = vpack.c.b16 %v2872, %v2868
        %v2941 = vpack.c.b16 %v2877, %v2873
        %v2942 = vpack.c.b16 %v2878, %v2874
        %v2943 = vpack.c.b16 %v2879, %v2875
        %v2944 = vpack.c.b16 %v2880, %v2876
        %3009 = vmatpush.bf16.msra.mxu0 %v2909
        %3010 = vmatpush.bf16.msra.mxu0 %v2905
        %3011 = vmatpush.bf16.msra.mxu0 %v2901
        %3012 = vmatpush.bf16.msra.mxu0 %v2897
        %3013 = vmatpush.bf16.msra.mxu0 %v2893
        %3014 = vmatpush.bf16.msra.mxu0 %v2889
        %3015 = vmatpush.bf16.msra.mxu0 %v2885
        %3016 = vmatpush.bf16.msra.mxu0 %v2881
        %3017 = vmatmul.bf16.gmra.mxu0 %v2611
        %v3018 = vpop.f32.mrf.mxu0
        %v3019 = vadd.f32 %v2681, %v3018
        %v3020 = vpop.f32.mrf.mxu0
        %3021 = vdwg.mxu0
        %3022 = vmatpush.bf16.msra.mxu0 %v2941
        %3023 = vmatpush.bf16.msra.mxu0 %v2937
        %3024 = vmatpush.bf16.msra.mxu0 %v2933
        %3025 = vmatpush.bf16.msra.mxu0 %v2929
        %3026 = vmatpush.bf16.msra.mxu0 %v2925
        %3027 = vmatpush.bf16.msra.mxu0 %v2921
        %3028 = vmatpush.bf16.msra.mxu0 %v2917
        %3029 = vmatpush.bf16.msra.mxu0 %v2913
        %3030 = vmatmul.bf16.gmra.mxu0 %v2614
        %v3031 = vpop.f32.mrf.mxu0
        %v3032 = vadd.f32 %v3019, %v3031
        %v3033 = vpop.f32.mrf.mxu0
        %3034 = vdwg.mxu0
        %3035 = vmatpush.bf16.msra.mxu0 %v2910
        %3036 = vmatpush.bf16.msra.mxu0 %v2906
        %3037 = vmatpush.bf16.msra.mxu0 %v2902
        %3038 = vmatpush.bf16.msra.mxu0 %v2898
        %3039 = vmatpush.bf16.msra.mxu0 %v2894
        %3040 = vmatpush.bf16.msra.mxu0 %v2890
        %3041 = vmatpush.bf16.msra.mxu0 %v2886
        %3042 = vmatpush.bf16.msra.mxu0 %v2882
        %3043 = vmatmul.bf16.gmra.mxu0 %v2611
        %v3044 = vpop.f32.mrf.mxu0
        %v3045 = vadd.f32 %v2682, %v3044
        %v3046 = vpop.f32.mrf.mxu0
        %3047 = vdwg.mxu0
        %3048 = vmatpush.bf16.msra.mxu0 %v2942
        %3049 = vmatpush.bf16.msra.mxu0 %v2938
        %3050 = vmatpush.bf16.msra.mxu0 %v2934
        %3051 = vmatpush.bf16.msra.mxu0 %v2930
        %3052 = vmatpush.bf16.msra.mxu0 %v2926
        %3053 = vmatpush.bf16.msra.mxu0 %v2922
        %3054 = vmatpush.bf16.msra.mxu0 %v2918
        %3055 = vmatpush.bf16.msra.mxu0 %v2914
        %3056 = vmatmul.bf16.gmra.mxu0 %v2614
        %v3057 = vpop.f32.mrf.mxu0
        %v3058 = vadd.f32 %v3045, %v3057
        %v3059 = vpop.f32.mrf.mxu0
        %3060 = vdwg.mxu0
        %3061 = vmatpush.bf16.msra.mxu0 %v2911
        %3062 = vmatpush.bf16.msra.mxu0 %v2907
        %3063 = vmatpush.bf16.msra.mxu0 %v2903
        %3064 = vmatpush.bf16.msra.mxu0 %v2899
        %3065 = vmatpush.bf16.msra.mxu0 %v2895
        %3066 = vmatpush.bf16.msra.mxu0 %v2891
        %3067 = vmatpush.bf16.msra.mxu0 %v2887
        %3068 = vmatpush.bf16.msra.mxu0 %v2883
        %3069 = vmatmul.bf16.gmra.mxu0 %v2611
        %v3070 = vpop.f32.mrf.mxu0
        %v3071 = vadd.f32 %v2683, %v3070
        %v3072 = vpop.f32.mrf.mxu0
        %3073 = vdwg.mxu0
        %3074 = vmatpush.bf16.msra.mxu0 %v2943
        %3075 = vmatpush.bf16.msra.mxu0 %v2939
        %3076 = vmatpush.bf16.msra.mxu0 %v2935
        %3077 = vmatpush.bf16.msra.mxu0 %v2931
        %3078 = vmatpush.bf16.msra.mxu0 %v2927
        %3079 = vmatpush.bf16.msra.mxu0 %v2923
        %3080 = vmatpush.bf16.msra.mxu0 %v2919
        %3081 = vmatpush.bf16.msra.mxu0 %v2915
        %3082 = vmatmul.bf16.gmra.mxu0 %v2614
        %v3083 = vpop.f32.mrf.mxu0
        %v3084 = vadd.f32 %v3071, %v3083
        %v3085 = vpop.f32.mrf.mxu0
        %3086 = vdwg.mxu0
        %3087 = vmatpush.bf16.msra.mxu0 %v2912
        %3088 = vmatpush.bf16.msra.mxu0 %v2908
        %3089 = vmatpush.bf16.msra.mxu0 %v2904
        %3090 = vmatpush.bf16.msra.mxu0 %v2900
        %3091 = vmatpush.bf16.msra.mxu0 %v2896
        %3092 = vmatpush.bf16.msra.mxu0 %v2892
        %3093 = vmatpush.bf16.msra.mxu0 %v2888
        %3094 = vmatpush.bf16.msra.mxu0 %v2884
        %3095 = vmatmul.bf16.gmra.mxu0 %v2611
        %v3096 = vpop.f32.mrf.mxu0
        %v3097 = vadd.f32 %v2684, %v3096
        %v3098 = vpop.f32.mrf.mxu0
        %3099 = vdwg.mxu0
        %3100 = vmatpush.bf16.msra.mxu0 %v2944
        %3101 = vmatpush.bf16.msra.mxu0 %v2940
        %3102 = vmatpush.bf16.msra.mxu0 %v2936
        %3103 = vmatpush.bf16.msra.mxu0 %v2932
        %3104 = vmatpush.bf16.msra.mxu0 %v2928
        %3105 = vmatpush.bf16.msra.mxu0 %v2924
        %3106 = vmatpush.bf16.msra.mxu0 %v2920
        %3107 = vmatpush.bf16.msra.mxu0 %v2916
        %3108 = vmatmul.bf16.gmra.mxu0 %v2614
        %v3109 = vpop.f32.mrf.mxu0
        %v3110 = vadd.f32 %v3097, %v3109
        %v3111 = vpop.f32.mrf.mxu0
        %3112 = vdwg.mxu0
        %v3113 = vxor.u32 %v3032, 2147483648
        %v3114 = vmul.f32 %v3113, 1.442695
        %v3115 = vpow.pop %v3114
        %v3116 = vadd.f32 %v3115, 1.0
        %v3117 = vrcp.pop %v3116
        %v3118 = vmul.f32 %v3116, %v3117
        %v3119 = vsub.f32 1.0, %v3118
        %v3120 = vmul.f32 %v3117, %v3119
        %v3121 = vadd.f32 %v3117, %v3120
        %vm3122 = vweird.f32 %v3116
        %vm3123 = vweird.f32 %v3117
        %vm3124 = vmor %vm3122, %vm3123
        %v3125 = vsel %vm3124, %v3117, %v3121
        %v3126 = vand.u32 2147483647, %v3116
        %vm3127 = vcmp.eq.f32.partialorder %v3126, 8.507059e+37
        %v3128 = vand.u32 %v3116, 2147483648
        %v3129 = vor.u32 1.1754944e-38, %v3128
        %v3130 = vsel %vm3127, %v3129, %v3125
        %v3131 = vmul.f32 1.0, %v3130
        %v3132 = vxor.u32 %v3058, 2147483648
        %v3133 = vmul.f32 %v3132, 1.442695
        %v3134 = vpow.pop %v3133
        %v3135 = vadd.f32 %v3134, 1.0
        %v3136 = vrcp.pop %v3135
        %v3137 = vmul.f32 %v3135, %v3136
        %v3138 = vsub.f32 1.0, %v3137
        %v3139 = vmul.f32 %v3136, %v3138
        %v3140 = vadd.f32 %v3136, %v3139
        %vm3141 = vweird.f32 %v3135
        %vm3142 = vweird.f32 %v3136
        %vm3143 = vmor %vm3141, %vm3142
        %v3144 = vsel %vm3143, %v3136, %v3140
        %v3145 = vand.u32 2147483647, %v3135
        %vm3146 = vcmp.eq.f32.partialorder %v3145, 8.507059e+37
        %v3147 = vand.u32 %v3135, 2147483648
        %v3148 = vor.u32 1.1754944e-38, %v3147
        %v3149 = vsel %vm3146, %v3148, %v3144
        %v3150 = vmul.f32 1.0, %v3149
        %v3151 = vtanh.pop %v3084
        %v3152 = vxor.u32 %v3110, 2147483648
        %v3153 = vmul.f32 %v3152, 1.442695
        %v3154 = vpow.pop %v3153
        %v3155 = vadd.f32 %v3154, 1.0
        %v3156 = vrcp.pop %v3155
        %v3157 = vmul.f32 %v3155, %v3156
        %v3158 = vsub.f32 1.0, %v3157
        %v3159 = vmul.f32 %v3156, %v3158
        %v3160 = vadd.f32 %v3156, %v3159
        %vm3161 = vweird.f32 %v3155
        %vm3162 = vweird.f32 %v3156
        %vm3163 = vmor %vm3161, %vm3162
        %v3164 = vsel %vm3163, %v3156, %v3160
        %v3165 = vand.u32 2147483647, %v3155
        %vm3166 = vcmp.eq.f32.partialorder %v3165, 8.507059e+37
        %v3167 = vand.u32 %v3155, 2147483648
        %v3168 = vor.u32 1.1754944e-38, %v3167
        %v3169 = vsel %vm3166, %v3168, %v3164
        %v3170 = vmul.f32 1.0, %v3169
        %v3171 = vmul.f32 %v3150, %v2613
        %v3172 = vmul.f32 %v3131, %v3151
        %v3173 = vadd.f32 %v3171, %v3172
        %v3174 = vtanh.pop %v3173
        %v3175 = vmul.f32 %v3170, %v3174
        %3176 = vst [vmem:[#allocation2] sm:$0xff] %v3175
        %3177 = vst [vmem:[#allocation3] sm:$0xff] %v3173
        %v3178 = vld [vmem:[%s901] sm:$0xff]
        %v3179 = vld [vmem:[%s903] sm:$0xff]
        %v3180 = vpack.c.bf16 %v3175, %v3175
        %v3181 = vpack.c.bf16 %v3178, %v3178
        %v3182 = vld [vmem:[#allocation10] sm:$0xff]
        %v3183 = vld [vmem:[#allocation10 + $0x8] sm:$0xff]
        %v3184 = vld [vmem:[#allocation10 + $0x10] sm:$0xff]
        %v3185 = vld [vmem:[#allocation10 + $0x18] sm:$0xff]
        %v3186 = vld [vmem:[#allocation10 + $0x20] sm:$0xff]
        %v3187 = vld [vmem:[#allocation10 + $0x28] sm:$0xff]
        %v3188 = vld [vmem:[#allocation10 + $0x30] sm:$0xff]
        %v3189 = vld [vmem:[#allocation10 + $0x38] sm:$0xff]
        %v3190 = vld [vmem:[#allocation10 + $0x40] sm:$0xff]
        %v3191 = vld [vmem:[#allocation10 + $0x48] sm:$0xff]
        %v3192 = vld [vmem:[#allocation10 + $0x50] sm:$0xff]
        %v3193 = vld [vmem:[#allocation10 + $0x58] sm:$0xff]
        %v3194 = vld [vmem:[#allocation10 + $0x60] sm:$0xff]
        %v3195 = vld [vmem:[#allocation10 + $0x68] sm:$0xff]
        %v3196 = vld [vmem:[#allocation10 + $0x70] sm:$0xff]
        %v3197 = vld [vmem:[#allocation10 + $0x78] sm:$0xff]
        %v3198 = vld [vmem:[#allocation10 + $0x80] sm:$0xff]
        %v3199 = vld [vmem:[#allocation10 + $0x88] sm:$0xff]
        %v3200 = vld [vmem:[#allocation10 + $0x90] sm:$0xff]
        %v3201 = vld [vmem:[#allocation10 + $0x98] sm:$0xff]
        %v3202 = vld [vmem:[#allocation10 + $0xa0] sm:$0xff]
        %v3203 = vld [vmem:[#allocation10 + $0xa8] sm:$0xff]
        %v3204 = vld [vmem:[#allocation10 + $0xb0] sm:$0xff]
        %v3205 = vld [vmem:[#allocation10 + $0xb8] sm:$0xff]
        %v3206 = vld [vmem:[#allocation10 + $0xc0] sm:$0xff]
        %v3207 = vld [vmem:[#allocation10 + $0xc8] sm:$0xff]
        %v3208 = vld [vmem:[#allocation10 + $0xd0] sm:$0xff]
        %v3209 = vld [vmem:[#allocation10 + $0xd8] sm:$0xff]
        %v3210 = vld [vmem:[#allocation10 + $0xe0] sm:$0xff]
        %v3211 = vld [vmem:[#allocation10 + $0xe8] sm:$0xff]
        %v3212 = vld [vmem:[#allocation10 + $0xf0] sm:$0xff]
        %v3213 = vld [vmem:[#allocation10 + $0xf8] sm:$0xff]
        %v3214 = vld [vmem:[#allocation10 + $0x100] sm:$0xff]
        %v3215 = vld [vmem:[#allocation10 + $0x108] sm:$0xff]
        %v3216 = vld [vmem:[#allocation10 + $0x110] sm:$0xff]
        %v3217 = vld [vmem:[#allocation10 + $0x118] sm:$0xff]
        %v3218 = vld [vmem:[#allocation10 + $0x120] sm:$0xff]
        %v3219 = vld [vmem:[#allocation10 + $0x128] sm:$0xff]
        %v3220 = vld [vmem:[#allocation10 + $0x130] sm:$0xff]
        %v3221 = vld [vmem:[#allocation10 + $0x138] sm:$0xff]
        %v3222 = vld [vmem:[#allocation10 + $0x140] sm:$0xff]
        %v3223 = vld [vmem:[#allocation10 + $0x148] sm:$0xff]
        %v3224 = vld [vmem:[#allocation10 + $0x150] sm:$0xff]
        %v3225 = vld [vmem:[#allocation10 + $0x158] sm:$0xff]
        %v3226 = vld [vmem:[#allocation10 + $0x160] sm:$0xff]
        %v3227 = vld [vmem:[#allocation10 + $0x168] sm:$0xff]
        %v3228 = vld [vmem:[#allocation10 + $0x170] sm:$0xff]
        %v3229 = vld [vmem:[#allocation10 + $0x178] sm:$0xff]
        %v3230 = vld [vmem:[#allocation10 + $0x180] sm:$0xff]
        %v3231 = vld [vmem:[#allocation10 + $0x188] sm:$0xff]
        %v3232 = vld [vmem:[#allocation10 + $0x190] sm:$0xff]
        %v3233 = vld [vmem:[#allocation10 + $0x198] sm:$0xff]
        %v3234 = vld [vmem:[#allocation10 + $0x1a0] sm:$0xff]
        %v3235 = vld [vmem:[#allocation10 + $0x1a8] sm:$0xff]
        %v3236 = vld [vmem:[#allocation10 + $0x1b0] sm:$0xff]
        %v3237 = vld [vmem:[#allocation10 + $0x1b8] sm:$0xff]
        %v3238 = vld [vmem:[#allocation10 + $0x1c0] sm:$0xff]
        %v3239 = vld [vmem:[#allocation10 + $0x1c8] sm:$0xff]
        %v3240 = vld [vmem:[#allocation10 + $0x1d0] sm:$0xff]
        %v3241 = vld [vmem:[#allocation10 + $0x1d8] sm:$0xff]
        %v3242 = vld [vmem:[#allocation10 + $0x1e0] sm:$0xff]
        %v3243 = vld [vmem:[#allocation10 + $0x1e8] sm:$0xff]
        %v3244 = vld [vmem:[#allocation10 + $0x1f0] sm:$0xff]
        %v3245 = vld [vmem:[#allocation10 + $0x1f8] sm:$0xff]
        %v3246 = vld [vmem:[#allocation12] sm:$0xf]
        %v3248 = vperm.slane %v3246, 0
        %v3249 = vperm.slane %v3246, 1
        %v3250 = vperm.slane %v3246, 2
        %v3251 = vperm.slane %v3246, 3
        %v3320 = vunpack.c.l.b16 %v3182
        %v3321 = vunpack.c.h.b16 %v3182
        %v3322 = vunpack.c.l.b16 %v3183
        %v3323 = vunpack.c.h.b16 %v3183
        %v3324 = vunpack.c.l.b16 %v3184
        %v3325 = vunpack.c.h.b16 %v3184
        %v3326 = vunpack.c.l.b16 %v3185
        %v3327 = vunpack.c.h.b16 %v3185
        %v3328 = vunpack.c.l.b16 %v3186
        %v3329 = vunpack.c.h.b16 %v3186
        %v3330 = vunpack.c.l.b16 %v3187
        %v3331 = vunpack.c.h.b16 %v3187
        %v3332 = vunpack.c.l.b16 %v3188
        %v3333 = vunpack.c.h.b16 %v3188
        %v3334 = vunpack.c.l.b16 %v3189
        %v3335 = vunpack.c.h.b16 %v3189
        %v3336 = vunpack.c.l.b16 %v3190
        %v3337 = vunpack.c.h.b16 %v3190
        %v3338 = vunpack.c.l.b16 %v3191
        %v3339 = vunpack.c.h.b16 %v3191
        %v3340 = vunpack.c.l.b16 %v3192
        %v3341 = vunpack.c.h.b16 %v3192
        %v3342 = vunpack.c.l.b16 %v3193
        %v3343 = vunpack.c.h.b16 %v3193
        %v3344 = vunpack.c.l.b16 %v3194
        %v3345 = vunpack.c.h.b16 %v3194
        %v3346 = vunpack.c.l.b16 %v3195
        %v3347 = vunpack.c.h.b16 %v3195
        %v3348 = vunpack.c.l.b16 %v3196
        %v3349 = vunpack.c.h.b16 %v3196
        %v3350 = vunpack.c.l.b16 %v3197
        %v3351 = vunpack.c.h.b16 %v3197
        %v3352 = vunpack.c.l.b16 %v3198
        %v3353 = vunpack.c.h.b16 %v3198
        %v3354 = vunpack.c.l.b16 %v3199
        %v3355 = vunpack.c.h.b16 %v3199
        %v3356 = vunpack.c.l.b16 %v3200
        %v3357 = vunpack.c.h.b16 %v3200
        %v3358 = vunpack.c.l.b16 %v3201
        %v3359 = vunpack.c.h.b16 %v3201
        %v3360 = vunpack.c.l.b16 %v3202
        %v3361 = vunpack.c.h.b16 %v3202
        %v3362 = vunpack.c.l.b16 %v3203
        %v3363 = vunpack.c.h.b16 %v3203
        %v3364 = vunpack.c.l.b16 %v3204
        %v3365 = vunpack.c.h.b16 %v3204
        %v3366 = vunpack.c.l.b16 %v3205
        %v3367 = vunpack.c.h.b16 %v3205
        %v3368 = vunpack.c.l.b16 %v3206
        %v3369 = vunpack.c.h.b16 %v3206
        %v3370 = vunpack.c.l.b16 %v3207
        %v3371 = vunpack.c.h.b16 %v3207
        %v3372 = vunpack.c.l.b16 %v3208
        %v3373 = vunpack.c.h.b16 %v3208
        %v3374 = vunpack.c.l.b16 %v3209
        %v3375 = vunpack.c.h.b16 %v3209
        %v3376 = vunpack.c.l.b16 %v3210
        %v3377 = vunpack.c.h.b16 %v3210
        %v3378 = vunpack.c.l.b16 %v3211
        %v3379 = vunpack.c.h.b16 %v3211
        %v3380 = vunpack.c.l.b16 %v3212
        %v3381 = vunpack.c.h.b16 %v3212
        %v3382 = vunpack.c.l.b16 %v3213
        %v3383 = vunpack.c.h.b16 %v3213
        %v3384 = vunpack.c.l.b16 %v3214
        %v3385 = vunpack.c.h.b16 %v3214
        %v3386 = vunpack.c.l.b16 %v3215
        %v3387 = vunpack.c.h.b16 %v3215
        %v3388 = vunpack.c.l.b16 %v3216
        %v3389 = vunpack.c.h.b16 %v3216
        %v3390 = vunpack.c.l.b16 %v3217
        %v3391 = vunpack.c.h.b16 %v3217
        %v3392 = vunpack.c.l.b16 %v3218
        %v3393 = vunpack.c.h.b16 %v3218
        %v3394 = vunpack.c.l.b16 %v3219
        %v3395 = vunpack.c.h.b16 %v3219
        %v3396 = vunpack.c.l.b16 %v3220
        %v3397 = vunpack.c.h.b16 %v3220
        %v3398 = vunpack.c.l.b16 %v3221
        %v3399 = vunpack.c.h.b16 %v3221
        %v3400 = vunpack.c.l.b16 %v3222
        %v3401 = vunpack.c.h.b16 %v3222
        %v3402 = vunpack.c.l.b16 %v3223
        %v3403 = vunpack.c.h.b16 %v3223
        %v3404 = vunpack.c.l.b16 %v3224
        %v3405 = vunpack.c.h.b16 %v3224
        %v3406 = vunpack.c.l.b16 %v3225
        %v3407 = vunpack.c.h.b16 %v3225
        %v3408 = vunpack.c.l.b16 %v3226
        %v3409 = vunpack.c.h.b16 %v3226
        %v3410 = vunpack.c.l.b16 %v3227
        %v3411 = vunpack.c.h.b16 %v3227
        %v3412 = vunpack.c.l.b16 %v3228
        %v3413 = vunpack.c.h.b16 %v3228
        %v3414 = vunpack.c.l.b16 %v3229
        %v3415 = vunpack.c.h.b16 %v3229
        %v3416 = vunpack.c.l.b16 %v3230
        %v3417 = vunpack.c.h.b16 %v3230
        %v3418 = vunpack.c.l.b16 %v3231
        %v3419 = vunpack.c.h.b16 %v3231
        %v3420 = vunpack.c.l.b16 %v3232
        %v3421 = vunpack.c.h.b16 %v3232
        %v3422 = vunpack.c.l.b16 %v3233
        %v3423 = vunpack.c.h.b16 %v3233
        %v3424 = vunpack.c.l.b16 %v3234
        %v3425 = vunpack.c.h.b16 %v3234
        %v3426 = vunpack.c.l.b16 %v3235
        %v3427 = vunpack.c.h.b16 %v3235
        %v3428 = vunpack.c.l.b16 %v3236
        %v3429 = vunpack.c.h.b16 %v3236
        %v3430 = vunpack.c.l.b16 %v3237
        %v3431 = vunpack.c.h.b16 %v3237
        %v3432 = vunpack.c.l.b16 %v3238
        %v3433 = vunpack.c.h.b16 %v3238
        %v3434 = vunpack.c.l.b16 %v3239
        %v3435 = vunpack.c.h.b16 %v3239
        %v3436 = vunpack.c.l.b16 %v3240
        %v3437 = vunpack.c.h.b16 %v3240
        %v3438 = vunpack.c.l.b16 %v3241
        %v3439 = vunpack.c.h.b16 %v3241
        %v3440 = vunpack.c.l.b16 %v3242
        %v3441 = vunpack.c.h.b16 %v3242
        %v3442 = vunpack.c.l.b16 %v3243
        %v3443 = vunpack.c.h.b16 %v3243
        %v3444 = vunpack.c.l.b16 %v3244
        %v3445 = vunpack.c.h.b16 %v3244
        %v3446 = vunpack.c.l.b16 %v3245
        %v3447 = vunpack.c.h.b16 %v3245
        %v3448 = vpack.c.b16 %v3324, %v3320
        %v3449 = vpack.c.b16 %v3325, %v3321
        %v3450 = vpack.c.b16 %v3326, %v3322
        %v3451 = vpack.c.b16 %v3327, %v3323
        %v3452 = vpack.c.b16 %v3332, %v3328
        %v3453 = vpack.c.b16 %v3333, %v3329
        %v3454 = vpack.c.b16 %v3334, %v3330
        %v3455 = vpack.c.b16 %v3335, %v3331
        %v3456 = vpack.c.b16 %v3340, %v3336
        %v3457 = vpack.c.b16 %v3341, %v3337
        %v3458 = vpack.c.b16 %v3342, %v3338
        %v3459 = vpack.c.b16 %v3343, %v3339
        %v3460 = vpack.c.b16 %v3348, %v3344
        %v3461 = vpack.c.b16 %v3349, %v3345
        %v3462 = vpack.c.b16 %v3350, %v3346
        %v3463 = vpack.c.b16 %v3351, %v3347
        %v3464 = vpack.c.b16 %v3356, %v3352
        %v3465 = vpack.c.b16 %v3357, %v3353
        %v3466 = vpack.c.b16 %v3358, %v3354
        %v3467 = vpack.c.b16 %v3359, %v3355
        %v3468 = vpack.c.b16 %v3364, %v3360
        %v3469 = vpack.c.b16 %v3365, %v3361
        %v3470 = vpack.c.b16 %v3366, %v3362
        %v3471 = vpack.c.b16 %v3367, %v3363
        %v3472 = vpack.c.b16 %v3372, %v3368
        %v3473 = vpack.c.b16 %v3373, %v3369
        %v3474 = vpack.c.b16 %v3374, %v3370
        %v3475 = vpack.c.b16 %v3375, %v3371
        %v3476 = vpack.c.b16 %v3380, %v3376
        %v3477 = vpack.c.b16 %v3381, %v3377
        %v3478 = vpack.c.b16 %v3382, %v3378
        %v3479 = vpack.c.b16 %v3383, %v3379
        %v3480 = vpack.c.b16 %v3388, %v3384
        %v3481 = vpack.c.b16 %v3389, %v3385
        %v3482 = vpack.c.b16 %v3390, %v3386
        %v3483 = vpack.c.b16 %v3391, %v3387
        %v3484 = vpack.c.b16 %v3396, %v3392
        %v3485 = vpack.c.b16 %v3397, %v3393
        %v3486 = vpack.c.b16 %v3398, %v3394
        %v3487 = vpack.c.b16 %v3399, %v3395
        %v3488 = vpack.c.b16 %v3404, %v3400
        %v3489 = vpack.c.b16 %v3405, %v3401
        %v3490 = vpack.c.b16 %v3406, %v3402
        %v3491 = vpack.c.b16 %v3407, %v3403
        %v3492 = vpack.c.b16 %v3412, %v3408
        %v3493 = vpack.c.b16 %v3413, %v3409
        %v3494 = vpack.c.b16 %v3414, %v3410
        %v3495 = vpack.c.b16 %v3415, %v3411
        %v3496 = vpack.c.b16 %v3420, %v3416
        %v3497 = vpack.c.b16 %v3421, %v3417
        %v3498 = vpack.c.b16 %v3422, %v3418
        %v3499 = vpack.c.b16 %v3423, %v3419
        %v3500 = vpack.c.b16 %v3428, %v3424
        %v3501 = vpack.c.b16 %v3429, %v3425
        %v3502 = vpack.c.b16 %v3430, %v3426
        %v3503 = vpack.c.b16 %v3431, %v3427
        %v3504 = vpack.c.b16 %v3436, %v3432
        %v3505 = vpack.c.b16 %v3437, %v3433
        %v3506 = vpack.c.b16 %v3438, %v3434
        %v3507 = vpack.c.b16 %v3439, %v3435
        %v3508 = vpack.c.b16 %v3444, %v3440
        %v3509 = vpack.c.b16 %v3445, %v3441
        %v3510 = vpack.c.b16 %v3446, %v3442
        %v3511 = vpack.c.b16 %v3447, %v3443
        %3576 = vmatpush.bf16.msra.mxu0 %v3476
        %3577 = vmatpush.bf16.msra.mxu0 %v3472
        %3578 = vmatpush.bf16.msra.mxu0 %v3468
        %3579 = vmatpush.bf16.msra.mxu0 %v3464
        %3580 = vmatpush.bf16.msra.mxu0 %v3460
        %3581 = vmatpush.bf16.msra.mxu0 %v3456
        %3582 = vmatpush.bf16.msra.mxu0 %v3452
        %3583 = vmatpush.bf16.msra.mxu0 %v3448
        %3584 = vmatmul.bf16.gmra.mxu0 %v3180
        %v3585 = vpop.f32.mrf.mxu0
        %v3586 = vadd.f32 %v3248, %v3585
        %v3587 = vpop.f32.mrf.mxu0
        %3588 = vdwg.mxu0
        %3589 = vmatpush.bf16.msra.mxu0 %v3508
        %3590 = vmatpush.bf16.msra.mxu0 %v3504
        %3591 = vmatpush.bf16.msra.mxu0 %v3500
        %3592 = vmatpush.bf16.msra.mxu0 %v3496
        %3593 = vmatpush.bf16.msra.mxu0 %v3492
        %3594 = vmatpush.bf16.msra.mxu0 %v3488
        %3595 = vmatpush.bf16.msra.mxu0 %v3484
        %3596 = vmatpush.bf16.msra.mxu0 %v3480
        %3597 = vmatmul.bf16.gmra.mxu0 %v3181
        %v3598 = vpop.f32.mrf.mxu0
        %v3599 = vadd.f32 %v3586, %v3598
        %v3600 = vpop.f32.mrf.mxu0
        %3601 = vdwg.mxu0
        %3602 = vmatpush.bf16.msra.mxu0 %v3477
        %3603 = vmatpush.bf16.msra.mxu0 %v3473
        %3604 = vmatpush.bf16.msra.mxu0 %v3469
        %3605 = vmatpush.bf16.msra.mxu0 %v3465
        %3606 = vmatpush.bf16.msra.mxu0 %v3461
        %3607 = vmatpush.bf16.msra.mxu0 %v3457
        %3608 = vmatpush.bf16.msra.mxu0 %v3453
        %3609 = vmatpush.bf16.msra.mxu0 %v3449
        %3610 = vmatmul.bf16.gmra.mxu0 %v3180
        %v3611 = vpop.f32.mrf.mxu0
        %v3612 = vadd.f32 %v3249, %v3611
        %v3613 = vpop.f32.mrf.mxu0
        %3614 = vdwg.mxu0
        %3615 = vmatpush.bf16.msra.mxu0 %v3509
        %3616 = vmatpush.bf16.msra.mxu0 %v3505
        %3617 = vmatpush.bf16.msra.mxu0 %v3501
        %3618 = vmatpush.bf16.msra.mxu0 %v3497
        %3619 = vmatpush.bf16.msra.mxu0 %v3493
        %3620 = vmatpush.bf16.msra.mxu0 %v3489
        %3621 = vmatpush.bf16.msra.mxu0 %v3485
        %3622 = vmatpush.bf16.msra.mxu0 %v3481
        %3623 = vmatmul.bf16.gmra.mxu0 %v3181
        %v3624 = vpop.f32.mrf.mxu0
        %v3625 = vadd.f32 %v3612, %v3624
        %v3626 = vpop.f32.mrf.mxu0
        %3627 = vdwg.mxu0
        %3628 = vmatpush.bf16.msra.mxu0 %v3478
        %3629 = vmatpush.bf16.msra.mxu0 %v3474
        %3630 = vmatpush.bf16.msra.mxu0 %v3470
        %3631 = vmatpush.bf16.msra.mxu0 %v3466
        %3632 = vmatpush.bf16.msra.mxu0 %v3462
        %3633 = vmatpush.bf16.msra.mxu0 %v3458
        %3634 = vmatpush.bf16.msra.mxu0 %v3454
        %3635 = vmatpush.bf16.msra.mxu0 %v3450
        %3636 = vmatmul.bf16.gmra.mxu0 %v3180
        %v3637 = vpop.f32.mrf.mxu0
        %v3638 = vadd.f32 %v3250, %v3637
        %v3639 = vpop.f32.mrf.mxu0
        %3640 = vdwg.mxu0
        %3641 = vmatpush.bf16.msra.mxu0 %v3510
        %3642 = vmatpush.bf16.msra.mxu0 %v3506
        %3643 = vmatpush.bf16.msra.mxu0 %v3502
        %3644 = vmatpush.bf16.msra.mxu0 %v3498
        %3645 = vmatpush.bf16.msra.mxu0 %v3494
        %3646 = vmatpush.bf16.msra.mxu0 %v3490
        %3647 = vmatpush.bf16.msra.mxu0 %v3486
        %3648 = vmatpush.bf16.msra.mxu0 %v3482
        %3649 = vmatmul.bf16.gmra.mxu0 %v3181
        %v3650 = vpop.f32.mrf.mxu0
        %v3651 = vadd.f32 %v3638, %v3650
        %v3652 = vpop.f32.mrf.mxu0
        %3653 = vdwg.mxu0
        %3654 = vmatpush.bf16.msra.mxu0 %v3479
        %3655 = vmatpush.bf16.msra.mxu0 %v3475
        %3656 = vmatpush.bf16.msra.mxu0 %v3471
        %3657 = vmatpush.bf16.msra.mxu0 %v3467
        %3658 = vmatpush.bf16.msra.mxu0 %v3463
        %3659 = vmatpush.bf16.msra.mxu0 %v3459
        %3660 = vmatpush.bf16.msra.mxu0 %v3455
        %3661 = vmatpush.bf16.msra.mxu0 %v3451
        %3662 = vmatmul.bf16.gmra.mxu0 %v3180
        %v3663 = vpop.f32.mrf.mxu0
        %v3664 = vadd.f32 %v3251, %v3663
        %v3665 = vpop.f32.mrf.mxu0
        %3666 = vdwg.mxu0
        %3667 = vmatpush.bf16.msra.mxu0 %v3511
        %3668 = vmatpush.bf16.msra.mxu0 %v3507
        %3669 = vmatpush.bf16.msra.mxu0 %v3503
        %3670 = vmatpush.bf16.msra.mxu0 %v3499
        %3671 = vmatpush.bf16.msra.mxu0 %v3495
        %3672 = vmatpush.bf16.msra.mxu0 %v3491
        %3673 = vmatpush.bf16.msra.mxu0 %v3487
        %3674 = vmatpush.bf16.msra.mxu0 %v3483
        %3675 = vmatmul.bf16.gmra.mxu0 %v3181
        %v3676 = vpop.f32.mrf.mxu0
        %v3677 = vadd.f32 %v3664, %v3676
        %v3678 = vpop.f32.mrf.mxu0
        %3679 = vdwg.mxu0
        %v3680 = vxor.u32 %v3599, 2147483648
        %v3681 = vmul.f32 %v3680, 1.442695
        %v3682 = vpow.pop %v3681
        %v3683 = vadd.f32 %v3682, 1.0
        %v3684 = vrcp.pop %v3683
        %v3685 = vmul.f32 %v3683, %v3684
        %v3686 = vsub.f32 1.0, %v3685
        %v3687 = vmul.f32 %v3684, %v3686
        %v3688 = vadd.f32 %v3684, %v3687
        %vm3689 = vweird.f32 %v3683
        %vm3690 = vweird.f32 %v3684
        %vm3691 = vmor %vm3689, %vm3690
        %v3692 = vsel %vm3691, %v3684, %v3688
        %v3693 = vand.u32 2147483647, %v3683
        %vm3694 = vcmp.eq.f32.partialorder %v3693, 8.507059e+37
        %v3695 = vand.u32 %v3683, 2147483648
        %v3696 = vor.u32 1.1754944e-38, %v3695
        %v3697 = vsel %vm3694, %v3696, %v3692
        %v3698 = vmul.f32 1.0, %v3697
        %v3699 = vxor.u32 %v3625, 2147483648
        %v3700 = vmul.f32 %v3699, 1.442695
        %v3701 = vpow.pop %v3700
        %v3702 = vadd.f32 %v3701, 1.0
        %v3703 = vrcp.pop %v3702
        %v3704 = vmul.f32 %v3702, %v3703
        %v3705 = vsub.f32 1.0, %v3704
        %v3706 = vmul.f32 %v3703, %v3705
        %v3707 = vadd.f32 %v3703, %v3706
        %vm3708 = vweird.f32 %v3702
        %vm3709 = vweird.f32 %v3703
        %vm3710 = vmor %vm3708, %vm3709
        %v3711 = vsel %vm3710, %v3703, %v3707
        %v3712 = vand.u32 2147483647, %v3702
        %vm3713 = vcmp.eq.f32.partialorder %v3712, 8.507059e+37
        %v3714 = vand.u32 %v3702, 2147483648
        %v3715 = vor.u32 1.1754944e-38, %v3714
        %v3716 = vsel %vm3713, %v3715, %v3711
        %v3717 = vmul.f32 1.0, %v3716
        %v3718 = vtanh.pop %v3651
        %v3719 = vxor.u32 %v3677, 2147483648
        %v3720 = vmul.f32 %v3719, 1.442695
        %v3721 = vpow.pop %v3720
        %v3722 = vadd.f32 %v3721, 1.0
        %v3723 = vrcp.pop %v3722
        %v3724 = vmul.f32 %v3722, %v3723
        %v3725 = vsub.f32 1.0, %v3724
        %v3726 = vmul.f32 %v3723, %v3725
        %v3727 = vadd.f32 %v3723, %v3726
        %vm3728 = vweird.f32 %v3722
        %vm3729 = vweird.f32 %v3723
        %vm3730 = vmor %vm3728, %vm3729
        %v3731 = vsel %vm3730, %v3723, %v3727
        %v3732 = vand.u32 2147483647, %v3722
        %vm3733 = vcmp.eq.f32.partialorder %v3732, 8.507059e+37
        %v3734 = vand.u32 %v3722, 2147483648
        %v3735 = vor.u32 1.1754944e-38, %v3734
        %v3736 = vsel %vm3733, %v3735, %v3731
        %v3737 = vmul.f32 1.0, %v3736
        %v3738 = vmul.f32 %v3717, %v3179
        %v3739 = vmul.f32 %v3698, %v3718
        %v3740 = vadd.f32 %v3738, %v3739
        %v3741 = vtanh.pop %v3740
        %v3742 = vmul.f32 %v3737, %v3741
        %3743 = vst [vmem:[%s901] sm:$0xff] %v3742
        %3744 = vst [vmem:[%s903] sm:$0xff] %v3740
        %v3745 = vpack.c.bf16 %v3742, %v3742
        %s3746 = scalar_lea.vmem %s323, 8 [#allocation13]
        %3747 = vst [vmem:[%s3746] sm:$0xf] %v3745
        %s3748 = scalar_lea.vmem %s276, 12 [#allocation4]
        %v3749 = vld [vmem:[%s3748] sm:$0xf]
        %v3750 = vld [vmem:[#allocation2] sm:$0xff]
        %v3751 = vld [vmem:[#allocation3] sm:$0xff]
        %v3752 = vpack.c.bf16 %v3750, %v3750
        %v3753 = vld [vmem:[#allocation7] sm:$0xff]
        %v3754 = vld [vmem:[#allocation7 + $0x8] sm:$0xff]
        %v3755 = vld [vmem:[#allocation7 + $0x10] sm:$0xff]
        %v3756 = vld [vmem:[#allocation7 + $0x18] sm:$0xff]
        %v3757 = vld [vmem:[#allocation7 + $0x20] sm:$0xff]
        %v3758 = vld [vmem:[#allocation7 + $0x28] sm:$0xff]
        %v3759 = vld [vmem:[#allocation7 + $0x30] sm:$0xff]
        %v3760 = vld [vmem:[#allocation7 + $0x38] sm:$0xff]
        %v3761 = vld [vmem:[#allocation7 + $0x40] sm:$0xff]
        %v3762 = vld [vmem:[#allocation7 + $0x48] sm:$0xff]
        %v3763 = vld [vmem:[#allocation7 + $0x50] sm:$0xff]
        %v3764 = vld [vmem:[#allocation7 + $0x58] sm:$0xff]
        %v3765 = vld [vmem:[#allocation7 + $0x60] sm:$0xff]
        %v3766 = vld [vmem:[#allocation7 + $0x68] sm:$0xff]
        %v3767 = vld [vmem:[#allocation7 + $0x70] sm:$0xff]
        %v3768 = vld [vmem:[#allocation7 + $0x78] sm:$0xff]
        %v3769 = vld [vmem:[#allocation7 + $0x80] sm:$0xff]
        %v3770 = vld [vmem:[#allocation7 + $0x88] sm:$0xff]
        %v3771 = vld [vmem:[#allocation7 + $0x90] sm:$0xff]
        %v3772 = vld [vmem:[#allocation7 + $0x98] sm:$0xff]
        %v3773 = vld [vmem:[#allocation7 + $0xa0] sm:$0xff]
        %v3774 = vld [vmem:[#allocation7 + $0xa8] sm:$0xff]
        %v3775 = vld [vmem:[#allocation7 + $0xb0] sm:$0xff]
        %v3776 = vld [vmem:[#allocation7 + $0xb8] sm:$0xff]
        %v3777 = vld [vmem:[#allocation7 + $0xc0] sm:$0xff]
        %v3778 = vld [vmem:[#allocation7 + $0xc8] sm:$0xff]
        %v3779 = vld [vmem:[#allocation7 + $0xd0] sm:$0xff]
        %v3780 = vld [vmem:[#allocation7 + $0xd8] sm:$0xff]
        %v3781 = vld [vmem:[#allocation7 + $0xe0] sm:$0xff]
        %v3782 = vld [vmem:[#allocation7 + $0xe8] sm:$0xff]
        %v3783 = vld [vmem:[#allocation7 + $0xf0] sm:$0xff]
        %v3784 = vld [vmem:[#allocation7 + $0xf8] sm:$0xff]
        %v3785 = vld [vmem:[#allocation7 + $0x100] sm:$0xff]
        %v3786 = vld [vmem:[#allocation7 + $0x108] sm:$0xff]
        %v3787 = vld [vmem:[#allocation7 + $0x110] sm:$0xff]
        %v3788 = vld [vmem:[#allocation7 + $0x118] sm:$0xff]
        %v3789 = vld [vmem:[#allocation7 + $0x120] sm:$0xff]
        %v3790 = vld [vmem:[#allocation7 + $0x128] sm:$0xff]
        %v3791 = vld [vmem:[#allocation7 + $0x130] sm:$0xff]
        %v3792 = vld [vmem:[#allocation7 + $0x138] sm:$0xff]
        %v3793 = vld [vmem:[#allocation7 + $0x140] sm:$0xff]
        %v3794 = vld [vmem:[#allocation7 + $0x148] sm:$0xff]
        %v3795 = vld [vmem:[#allocation7 + $0x150] sm:$0xff]
        %v3796 = vld [vmem:[#allocation7 + $0x158] sm:$0xff]
        %v3797 = vld [vmem:[#allocation7 + $0x160] sm:$0xff]
        %v3798 = vld [vmem:[#allocation7 + $0x168] sm:$0xff]
        %v3799 = vld [vmem:[#allocation7 + $0x170] sm:$0xff]
        %v3800 = vld [vmem:[#allocation7 + $0x178] sm:$0xff]
        %v3801 = vld [vmem:[#allocation7 + $0x180] sm:$0xff]
        %v3802 = vld [vmem:[#allocation7 + $0x188] sm:$0xff]
        %v3803 = vld [vmem:[#allocation7 + $0x190] sm:$0xff]
        %v3804 = vld [vmem:[#allocation7 + $0x198] sm:$0xff]
        %v3805 = vld [vmem:[#allocation7 + $0x1a0] sm:$0xff]
        %v3806 = vld [vmem:[#allocation7 + $0x1a8] sm:$0xff]
        %v3807 = vld [vmem:[#allocation7 + $0x1b0] sm:$0xff]
        %v3808 = vld [vmem:[#allocation7 + $0x1b8] sm:$0xff]
        %v3809 = vld [vmem:[#allocation7 + $0x1c0] sm:$0xff]
        %v3810 = vld [vmem:[#allocation7 + $0x1c8] sm:$0xff]
        %v3811 = vld [vmem:[#allocation7 + $0x1d0] sm:$0xff]
        %v3812 = vld [vmem:[#allocation7 + $0x1d8] sm:$0xff]
        %v3813 = vld [vmem:[#allocation7 + $0x1e0] sm:$0xff]
        %v3814 = vld [vmem:[#allocation7 + $0x1e8] sm:$0xff]
        %v3815 = vld [vmem:[#allocation7 + $0x1f0] sm:$0xff]
        %v3816 = vld [vmem:[#allocation7 + $0x1f8] sm:$0xff]
        %v3817 = vld [vmem:[#allocation9] sm:$0xf]
        %v3819 = vperm.slane %v3817, 0
        %v3820 = vperm.slane %v3817, 1
        %v3821 = vperm.slane %v3817, 2
        %v3822 = vperm.slane %v3817, 3
        %v3891 = vunpack.c.l.b16 %v3753
        %v3892 = vunpack.c.h.b16 %v3753
        %v3893 = vunpack.c.l.b16 %v3754
        %v3894 = vunpack.c.h.b16 %v3754
        %v3895 = vunpack.c.l.b16 %v3755
        %v3896 = vunpack.c.h.b16 %v3755
        %v3897 = vunpack.c.l.b16 %v3756
        %v3898 = vunpack.c.h.b16 %v3756
        %v3899 = vunpack.c.l.b16 %v3757
        %v3900 = vunpack.c.h.b16 %v3757
        %v3901 = vunpack.c.l.b16 %v3758
        %v3902 = vunpack.c.h.b16 %v3758
        %v3903 = vunpack.c.l.b16 %v3759
        %v3904 = vunpack.c.h.b16 %v3759
        %v3905 = vunpack.c.l.b16 %v3760
        %v3906 = vunpack.c.h.b16 %v3760
        %v3907 = vunpack.c.l.b16 %v3761
        %v3908 = vunpack.c.h.b16 %v3761
        %v3909 = vunpack.c.l.b16 %v3762
        %v3910 = vunpack.c.h.b16 %v3762
        %v3911 = vunpack.c.l.b16 %v3763
        %v3912 = vunpack.c.h.b16 %v3763
        %v3913 = vunpack.c.l.b16 %v3764
        %v3914 = vunpack.c.h.b16 %v3764
        %v3915 = vunpack.c.l.b16 %v3765
        %v3916 = vunpack.c.h.b16 %v3765
        %v3917 = vunpack.c.l.b16 %v3766
        %v3918 = vunpack.c.h.b16 %v3766
        %v3919 = vunpack.c.l.b16 %v3767
        %v3920 = vunpack.c.h.b16 %v3767
        %v3921 = vunpack.c.l.b16 %v3768
        %v3922 = vunpack.c.h.b16 %v3768
        %v3923 = vunpack.c.l.b16 %v3769
        %v3924 = vunpack.c.h.b16 %v3769
        %v3925 = vunpack.c.l.b16 %v3770
        %v3926 = vunpack.c.h.b16 %v3770
        %v3927 = vunpack.c.l.b16 %v3771
        %v3928 = vunpack.c.h.b16 %v3771
        %v3929 = vunpack.c.l.b16 %v3772
        %v3930 = vunpack.c.h.b16 %v3772
        %v3931 = vunpack.c.l.b16 %v3773
        %v3932 = vunpack.c.h.b16 %v3773
        %v3933 = vunpack.c.l.b16 %v3774
        %v3934 = vunpack.c.h.b16 %v3774
        %v3935 = vunpack.c.l.b16 %v3775
        %v3936 = vunpack.c.h.b16 %v3775
        %v3937 = vunpack.c.l.b16 %v3776
        %v3938 = vunpack.c.h.b16 %v3776
        %v3939 = vunpack.c.l.b16 %v3777
        %v3940 = vunpack.c.h.b16 %v3777
        %v3941 = vunpack.c.l.b16 %v3778
        %v3942 = vunpack.c.h.b16 %v3778
        %v3943 = vunpack.c.l.b16 %v3779
        %v3944 = vunpack.c.h.b16 %v3779
        %v3945 = vunpack.c.l.b16 %v3780
        %v3946 = vunpack.c.h.b16 %v3780
        %v3947 = vunpack.c.l.b16 %v3781
        %v3948 = vunpack.c.h.b16 %v3781
        %v3949 = vunpack.c.l.b16 %v3782
        %v3950 = vunpack.c.h.b16 %v3782
        %v3951 = vunpack.c.l.b16 %v3783
        %v3952 = vunpack.c.h.b16 %v3783
        %v3953 = vunpack.c.l.b16 %v3784
        %v3954 = vunpack.c.h.b16 %v3784
        %v3955 = vunpack.c.l.b16 %v3785
        %v3956 = vunpack.c.h.b16 %v3785
        %v3957 = vunpack.c.l.b16 %v3786
        %v3958 = vunpack.c.h.b16 %v3786
        %v3959 = vunpack.c.l.b16 %v3787
        %v3960 = vunpack.c.h.b16 %v3787
        %v3961 = vunpack.c.l.b16 %v3788
        %v3962 = vunpack.c.h.b16 %v3788
        %v3963 = vunpack.c.l.b16 %v3789
        %v3964 = vunpack.c.h.b16 %v3789
        %v3965 = vunpack.c.l.b16 %v3790
        %v3966 = vunpack.c.h.b16 %v3790
        %v3967 = vunpack.c.l.b16 %v3791
        %v3968 = vunpack.c.h.b16 %v3791
        %v3969 = vunpack.c.l.b16 %v3792
        %v3970 = vunpack.c.h.b16 %v3792
        %v3971 = vunpack.c.l.b16 %v3793
        %v3972 = vunpack.c.h.b16 %v3793
        %v3973 = vunpack.c.l.b16 %v3794
        %v3974 = vunpack.c.h.b16 %v3794
        %v3975 = vunpack.c.l.b16 %v3795
        %v3976 = vunpack.c.h.b16 %v3795
        %v3977 = vunpack.c.l.b16 %v3796
        %v3978 = vunpack.c.h.b16 %v3796
        %v3979 = vunpack.c.l.b16 %v3797
        %v3980 = vunpack.c.h.b16 %v3797
        %v3981 = vunpack.c.l.b16 %v3798
        %v3982 = vunpack.c.h.b16 %v3798
        %v3983 = vunpack.c.l.b16 %v3799
        %v3984 = vunpack.c.h.b16 %v3799
        %v3985 = vunpack.c.l.b16 %v3800
        %v3986 = vunpack.c.h.b16 %v3800
        %v3987 = vunpack.c.l.b16 %v3801
        %v3988 = vunpack.c.h.b16 %v3801
        %v3989 = vunpack.c.l.b16 %v3802
        %v3990 = vunpack.c.h.b16 %v3802
        %v3991 = vunpack.c.l.b16 %v3803
        %v3992 = vunpack.c.h.b16 %v3803
        %v3993 = vunpack.c.l.b16 %v3804
        %v3994 = vunpack.c.h.b16 %v3804
        %v3995 = vunpack.c.l.b16 %v3805
        %v3996 = vunpack.c.h.b16 %v3805
        %v3997 = vunpack.c.l.b16 %v3806
        %v3998 = vunpack.c.h.b16 %v3806
        %v3999 = vunpack.c.l.b16 %v3807
        %v4000 = vunpack.c.h.b16 %v3807
        %v4001 = vunpack.c.l.b16 %v3808
        %v4002 = vunpack.c.h.b16 %v3808
        %v4003 = vunpack.c.l.b16 %v3809
        %v4004 = vunpack.c.h.b16 %v3809
        %v4005 = vunpack.c.l.b16 %v3810
        %v4006 = vunpack.c.h.b16 %v3810
        %v4007 = vunpack.c.l.b16 %v3811
        %v4008 = vunpack.c.h.b16 %v3811
        %v4009 = vunpack.c.l.b16 %v3812
        %v4010 = vunpack.c.h.b16 %v3812
        %v4011 = vunpack.c.l.b16 %v3813
        %v4012 = vunpack.c.h.b16 %v3813
        %v4013 = vunpack.c.l.b16 %v3814
        %v4014 = vunpack.c.h.b16 %v3814
        %v4015 = vunpack.c.l.b16 %v3815
        %v4016 = vunpack.c.h.b16 %v3815
        %v4017 = vunpack.c.l.b16 %v3816
        %v4018 = vunpack.c.h.b16 %v3816
        %v4019 = vpack.c.b16 %v3895, %v3891
        %v4020 = vpack.c.b16 %v3896, %v3892
        %v4021 = vpack.c.b16 %v3897, %v3893
        %v4022 = vpack.c.b16 %v3898, %v3894
        %v4023 = vpack.c.b16 %v3903, %v3899
        %v4024 = vpack.c.b16 %v3904, %v3900
        %v4025 = vpack.c.b16 %v3905, %v3901
        %v4026 = vpack.c.b16 %v3906, %v3902
        %v4027 = vpack.c.b16 %v3911, %v3907
        %v4028 = vpack.c.b16 %v3912, %v3908
        %v4029 = vpack.c.b16 %v3913, %v3909
        %v4030 = vpack.c.b16 %v3914, %v3910
        %v4031 = vpack.c.b16 %v3919, %v3915
        %v4032 = vpack.c.b16 %v3920, %v3916
        %v4033 = vpack.c.b16 %v3921, %v3917
        %v4034 = vpack.c.b16 %v3922, %v3918
        %v4035 = vpack.c.b16 %v3927, %v3923
        %v4036 = vpack.c.b16 %v3928, %v3924
        %v4037 = vpack.c.b16 %v3929, %v3925
        %v4038 = vpack.c.b16 %v3930, %v3926
        %v4039 = vpack.c.b16 %v3935, %v3931
        %v4040 = vpack.c.b16 %v3936, %v3932
        %v4041 = vpack.c.b16 %v3937, %v3933
        %v4042 = vpack.c.b16 %v3938, %v3934
        %v4043 = vpack.c.b16 %v3943, %v3939
        %v4044 = vpack.c.b16 %v3944, %v3940
        %v4045 = vpack.c.b16 %v3945, %v3941
        %v4046 = vpack.c.b16 %v3946, %v3942
        %v4047 = vpack.c.b16 %v3951, %v3947
        %v4048 = vpack.c.b16 %v3952, %v3948
        %v4049 = vpack.c.b16 %v3953, %v3949
        %v4050 = vpack.c.b16 %v3954, %v3950
        %v4051 = vpack.c.b16 %v3959, %v3955
        %v4052 = vpack.c.b16 %v3960, %v3956
        %v4053 = vpack.c.b16 %v3961, %v3957
        %v4054 = vpack.c.b16 %v3962, %v3958
        %v4055 = vpack.c.b16 %v3967, %v3963
        %v4056 = vpack.c.b16 %v3968, %v3964
        %v4057 = vpack.c.b16 %v3969, %v3965
        %v4058 = vpack.c.b16 %v3970, %v3966
        %v4059 = vpack.c.b16 %v3975, %v3971
        %v4060 = vpack.c.b16 %v3976, %v3972
        %v4061 = vpack.c.b16 %v3977, %v3973
        %v4062 = vpack.c.b16 %v3978, %v3974
        %v4063 = vpack.c.b16 %v3983, %v3979
        %v4064 = vpack.c.b16 %v3984, %v3980
        %v4065 = vpack.c.b16 %v3985, %v3981
        %v4066 = vpack.c.b16 %v3986, %v3982
        %v4067 = vpack.c.b16 %v3991, %v3987
        %v4068 = vpack.c.b16 %v3992, %v3988
        %v4069 = vpack.c.b16 %v3993, %v3989
        %v4070 = vpack.c.b16 %v3994, %v3990
        %v4071 = vpack.c.b16 %v3999, %v3995
        %v4072 = vpack.c.b16 %v4000, %v3996
        %v4073 = vpack.c.b16 %v4001, %v3997
        %v4074 = vpack.c.b16 %v4002, %v3998
        %v4075 = vpack.c.b16 %v4007, %v4003
        %v4076 = vpack.c.b16 %v4008, %v4004
        %v4077 = vpack.c.b16 %v4009, %v4005
        %v4078 = vpack.c.b16 %v4010, %v4006
        %v4079 = vpack.c.b16 %v4015, %v4011
        %v4080 = vpack.c.b16 %v4016, %v4012
        %v4081 = vpack.c.b16 %v4017, %v4013
        %v4082 = vpack.c.b16 %v4018, %v4014
        %4147 = vmatpush.bf16.msra.mxu0 %v4047
        %4148 = vmatpush.bf16.msra.mxu0 %v4043
        %4149 = vmatpush.bf16.msra.mxu0 %v4039
        %4150 = vmatpush.bf16.msra.mxu0 %v4035
        %4151 = vmatpush.bf16.msra.mxu0 %v4031
        %4152 = vmatpush.bf16.msra.mxu0 %v4027
        %4153 = vmatpush.bf16.msra.mxu0 %v4023
        %4154 = vmatpush.bf16.msra.mxu0 %v4019
        %4155 = vmatmul.bf16.gmra.mxu0 %v3749
        %v4156 = vpop.f32.mrf.mxu0
        %v4157 = vadd.f32 %v3819, %v4156
        %v4158 = vpop.f32.mrf.mxu0
        %4159 = vdwg.mxu0
        %4160 = vmatpush.bf16.msra.mxu0 %v4079
        %4161 = vmatpush.bf16.msra.mxu0 %v4075
        %4162 = vmatpush.bf16.msra.mxu0 %v4071
        %4163 = vmatpush.bf16.msra.mxu0 %v4067
        %4164 = vmatpush.bf16.msra.mxu0 %v4063
        %4165 = vmatpush.bf16.msra.mxu0 %v4059
        %4166 = vmatpush.bf16.msra.mxu0 %v4055
        %4167 = vmatpush.bf16.msra.mxu0 %v4051
        %4168 = vmatmul.bf16.gmra.mxu0 %v3752
        %v4169 = vpop.f32.mrf.mxu0
        %v4170 = vadd.f32 %v4157, %v4169
        %v4171 = vpop.f32.mrf.mxu0
        %4172 = vdwg.mxu0
        %4173 = vmatpush.bf16.msra.mxu0 %v4048
        %4174 = vmatpush.bf16.msra.mxu0 %v4044
        %4175 = vmatpush.bf16.msra.mxu0 %v4040
        %4176 = vmatpush.bf16.msra.mxu0 %v4036
        %4177 = vmatpush.bf16.msra.mxu0 %v4032
        %4178 = vmatpush.bf16.msra.mxu0 %v4028
        %4179 = vmatpush.bf16.msra.mxu0 %v4024
        %4180 = vmatpush.bf16.msra.mxu0 %v4020
        %4181 = vmatmul.bf16.gmra.mxu0 %v3749
        %v4182 = vpop.f32.mrf.mxu0
        %v4183 = vadd.f32 %v3820, %v4182
        %v4184 = vpop.f32.mrf.mxu0
        %4185 = vdwg.mxu0
        %4186 = vmatpush.bf16.msra.mxu0 %v4080
        %4187 = vmatpush.bf16.msra.mxu0 %v4076
        %4188 = vmatpush.bf16.msra.mxu0 %v4072
        %4189 = vmatpush.bf16.msra.mxu0 %v4068
        %4190 = vmatpush.bf16.msra.mxu0 %v4064
        %4191 = vmatpush.bf16.msra.mxu0 %v4060
        %4192 = vmatpush.bf16.msra.mxu0 %v4056
        %4193 = vmatpush.bf16.msra.mxu0 %v4052
        %4194 = vmatmul.bf16.gmra.mxu0 %v3752
        %v4195 = vpop.f32.mrf.mxu0
        %v4196 = vadd.f32 %v4183, %v4195
        %v4197 = vpop.f32.mrf.mxu0
        %4198 = vdwg.mxu0
        %4199 = vmatpush.bf16.msra.mxu0 %v4049
        %4200 = vmatpush.bf16.msra.mxu0 %v4045
        %4201 = vmatpush.bf16.msra.mxu0 %v4041
        %4202 = vmatpush.bf16.msra.mxu0 %v4037
        %4203 = vmatpush.bf16.msra.mxu0 %v4033
        %4204 = vmatpush.bf16.msra.mxu0 %v4029
        %4205 = vmatpush.bf16.msra.mxu0 %v4025
        %4206 = vmatpush.bf16.msra.mxu0 %v4021
        %4207 = vmatmul.bf16.gmra.mxu0 %v3749
        %v4208 = vpop.f32.mrf.mxu0
        %v4209 = vadd.f32 %v3821, %v4208
        %v4210 = vpop.f32.mrf.mxu0
        %4211 = vdwg.mxu0
        %4212 = vmatpush.bf16.msra.mxu0 %v4081
        %4213 = vmatpush.bf16.msra.mxu0 %v4077
        %4214 = vmatpush.bf16.msra.mxu0 %v4073
        %4215 = vmatpush.bf16.msra.mxu0 %v4069
        %4216 = vmatpush.bf16.msra.mxu0 %v4065
        %4217 = vmatpush.bf16.msra.mxu0 %v4061
        %4218 = vmatpush.bf16.msra.mxu0 %v4057
        %4219 = vmatpush.bf16.msra.mxu0 %v4053
        %4220 = vmatmul.bf16.gmra.mxu0 %v3752
        %v4221 = vpop.f32.mrf.mxu0
        %v4222 = vadd.f32 %v4209, %v4221
        %v4223 = vpop.f32.mrf.mxu0
        %4224 = vdwg.mxu0
        %4225 = vmatpush.bf16.msra.mxu0 %v4050
        %4226 = vmatpush.bf16.msra.mxu0 %v4046
        %4227 = vmatpush.bf16.msra.mxu0 %v4042
        %4228 = vmatpush.bf16.msra.mxu0 %v4038
        %4229 = vmatpush.bf16.msra.mxu0 %v4034
        %4230 = vmatpush.bf16.msra.mxu0 %v4030
        %4231 = vmatpush.bf16.msra.mxu0 %v4026
        %4232 = vmatpush.bf16.msra.mxu0 %v4022
        %4233 = vmatmul.bf16.gmra.mxu0 %v3749
        %v4234 = vpop.f32.mrf.mxu0
        %v4235 = vadd.f32 %v3822, %v4234
        %v4236 = vpop.f32.mrf.mxu0
        %4237 = vdwg.mxu0
        %4238 = vmatpush.bf16.msra.mxu0 %v4082
        %4239 = vmatpush.bf16.msra.mxu0 %v4078
        %4240 = vmatpush.bf16.msra.mxu0 %v4074
        %4241 = vmatpush.bf16.msra.mxu0 %v4070
        %4242 = vmatpush.bf16.msra.mxu0 %v4066
        %4243 = vmatpush.bf16.msra.mxu0 %v4062
        %4244 = vmatpush.bf16.msra.mxu0 %v4058
        %4245 = vmatpush.bf16.msra.mxu0 %v4054
        %4246 = vmatmul.bf16.gmra.mxu0 %v3752
        %v4247 = vpop.f32.mrf.mxu0
        %v4248 = vadd.f32 %v4235, %v4247
        %v4249 = vpop.f32.mrf.mxu0
        %4250 = vdwg.mxu0
        %v4251 = vxor.u32 %v4170, 2147483648
        %v4252 = vmul.f32 %v4251, 1.442695
        %v4253 = vpow.pop %v4252
        %v4254 = vadd.f32 %v4253, 1.0
        %v4255 = vrcp.pop %v4254
        %v4256 = vmul.f32 %v4254, %v4255
        %v4257 = vsub.f32 1.0, %v4256
        %v4258 = vmul.f32 %v4255, %v4257
        %v4259 = vadd.f32 %v4255, %v4258
        %vm4260 = vweird.f32 %v4254
        %vm4261 = vweird.f32 %v4255
        %vm4262 = vmor %vm4260, %vm4261
        %v4263 = vsel %vm4262, %v4255, %v4259
        %v4264 = vand.u32 2147483647, %v4254
        %vm4265 = vcmp.eq.f32.partialorder %v4264, 8.507059e+37
        %v4266 = vand.u32 %v4254, 2147483648
        %v4267 = vor.u32 1.1754944e-38, %v4266
        %v4268 = vsel %vm4265, %v4267, %v4263
        %v4269 = vmul.f32 1.0, %v4268
        %v4270 = vxor.u32 %v4196, 2147483648
        %v4271 = vmul.f32 %v4270, 1.442695
        %v4272 = vpow.pop %v4271
        %v4273 = vadd.f32 %v4272, 1.0
        %v4274 = vrcp.pop %v4273
        %v4275 = vmul.f32 %v4273, %v4274
        %v4276 = vsub.f32 1.0, %v4275
        %v4277 = vmul.f32 %v4274, %v4276
        %v4278 = vadd.f32 %v4274, %v4277
        %vm4279 = vweird.f32 %v4273
        %vm4280 = vweird.f32 %v4274
        %vm4281 = vmor %vm4279, %vm4280
        %v4282 = vsel %vm4281, %v4274, %v4278
        %v4283 = vand.u32 2147483647, %v4273
        %vm4284 = vcmp.eq.f32.partialorder %v4283, 8.507059e+37
        %v4285 = vand.u32 %v4273, 2147483648
        %v4286 = vor.u32 1.1754944e-38, %v4285
        %v4287 = vsel %vm4284, %v4286, %v4282
        %v4288 = vmul.f32 1.0, %v4287
        %v4289 = vtanh.pop %v4222
        %v4290 = vxor.u32 %v4248, 2147483648
        %v4291 = vmul.f32 %v4290, 1.442695
        %v4292 = vpow.pop %v4291
        %v4293 = vadd.f32 %v4292, 1.0
        %v4294 = vrcp.pop %v4293
        %v4295 = vmul.f32 %v4293, %v4294
        %v4296 = vsub.f32 1.0, %v4295
        %v4297 = vmul.f32 %v4294, %v4296
        %v4298 = vadd.f32 %v4294, %v4297
        %vm4299 = vweird.f32 %v4293
        %vm4300 = vweird.f32 %v4294
        %vm4301 = vmor %vm4299, %vm4300
        %v4302 = vsel %vm4301, %v4294, %v4298
        %v4303 = vand.u32 2147483647, %v4293
        %vm4304 = vcmp.eq.f32.partialorder %v4303, 8.507059e+37
        %v4305 = vand.u32 %v4293, 2147483648
        %v4306 = vor.u32 1.1754944e-38, %v4305
        %v4307 = vsel %vm4304, %v4306, %v4302
        %v4308 = vmul.f32 1.0, %v4307
        %v4309 = vmul.f32 %v4288, %v3751
        %v4310 = vmul.f32 %v4269, %v4289
        %v4311 = vadd.f32 %v4309, %v4310
        %v4312 = vtanh.pop %v4311
        %v4313 = vmul.f32 %v4308, %v4312
        %4314 = vst [vmem:[#allocation2] sm:$0xff] %v4313
        %4315 = vst [vmem:[#allocation3] sm:$0xff] %v4311
        %v4316 = vld [vmem:[%s901] sm:$0xff]
        %v4317 = vld [vmem:[%s903] sm:$0xff]
        %v4318 = vpack.c.bf16 %v4313, %v4313
        %v4319 = vpack.c.bf16 %v4316, %v4316
        %v4320 = vld [vmem:[#allocation10] sm:$0xff]
        %v4321 = vld [vmem:[#allocation10 + $0x8] sm:$0xff]
        %v4322 = vld [vmem:[#allocation10 + $0x10] sm:$0xff]
        %v4323 = vld [vmem:[#allocation10 + $0x18] sm:$0xff]
        %v4324 = vld [vmem:[#allocation10 + $0x20] sm:$0xff]
        %v4325 = vld [vmem:[#allocation10 + $0x28] sm:$0xff]
        %v4326 = vld [vmem:[#allocation10 + $0x30] sm:$0xff]
        %v4327 = vld [vmem:[#allocation10 + $0x38] sm:$0xff]
        %v4328 = vld [vmem:[#allocation10 + $0x40] sm:$0xff]
        %v4329 = vld [vmem:[#allocation10 + $0x48] sm:$0xff]
        %v4330 = vld [vmem:[#allocation10 + $0x50] sm:$0xff]
        %v4331 = vld [vmem:[#allocation10 + $0x58] sm:$0xff]
        %v4332 = vld [vmem:[#allocation10 + $0x60] sm:$0xff]
        %v4333 = vld [vmem:[#allocation10 + $0x68] sm:$0xff]
        %v4334 = vld [vmem:[#allocation10 + $0x70] sm:$0xff]
        %v4335 = vld [vmem:[#allocation10 + $0x78] sm:$0xff]
        %v4336 = vld [vmem:[#allocation10 + $0x80] sm:$0xff]
        %v4337 = vld [vmem:[#allocation10 + $0x88] sm:$0xff]
        %v4338 = vld [vmem:[#allocation10 + $0x90] sm:$0xff]
        %v4339 = vld [vmem:[#allocation10 + $0x98] sm:$0xff]
        %v4340 = vld [vmem:[#allocation10 + $0xa0] sm:$0xff]
        %v4341 = vld [vmem:[#allocation10 + $0xa8] sm:$0xff]
        %v4342 = vld [vmem:[#allocation10 + $0xb0] sm:$0xff]
        %v4343 = vld [vmem:[#allocation10 + $0xb8] sm:$0xff]
        %v4344 = vld [vmem:[#allocation10 + $0xc0] sm:$0xff]
        %v4345 = vld [vmem:[#allocation10 + $0xc8] sm:$0xff]
        %v4346 = vld [vmem:[#allocation10 + $0xd0] sm:$0xff]
        %v4347 = vld [vmem:[#allocation10 + $0xd8] sm:$0xff]
        %v4348 = vld [vmem:[#allocation10 + $0xe0] sm:$0xff]
        %v4349 = vld [vmem:[#allocation10 + $0xe8] sm:$0xff]
        %v4350 = vld [vmem:[#allocation10 + $0xf0] sm:$0xff]
        %v4351 = vld [vmem:[#allocation10 + $0xf8] sm:$0xff]
        %v4352 = vld [vmem:[#allocation10 + $0x100] sm:$0xff]
        %v4353 = vld [vmem:[#allocation10 + $0x108] sm:$0xff]
        %v4354 = vld [vmem:[#allocation10 + $0x110] sm:$0xff]
        %v4355 = vld [vmem:[#allocation10 + $0x118] sm:$0xff]
        %v4356 = vld [vmem:[#allocation10 + $0x120] sm:$0xff]
        %v4357 = vld [vmem:[#allocation10 + $0x128] sm:$0xff]
        %v4358 = vld [vmem:[#allocation10 + $0x130] sm:$0xff]
        %v4359 = vld [vmem:[#allocation10 + $0x138] sm:$0xff]
        %v4360 = vld [vmem:[#allocation10 + $0x140] sm:$0xff]
        %v4361 = vld [vmem:[#allocation10 + $0x148] sm:$0xff]
        %v4362 = vld [vmem:[#allocation10 + $0x150] sm:$0xff]
        %v4363 = vld [vmem:[#allocation10 + $0x158] sm:$0xff]
        %v4364 = vld [vmem:[#allocation10 + $0x160] sm:$0xff]
        %v4365 = vld [vmem:[#allocation10 + $0x168] sm:$0xff]
        %v4366 = vld [vmem:[#allocation10 + $0x170] sm:$0xff]
        %v4367 = vld [vmem:[#allocation10 + $0x178] sm:$0xff]
        %v4368 = vld [vmem:[#allocation10 + $0x180] sm:$0xff]
        %v4369 = vld [vmem:[#allocation10 + $0x188] sm:$0xff]
        %v4370 = vld [vmem:[#allocation10 + $0x190] sm:$0xff]
        %v4371 = vld [vmem:[#allocation10 + $0x198] sm:$0xff]
        %v4372 = vld [vmem:[#allocation10 + $0x1a0] sm:$0xff]
        %v4373 = vld [vmem:[#allocation10 + $0x1a8] sm:$0xff]
        %v4374 = vld [vmem:[#allocation10 + $0x1b0] sm:$0xff]
        %v4375 = vld [vmem:[#allocation10 + $0x1b8] sm:$0xff]
        %v4376 = vld [vmem:[#allocation10 + $0x1c0] sm:$0xff]
        %v4377 = vld [vmem:[#allocation10 + $0x1c8] sm:$0xff]
        %v4378 = vld [vmem:[#allocation10 + $0x1d0] sm:$0xff]
        %v4379 = vld [vmem:[#allocation10 + $0x1d8] sm:$0xff]
        %v4380 = vld [vmem:[#allocation10 + $0x1e0] sm:$0xff]
        %v4381 = vld [vmem:[#allocation10 + $0x1e8] sm:$0xff]
        %v4382 = vld [vmem:[#allocation10 + $0x1f0] sm:$0xff]
        %v4383 = vld [vmem:[#allocation10 + $0x1f8] sm:$0xff]
        %v4384 = vld [vmem:[#allocation12] sm:$0xf]
        %v4386 = vperm.slane %v4384, 0
        %v4387 = vperm.slane %v4384, 1
        %v4388 = vperm.slane %v4384, 2
        %v4389 = vperm.slane %v4384, 3
        %v4458 = vunpack.c.l.b16 %v4320
        %v4459 = vunpack.c.h.b16 %v4320
        %v4460 = vunpack.c.l.b16 %v4321
        %v4461 = vunpack.c.h.b16 %v4321
        %v4462 = vunpack.c.l.b16 %v4322
        %v4463 = vunpack.c.h.b16 %v4322
        %v4464 = vunpack.c.l.b16 %v4323
        %v4465 = vunpack.c.h.b16 %v4323
        %v4466 = vunpack.c.l.b16 %v4324
        %v4467 = vunpack.c.h.b16 %v4324
        %v4468 = vunpack.c.l.b16 %v4325
        %v4469 = vunpack.c.h.b16 %v4325
        %v4470 = vunpack.c.l.b16 %v4326
        %v4471 = vunpack.c.h.b16 %v4326
        %v4472 = vunpack.c.l.b16 %v4327
        %v4473 = vunpack.c.h.b16 %v4327
        %v4474 = vunpack.c.l.b16 %v4328
        %v4475 = vunpack.c.h.b16 %v4328
        %v4476 = vunpack.c.l.b16 %v4329
        %v4477 = vunpack.c.h.b16 %v4329
        %v4478 = vunpack.c.l.b16 %v4330
        %v4479 = vunpack.c.h.b16 %v4330
        %v4480 = vunpack.c.l.b16 %v4331
        %v4481 = vunpack.c.h.b16 %v4331
        %v4482 = vunpack.c.l.b16 %v4332
        %v4483 = vunpack.c.h.b16 %v4332
        %v4484 = vunpack.c.l.b16 %v4333
        %v4485 = vunpack.c.h.b16 %v4333
        %v4486 = vunpack.c.l.b16 %v4334
        %v4487 = vunpack.c.h.b16 %v4334
        %v4488 = vunpack.c.l.b16 %v4335
        %v4489 = vunpack.c.h.b16 %v4335
        %v4490 = vunpack.c.l.b16 %v4336
        %v4491 = vunpack.c.h.b16 %v4336
        %v4492 = vunpack.c.l.b16 %v4337
        %v4493 = vunpack.c.h.b16 %v4337
        %v4494 = vunpack.c.l.b16 %v4338
        %v4495 = vunpack.c.h.b16 %v4338
        %v4496 = vunpack.c.l.b16 %v4339
        %v4497 = vunpack.c.h.b16 %v4339
        %v4498 = vunpack.c.l.b16 %v4340
        %v4499 = vunpack.c.h.b16 %v4340
        %v4500 = vunpack.c.l.b16 %v4341
        %v4501 = vunpack.c.h.b16 %v4341
        %v4502 = vunpack.c.l.b16 %v4342
        %v4503 = vunpack.c.h.b16 %v4342
        %v4504 = vunpack.c.l.b16 %v4343
        %v4505 = vunpack.c.h.b16 %v4343
        %v4506 = vunpack.c.l.b16 %v4344
        %v4507 = vunpack.c.h.b16 %v4344
        %v4508 = vunpack.c.l.b16 %v4345
        %v4509 = vunpack.c.h.b16 %v4345
        %v4510 = vunpack.c.l.b16 %v4346
        %v4511 = vunpack.c.h.b16 %v4346
        %v4512 = vunpack.c.l.b16 %v4347
        %v4513 = vunpack.c.h.b16 %v4347
        %v4514 = vunpack.c.l.b16 %v4348
        %v4515 = vunpack.c.h.b16 %v4348
        %v4516 = vunpack.c.l.b16 %v4349
        %v4517 = vunpack.c.h.b16 %v4349
        %v4518 = vunpack.c.l.b16 %v4350
        %v4519 = vunpack.c.h.b16 %v4350
        %v4520 = vunpack.c.l.b16 %v4351
        %v4521 = vunpack.c.h.b16 %v4351
        %v4522 = vunpack.c.l.b16 %v4352
        %v4523 = vunpack.c.h.b16 %v4352
        %v4524 = vunpack.c.l.b16 %v4353
        %v4525 = vunpack.c.h.b16 %v4353
        %v4526 = vunpack.c.l.b16 %v4354
        %v4527 = vunpack.c.h.b16 %v4354
        %v4528 = vunpack.c.l.b16 %v4355
        %v4529 = vunpack.c.h.b16 %v4355
        %v4530 = vunpack.c.l.b16 %v4356
        %v4531 = vunpack.c.h.b16 %v4356
        %v4532 = vunpack.c.l.b16 %v4357
        %v4533 = vunpack.c.h.b16 %v4357
        %v4534 = vunpack.c.l.b16 %v4358
        %v4535 = vunpack.c.h.b16 %v4358
        %v4536 = vunpack.c.l.b16 %v4359
        %v4537 = vunpack.c.h.b16 %v4359
        %v4538 = vunpack.c.l.b16 %v4360
        %v4539 = vunpack.c.h.b16 %v4360
        %v4540 = vunpack.c.l.b16 %v4361
        %v4541 = vunpack.c.h.b16 %v4361
        %v4542 = vunpack.c.l.b16 %v4362
        %v4543 = vunpack.c.h.b16 %v4362
        %v4544 = vunpack.c.l.b16 %v4363
        %v4545 = vunpack.c.h.b16 %v4363
        %v4546 = vunpack.c.l.b16 %v4364
        %v4547 = vunpack.c.h.b16 %v4364
        %v4548 = vunpack.c.l.b16 %v4365
        %v4549 = vunpack.c.h.b16 %v4365
        %v4550 = vunpack.c.l.b16 %v4366
        %v4551 = vunpack.c.h.b16 %v4366
        %v4552 = vunpack.c.l.b16 %v4367
        %v4553 = vunpack.c.h.b16 %v4367
        %v4554 = vunpack.c.l.b16 %v4368
        %v4555 = vunpack.c.h.b16 %v4368
        %v4556 = vunpack.c.l.b16 %v4369
        %v4557 = vunpack.c.h.b16 %v4369
        %v4558 = vunpack.c.l.b16 %v4370
        %v4559 = vunpack.c.h.b16 %v4370
        %v4560 = vunpack.c.l.b16 %v4371
        %v4561 = vunpack.c.h.b16 %v4371
        %v4562 = vunpack.c.l.b16 %v4372
        %v4563 = vunpack.c.h.b16 %v4372
        %v4564 = vunpack.c.l.b16 %v4373
        %v4565 = vunpack.c.h.b16 %v4373
        %v4566 = vunpack.c.l.b16 %v4374
        %v4567 = vunpack.c.h.b16 %v4374
        %v4568 = vunpack.c.l.b16 %v4375
        %v4569 = vunpack.c.h.b16 %v4375
        %v4570 = vunpack.c.l.b16 %v4376
        %v4571 = vunpack.c.h.b16 %v4376
        %v4572 = vunpack.c.l.b16 %v4377
        %v4573 = vunpack.c.h.b16 %v4377
        %v4574 = vunpack.c.l.b16 %v4378
        %v4575 = vunpack.c.h.b16 %v4378
        %v4576 = vunpack.c.l.b16 %v4379
        %v4577 = vunpack.c.h.b16 %v4379
        %v4578 = vunpack.c.l.b16 %v4380
        %v4579 = vunpack.c.h.b16 %v4380
        %v4580 = vunpack.c.l.b16 %v4381
        %v4581 = vunpack.c.h.b16 %v4381
        %v4582 = vunpack.c.l.b16 %v4382
        %v4583 = vunpack.c.h.b16 %v4382
        %v4584 = vunpack.c.l.b16 %v4383
        %v4585 = vunpack.c.h.b16 %v4383
        %v4586 = vpack.c.b16 %v4462, %v4458
        %v4587 = vpack.c.b16 %v4463, %v4459
        %v4588 = vpack.c.b16 %v4464, %v4460
        %v4589 = vpack.c.b16 %v4465, %v4461
        %v4590 = vpack.c.b16 %v4470, %v4466
        %v4591 = vpack.c.b16 %v4471, %v4467
        %v4592 = vpack.c.b16 %v4472, %v4468
        %v4593 = vpack.c.b16 %v4473, %v4469
        %v4594 = vpack.c.b16 %v4478, %v4474
        %v4595 = vpack.c.b16 %v4479, %v4475
        %v4596 = vpack.c.b16 %v4480, %v4476
        %v4597 = vpack.c.b16 %v4481, %v4477
        %v4598 = vpack.c.b16 %v4486, %v4482
        %v4599 = vpack.c.b16 %v4487, %v4483
        %v4600 = vpack.c.b16 %v4488, %v4484
        %v4601 = vpack.c.b16 %v4489, %v4485
        %v4602 = vpack.c.b16 %v4494, %v4490
        %v4603 = vpack.c.b16 %v4495, %v4491
        %v4604 = vpack.c.b16 %v4496, %v4492
        %v4605 = vpack.c.b16 %v4497, %v4493
        %v4606 = vpack.c.b16 %v4502, %v4498
        %v4607 = vpack.c.b16 %v4503, %v4499
        %v4608 = vpack.c.b16 %v4504, %v4500
        %v4609 = vpack.c.b16 %v4505, %v4501
        %v4610 = vpack.c.b16 %v4510, %v4506
        %v4611 = vpack.c.b16 %v4511, %v4507
        %v4612 = vpack.c.b16 %v4512, %v4508
        %v4613 = vpack.c.b16 %v4513, %v4509
        %v4614 = vpack.c.b16 %v4518, %v4514
        %v4615 = vpack.c.b16 %v4519, %v4515
        %v4616 = vpack.c.b16 %v4520, %v4516
        %v4617 = vpack.c.b16 %v4521, %v4517
        %v4618 = vpack.c.b16 %v4526, %v4522
        %v4619 = vpack.c.b16 %v4527, %v4523
        %v4620 = vpack.c.b16 %v4528, %v4524
        %v4621 = vpack.c.b16 %v4529, %v4525
        %v4622 = vpack.c.b16 %v4534, %v4530
        %v4623 = vpack.c.b16 %v4535, %v4531
        %v4624 = vpack.c.b16 %v4536, %v4532
        %v4625 = vpack.c.b16 %v4537, %v4533
        %v4626 = vpack.c.b16 %v4542, %v4538
        %v4627 = vpack.c.b16 %v4543, %v4539
        %v4628 = vpack.c.b16 %v4544, %v4540
        %v4629 = vpack.c.b16 %v4545, %v4541
        %v4630 = vpack.c.b16 %v4550, %v4546
        %v4631 = vpack.c.b16 %v4551, %v4547
        %v4632 = vpack.c.b16 %v4552, %v4548
        %v4633 = vpack.c.b16 %v4553, %v4549
        %v4634 = vpack.c.b16 %v4558, %v4554
        %v4635 = vpack.c.b16 %v4559, %v4555
        %v4636 = vpack.c.b16 %v4560, %v4556
        %v4637 = vpack.c.b16 %v4561, %v4557
        %v4638 = vpack.c.b16 %v4566, %v4562
        %v4639 = vpack.c.b16 %v4567, %v4563
        %v4640 = vpack.c.b16 %v4568, %v4564
        %v4641 = vpack.c.b16 %v4569, %v4565
        %v4642 = vpack.c.b16 %v4574, %v4570
        %v4643 = vpack.c.b16 %v4575, %v4571
        %v4644 = vpack.c.b16 %v4576, %v4572
        %v4645 = vpack.c.b16 %v4577, %v4573
        %v4646 = vpack.c.b16 %v4582, %v4578
        %v4647 = vpack.c.b16 %v4583, %v4579
        %v4648 = vpack.c.b16 %v4584, %v4580
        %v4649 = vpack.c.b16 %v4585, %v4581
        %4714 = vmatpush.bf16.msra.mxu0 %v4614
        %4715 = vmatpush.bf16.msra.mxu0 %v4610
        %4716 = vmatpush.bf16.msra.mxu0 %v4606
        %4717 = vmatpush.bf16.msra.mxu0 %v4602
        %4718 = vmatpush.bf16.msra.mxu0 %v4598
        %4719 = vmatpush.bf16.msra.mxu0 %v4594
        %4720 = vmatpush.bf16.msra.mxu0 %v4590
        %4721 = vmatpush.bf16.msra.mxu0 %v4586
        %4722 = vmatmul.bf16.gmra.mxu0 %v4318
        %v4723 = vpop.f32.mrf.mxu0
        %v4724 = vadd.f32 %v4386, %v4723
        %v4725 = vpop.f32.mrf.mxu0
        %4726 = vdwg.mxu0
        %4727 = vmatpush.bf16.msra.mxu0 %v4646
        %4728 = vmatpush.bf16.msra.mxu0 %v4642
        %4729 = vmatpush.bf16.msra.mxu0 %v4638
        %4730 = vmatpush.bf16.msra.mxu0 %v4634
        %4731 = vmatpush.bf16.msra.mxu0 %v4630
        %4732 = vmatpush.bf16.msra.mxu0 %v4626
        %4733 = vmatpush.bf16.msra.mxu0 %v4622
        %4734 = vmatpush.bf16.msra.mxu0 %v4618
        %4735 = vmatmul.bf16.gmra.mxu0 %v4319
        %v4736 = vpop.f32.mrf.mxu0
        %v4737 = vadd.f32 %v4724, %v4736
        %v4738 = vpop.f32.mrf.mxu0
        %4739 = vdwg.mxu0
        %4740 = vmatpush.bf16.msra.mxu0 %v4615
        %4741 = vmatpush.bf16.msra.mxu0 %v4611
        %4742 = vmatpush.bf16.msra.mxu0 %v4607
        %4743 = vmatpush.bf16.msra.mxu0 %v4603
        %4744 = vmatpush.bf16.msra.mxu0 %v4599
        %4745 = vmatpush.bf16.msra.mxu0 %v4595
        %4746 = vmatpush.bf16.msra.mxu0 %v4591
        %4747 = vmatpush.bf16.msra.mxu0 %v4587
        %4748 = vmatmul.bf16.gmra.mxu0 %v4318
        %v4749 = vpop.f32.mrf.mxu0
        %v4750 = vadd.f32 %v4387, %v4749
        %v4751 = vpop.f32.mrf.mxu0
        %4752 = vdwg.mxu0
        %4753 = vmatpush.bf16.msra.mxu0 %v4647
        %4754 = vmatpush.bf16.msra.mxu0 %v4643
        %4755 = vmatpush.bf16.msra.mxu0 %v4639
        %4756 = vmatpush.bf16.msra.mxu0 %v4635
        %4757 = vmatpush.bf16.msra.mxu0 %v4631
        %4758 = vmatpush.bf16.msra.mxu0 %v4627
        %4759 = vmatpush.bf16.msra.mxu0 %v4623
        %4760 = vmatpush.bf16.msra.mxu0 %v4619
        %4761 = vmatmul.bf16.gmra.mxu0 %v4319
        %v4762 = vpop.f32.mrf.mxu0
        %v4763 = vadd.f32 %v4750, %v4762
        %v4764 = vpop.f32.mrf.mxu0
        %4765 = vdwg.mxu0
        %4766 = vmatpush.bf16.msra.mxu0 %v4616
        %4767 = vmatpush.bf16.msra.mxu0 %v4612
        %4768 = vmatpush.bf16.msra.mxu0 %v4608
        %4769 = vmatpush.bf16.msra.mxu0 %v4604
        %4770 = vmatpush.bf16.msra.mxu0 %v4600
        %4771 = vmatpush.bf16.msra.mxu0 %v4596
        %4772 = vmatpush.bf16.msra.mxu0 %v4592
        %4773 = vmatpush.bf16.msra.mxu0 %v4588
        %4774 = vmatmul.bf16.gmra.mxu0 %v4318
        %v4775 = vpop.f32.mrf.mxu0
        %v4776 = vadd.f32 %v4388, %v4775
        %v4777 = vpop.f32.mrf.mxu0
        %4778 = vdwg.mxu0
        %4779 = vmatpush.bf16.msra.mxu0 %v4648
        %4780 = vmatpush.bf16.msra.mxu0 %v4644
        %4781 = vmatpush.bf16.msra.mxu0 %v4640
        %4782 = vmatpush.bf16.msra.mxu0 %v4636
        %4783 = vmatpush.bf16.msra.mxu0 %v4632
        %4784 = vmatpush.bf16.msra.mxu0 %v4628
        %4785 = vmatpush.bf16.msra.mxu0 %v4624
        %4786 = vmatpush.bf16.msra.mxu0 %v4620
        %4787 = vmatmul.bf16.gmra.mxu0 %v4319
        %v4788 = vpop.f32.mrf.mxu0
        %v4789 = vadd.f32 %v4776, %v4788
        %v4790 = vpop.f32.mrf.mxu0
        %4791 = vdwg.mxu0
        %4792 = vmatpush.bf16.msra.mxu0 %v4617
        %4793 = vmatpush.bf16.msra.mxu0 %v4613
        %4794 = vmatpush.bf16.msra.mxu0 %v4609
        %4795 = vmatpush.bf16.msra.mxu0 %v4605
        %4796 = vmatpush.bf16.msra.mxu0 %v4601
        %4797 = vmatpush.bf16.msra.mxu0 %v4597
        %4798 = vmatpush.bf16.msra.mxu0 %v4593
        %4799 = vmatpush.bf16.msra.mxu0 %v4589
        %4800 = vmatmul.bf16.gmra.mxu0 %v4318
        %v4801 = vpop.f32.mrf.mxu0
        %v4802 = vadd.f32 %v4389, %v4801
        %v4803 = vpop.f32.mrf.mxu0
        %4804 = vdwg.mxu0
        %4805 = vmatpush.bf16.msra.mxu0 %v4649
        %4806 = vmatpush.bf16.msra.mxu0 %v4645
        %4807 = vmatpush.bf16.msra.mxu0 %v4641
        %4808 = vmatpush.bf16.msra.mxu0 %v4637
        %4809 = vmatpush.bf16.msra.mxu0 %v4633
        %4810 = vmatpush.bf16.msra.mxu0 %v4629
        %4811 = vmatpush.bf16.msra.mxu0 %v4625
        %4812 = vmatpush.bf16.msra.mxu0 %v4621
        %4813 = vmatmul.bf16.gmra.mxu0 %v4319
        %v4814 = vpop.f32.mrf.mxu0
        %v4815 = vadd.f32 %v4802, %v4814
        %v4816 = vpop.f32.mrf.mxu0
        %4817 = vdwg.mxu0
        %v4818 = vxor.u32 %v4737, 2147483648
        %v4819 = vmul.f32 %v4818, 1.442695
        %v4820 = vpow.pop %v4819
        %v4821 = vadd.f32 %v4820, 1.0
        %v4822 = vrcp.pop %v4821
        %v4823 = vmul.f32 %v4821, %v4822
        %v4824 = vsub.f32 1.0, %v4823
        %v4825 = vmul.f32 %v4822, %v4824
        %v4826 = vadd.f32 %v4822, %v4825
        %vm4827 = vweird.f32 %v4821
        %vm4828 = vweird.f32 %v4822
        %vm4829 = vmor %vm4827, %vm4828
        %v4830 = vsel %vm4829, %v4822, %v4826
        %v4831 = vand.u32 2147483647, %v4821
        %vm4832 = vcmp.eq.f32.partialorder %v4831, 8.507059e+37
        %v4833 = vand.u32 %v4821, 2147483648
        %v4834 = vor.u32 1.1754944e-38, %v4833
        %v4835 = vsel %vm4832, %v4834, %v4830
        %v4836 = vmul.f32 1.0, %v4835
        %v4837 = vxor.u32 %v4763, 2147483648
        %v4838 = vmul.f32 %v4837, 1.442695
        %v4839 = vpow.pop %v4838
        %v4840 = vadd.f32 %v4839, 1.0
        %v4841 = vrcp.pop %v4840
        %v4842 = vmul.f32 %v4840, %v4841
        %v4843 = vsub.f32 1.0, %v4842
        %v4844 = vmul.f32 %v4841, %v4843
        %v4845 = vadd.f32 %v4841, %v4844
        %vm4846 = vweird.f32 %v4840
        %vm4847 = vweird.f32 %v4841
        %vm4848 = vmor %vm4846, %vm4847
        %v4849 = vsel %vm4848, %v4841, %v4845
        %v4850 = vand.u32 2147483647, %v4840
        %vm4851 = vcmp.eq.f32.partialorder %v4850, 8.507059e+37
        %v4852 = vand.u32 %v4840, 2147483648
        %v4853 = vor.u32 1.1754944e-38, %v4852
        %v4854 = vsel %vm4851, %v4853, %v4849
        %v4855 = vmul.f32 1.0, %v4854
        %v4856 = vtanh.pop %v4789
        %v4857 = vxor.u32 %v4815, 2147483648
        %v4858 = vmul.f32 %v4857, 1.442695
        %v4859 = vpow.pop %v4858
        %v4860 = vadd.f32 %v4859, 1.0
        %v4861 = vrcp.pop %v4860
        %v4862 = vmul.f32 %v4860, %v4861
        %v4863 = vsub.f32 1.0, %v4862
        %v4864 = vmul.f32 %v4861, %v4863
        %v4865 = vadd.f32 %v4861, %v4864
        %vm4866 = vweird.f32 %v4860
        %vm4867 = vweird.f32 %v4861
        %vm4868 = vmor %vm4866, %vm4867
        %v4869 = vsel %vm4868, %v4861, %v4865
        %v4870 = vand.u32 2147483647, %v4860
        %vm4871 = vcmp.eq.f32.partialorder %v4870, 8.507059e+37
        %v4872 = vand.u32 %v4860, 2147483648
        %v4873 = vor.u32 1.1754944e-38, %v4872
        %v4874 = vsel %vm4871, %v4873, %v4869
        %v4875 = vmul.f32 1.0, %v4874
        %v4876 = vmul.f32 %v4855, %v4317
        %v4877 = vmul.f32 %v4836, %v4856
        %v4878 = vadd.f32 %v4876, %v4877
        %v4879 = vtanh.pop %v4878
        %v4880 = vmul.f32 %v4875, %v4879
        %4881 = vst [vmem:[%s901] sm:$0xff] %v4880
        %4882 = vst [vmem:[%s903] sm:$0xff] %v4878
        %v4883 = vpack.c.bf16 %v4880, %v4880
        %s4884 = scalar_lea.vmem %s323, 12 [#allocation13]
        %4885 = vst [vmem:[%s4884] sm:$0xf] %v4883
        %s4886 = sand.u32 %s158, 1
        %s4887 = scalar_lea.sflag [#allocation6], %s4886
        %s4888 = sand.u32 %s158, 1
        %s4889 = smul.addr %s4888, 16
        %s4890 = scalar_lea.vmem [#allocation13], %s4889
        // Predicated region
        $region65: #{tpu_custom_call.1} parent=39 // pred_check
          %p4891 = pneg %p168
        $region66: #{tpu_custom_call.1} parent=39 // pred_check_branch
          %4893 = sbr.rel (%p4891) target = $region68
        $region67: #{tpu_custom_call.1} parent=39 // pred_region
          %s4894 = smul.u32 4, %s29
          %4896 = vsyncadd %s4887, 0
          %s4897 = sadd.s32 %s28, %s4894
          %s4898 = smul.addr %s4897, 4
          %s4899 = scalar_lea.hbm %s5, %s4898
          %s4900 = sshll.u32 %s4890, 4
          %s4901 = int_to_ptr.vmem [resolvable:$true] %s4900
          %s4902 = sshll.u32 %s4899, 4
          %s4903 = int_to_ptr.hbm [resolvable:$true] %s4902
          %4908 = dma.vmem_to_hbm [thread:$0]  %s4901, 256, %s4903, %s4887, 64, 64, 4
        $region68: #{tpu_custom_call.1} parent=39 // pred_fallthru
          _
      $region40: #{tpu_custom_call.1} parent=5 // pred_fallthru
        _
      %p4909 = scmp.le.s32.totalorder 2, %s19
      // Predicated region
      $region69: #{tpu_custom_call.1} parent=5 // pred_check
        %p4910 = pneg %p4909
      $region70: #{tpu_custom_call.1} parent=5 // pred_check_branch
        %4912 = sbr.rel (%p4910) target = $region72
      $region71: #{tpu_custom_call.1} parent=5 // pred_region
        %s4913 = ssub.s32 %s19, 2
        // Predicated region
        $region73: #{tpu_custom_call.1} parent=71 // pred_check
          %p4914 = pneg %p174
        $region74: #{tpu_custom_call.1} parent=71 // pred_check_branch
          %4916 = sbr.rel (%p4914) target = $region76
        $region75: #{tpu_custom_call.1} parent=71 // pred_region
          %s4917 = sand.u32 %s159, 1
          %s4918 = scalar_lea.sflag [#allocation6], %s4917
          %s4919 = sand.u32 %s159, 1
          %s4920 = smul.addr %s4919, 16
          %s4921 = scalar_lea.vmem [#allocation13], %s4920
          %4923 = dma.done %s4918, 256
        $region76: #{tpu_custom_call.1} parent=71 // pred_fallthru
          _
      $region72: #{tpu_custom_call.1} parent=5 // pred_fallthru
        _
    $region6: #{tpu_custom_call.1} parent=1 // loop_footer
      %s23 = sadd.s32 1, %s19
    $region7: #{tpu_custom_call.1} parent=1 // loop_footer_branch
      %18 = sbr.rel target = $region3
    $region8: #{tpu_custom_call.1} parent=1 // loop_exit
      _
    %4924 = vsyncpa [#allocation5], 1
    %s4925 = scalar_lea.sflag [#allocation5], 1
    %4926 = vsyncpa %s4925, 1
    %4927 = vsyncpa [#allocation8], 1
    %4928 = vsyncpa [#allocation11], 1
    %4929 = vsyncpa [#allocation6], 1
    %s4930 = scalar_lea.sflag [#allocation6], 1
    %4931 = vsyncpa %s4930, 1

</llo_original>
